<compile_context>
chip_gen: v5e
topology: v5e:2x2
jax: 0.10.0
libtpu: 0.0.40
codegen_flags: <defaults>
</compile_context>

<pallas_src>
import functools

import jax
import jax.numpy as jnp
from jax.experimental import pallas as pl
from jax.experimental.pallas import tpu as pltpu

EPS = 1e-5
LANE = 128


def _round_up(n, m):
    return (n + m - 1) // m * m


def _mosaic_params(block_bytes):
    cap = int(min(max(2 * int(block_bytes) + (2 << 20), 8 << 20), 64 << 20))
    return pltpu.CompilerParams(dimension_semantics=("parallel",),
                                vmem_limit_bytes=cap)


# ----------------------------------------------------------------------------
# Pallas kernels
# ----------------------------------------------------------------------------
def _conv3x3_stats_kernel(xg_ref, w_ref, y_ref, sum_ref, sq_ref, *, taps, ho, wo):
    """3x3 conv for one image as 9 shifted (Ho*Wo,Cin)@(Cin,Cp) MXU taps with
    f32 accumulation, plus per-image per-channel sum / sum-of-squares taken
    from the f32 accumulator *before* the bf16 downcast."""
    mblk = ho * wo
    cin = xg_ref.shape[-1]
    cp = y_ref.shape[-1]
    acc = jnp.zeros((mblk, cp), jnp.float32)
    for k, (g, oy, ox) in enumerate(taps):
        sl = xg_ref[0, g, oy:oy + ho, ox:ox + wo, :]        # (ho, wo, cin) bf16
        acc = acc + jnp.dot(sl.reshape(mblk, cin), w_ref[k],
                            preferred_element_type=jnp.float32)
    y_ref[...] = acc.astype(y_ref.dtype)                    # bf16 store
    sum_ref[...] = jnp.sum(acc, axis=0, keepdims=True)[None]
    sq_ref[...] = jnp.sum(acc * acc, axis=0, keepdims=True)[None]


def _bn_relu_kernel(y_ref, s_ref, t_ref, o_ref, *, cout):
    """relu(scale*y + shift) -> bf16, written at native channel width."""
    y = y_ref[...].astype(jnp.float32)
    a = jnp.maximum(y * s_ref[...] + t_ref[...], 0.0)
    o_ref[...] = a[:, :cout].astype(o_ref.dtype)


def _bn_relu_add_relu_kernel(y_ref, s_ref, t_ref, r_ref, o_ref, *, cout):
    """relu(residual + relu(scale*y + shift))  -- identity shortcut."""
    y = y_ref[...].astype(jnp.float32)
    a = jnp.maximum(y * s_ref[...] + t_ref[...], 0.0)[:, :cout]
    r = r_ref[...].astype(jnp.float32)
    o_ref[...] = jnp.maximum(a + r, 0.0).astype(o_ref.dtype)


def _bn_relu_proj_add_relu_kernel(y_ref, s_ref, t_ref, x_ref, w_ref, b_ref,
                                  o_ref, *, cout):
    """relu((x @ w3 + b3) + relu(scale*y + shift)) -- fused 1x1 conv shortcut."""
    y = y_ref[...].astype(jnp.float32)
    a = jnp.maximum(y * s_ref[...] + t_ref[...], 0.0)[:, :cout]
    r = jnp.dot(x_ref[...], w_ref[...],
                preferred_element_type=jnp.float32) + b_ref[...]
    o_ref[...] = jnp.maximum(a + r, 0.0).astype(o_ref.dtype)


# ----------------------------------------------------------------------------
# pallas_call wrappers (grid over images; one spatial slab per grid step)
# ----------------------------------------------------------------------------
def _call_conv3x3_stats(xg, w_mat, taps, ho, wo):
    n, ng, hg, wg, cin = xg.shape
    cp = w_mat.shape[-1]
    mblk = ho * wo
    m = n * mblk
    kern = functools.partial(_conv3x3_stats_kernel, taps=taps, ho=ho, wo=wo)
    blk = (ng * hg * wg * cin * 2 + 9 * cin * cp * 2
           + mblk * cp * 2 + mblk * cp * 4 + 4 * cp * 4)
    y, s, sq = pl.pallas_call(
        kern,
        grid=(n,),
        in_specs=[
            pl.BlockSpec((1, ng, hg, wg, cin), lambda i: (i, 0, 0, 0, 0)),
            pl.BlockSpec((9, cin, cp), lambda i: (0, 0, 0)),
        ],
        out_specs=[
            pl.BlockSpec((mblk, cp), lambda i: (i, 0)),
            pl.BlockSpec((1, 1, cp), lambda i: (i, 0, 0)),   # per-image partials
            pl.BlockSpec((1, 1, cp), lambda i: (i, 0, 0)),
        ],
        out_shape=[
            jax.ShapeDtypeStruct((m, cp), jnp.bfloat16),
            jax.ShapeDtypeStruct((n, 1, cp), jnp.float32),
            jax.ShapeDtypeStruct((n, 1, cp), jnp.float32),
        ],
        compiler_params=_mosaic_params(blk),
        cost_estimate=pl.CostEstimate(
            flops=int(2 * m * 9 * cin * cp), transcendentals=0,
            bytes_accessed=int(xg.size * 2 + w_mat.size * 2
                               + m * cp * 2 + 2 * n * cp * 4)),
    )(xg, w_mat)
    return y, s, sq


def _call_bn_relu(y, scale, shift, n, cout):
    m, cp = y.shape
    mblk = m // n
    kern = functools.partial(_bn_relu_kernel, cout=cout)
    blk = mblk * cp * 2 + 2 * cp * 4 + mblk * cout * 2 + mblk * cp * 4
    return pl.pallas_call(
        kern,
        grid=(n,),
        in_specs=[
            pl.BlockSpec((mblk, cp), lambda i: (i, 0)),
            pl.BlockSpec((1, cp), lambda i: (0, 0)),
            pl.BlockSpec((1, cp), lambda i: (0, 0)),
        ],
        out_specs=pl.BlockSpec((mblk, cout), lambda i: (i, 0)),
        out_shape=jax.ShapeDtypeStruct((m, cout), jnp.bfloat16),
        compiler_params=_mosaic_params(blk),
    )(y, scale, shift)


def _call_bn_relu_add_relu(y, scale, shift, res, n, cout):
    m, cp = y.shape
    mblk = m // n
    kern = functools.partial(_bn_relu_add_relu_kernel, cout=cout)
    blk = mblk * cp * 2 + 2 * cp * 4 + mblk * cout * 6 + mblk * cp * 4
    return pl.pallas_call(
        kern,
        grid=(n,),
        in_specs=[
            pl.BlockSpec((mblk, cp), lambda i: (i, 0)),
            pl.BlockSpec((1, cp), lambda i: (0, 0)),
            pl.BlockSpec((1, cp), lambda i: (0, 0)),
            pl.BlockSpec((mblk, cout), lambda i: (i, 0)),
        ],
        out_specs=pl.BlockSpec((mblk, cout), lambda i: (i, 0)),
        out_shape=jax.ShapeDtypeStruct((m, cout), jnp.float32),
        compiler_params=_mosaic_params(blk),
    )(y, scale, shift, res)


def _call_bn_relu_proj_add_relu(y, scale, shift, x_s, w3, b3, n, cout):
    m, cp = y.shape
    cin = x_s.shape[1]
    mblk = m // n
    kern = functools.partial(_bn_relu_proj_add_relu_kernel, cout=cout)
    blk = (mblk * cp * 2 + 2 * cp * 4 + mblk * cin * 2
           + cin * cout * 2 + cout * 4 + mblk * cout * 4 + mblk * cp * 4)
    return pl.pallas_call(
        kern,
        grid=(n,),
        in_specs=[
            pl.BlockSpec((mblk, cp), lambda i: (i, 0)),
            pl.BlockSpec((1, cp), lambda i: (0, 0)),
            pl.BlockSpec((1, cp), lambda i: (0, 0)),
            pl.BlockSpec((mblk, cin), lambda i: (i, 0)),
            pl.BlockSpec((cin, cout), lambda i: (0, 0)),
            pl.BlockSpec((1, cout), lambda i: (0, 0)),
        ],
        out_specs=pl.BlockSpec((mblk, cout), lambda i: (i, 0)),
        out_shape=jax.ShapeDtypeStruct((m, cout), jnp.float32),
        compiler_params=_mosaic_params(blk),
        cost_estimate=pl.CostEstimate(
            flops=int(2 * m * cin * cout), transcendentals=0,
            bytes_accessed=int(m * cp * 2 + m * cin * 2 + m * cout * 4)),
    )(y, scale, shift, x_s, w3, b3)


# ----------------------------------------------------------------------------
# Thin plain-JAX glue: halo padding / parity split, weight reshape, BN fold
# ----------------------------------------------------------------------------
def _w3x3_to_mat(w_oihw, cp):
    """(Cout, Cin, 3, 3) -> (9, Cin, Cp) with tap index k = dy*3+dx."""
    cout, cin, _, _ = w_oihw.shape
    wt = jnp.transpose(w_oihw, (2, 3, 1, 0)).reshape(9, cin, cout)
    return jnp.pad(wt, ((0, 0), (0, 0), (0, cp - cout))).astype(jnp.bfloat16)


def _prep_conv_input(x_nhwc, stride):
    """Halo-padded (and, for stride 2, parity-split) NHWC conv input plus the
    static (plane, dy, dx) tap table consumed by the conv kernel."""
    n, h, w, c = x_nhwc.shape
    if stride == 1:
        xp = jnp.pad(x_nhwc, ((0, 0), (1, 1), (1, 1), (0, 0)))
        xg = xp.reshape(n, 1, h + 2, w + 2, c)
        taps = tuple((0, dy, dx) for dy in range(3) for dx in range(3))
    else:
        hp, wp = h + 2, w + 2
        xp = jnp.pad(x_nhwc, ((0, 0), (1, 1 + hp % 2), (1, 1 + wp % 2), (0, 0)))
        planes = [xp[:, py::2, px::2, :] for py in (0, 1) for px in (0, 1)]
        xg = jnp.stack(planes, axis=1)          # (N, 4, ceil(Hp/2), ceil(Wp/2), C)
        taps = tuple(((dy % 2) * 2 + (dx % 2), dy // 2, dx // 2)
                     for dy in range(3) for dx in range(3))
    return xg, taps


def _bn_fold(sum_n, sq_n, mblk, gamma, beta, cp):
    """Merge per-image partial moments (Welford-style) and fold training-mode
    BatchNorm (biased variance) into one per-channel scale/shift."""
    s = sum_n.reshape(-1, cp)
    q = sq_n.reshape(-1, cp)
    n_img = s.shape[0]
    m_tot = n_img * mblk
    mean_i = s / mblk
    m2_i = q - mblk * mean_i * mean_i
    mean = jnp.sum(s, axis=0) / m_tot
    m2 = jnp.sum(m2_i, axis=0) + mblk * jnp.sum((mean_i - mean[None, :]) ** 2, axis=0)
    var = jnp.maximum(m2 / m_tot, 0.0)
    inv = jax.lax.rsqrt(var + EPS)
    cout = gamma.shape[0]
    scale = jnp.pad(gamma, (0, cp - cout), constant_values=1.0) * inv
    shift = jnp.pad(beta, (0, cp - cout)) - mean * scale
    return (scale.reshape(1, cp).astype(jnp.float32),
            shift.reshape(1, cp).astype(jnp.float32))


def residual_block_forward_nhwc(x_nhwc, params, same_shape=True):
    """Core NHWC forward (training-mode BN, matches residual_block.forward)."""
    n, h, w, cin = x_nhwc.shape
    stride = 1 if same_shape else 2
    cout = params["w1"].shape[0]
    if same_shape and cin != cout:
        raise ValueError("same_shape=True requires in_channel == out_channel")
    cp = _round_up(cout, LANE)
    ho = (h + 2 - 3) // stride + 1
    wo = (w + 2 - 3) // stride + 1
    mblk = ho * wo
    m = n * mblk
    if n > 1 and mblk % 8 != 0:
        raise ValueError("Ho*Wo must be a multiple of 8 to block per image")

    x_bf = x_nhwc.astype(jnp.bfloat16)

    # ---- conv1 (in-kernel 3x3 taps) + BN1 per-image partial stats ----
    xg1, taps1 = _prep_conv_input(x_bf, stride)
    w1 = _w3x3_to_mat(params["w1"], cp)
    y1, s1, q1 = _call_conv3x3_stats(xg1, w1, taps1, ho, wo)
    scale1, shift1 = _bn_fold(s1, q1, mblk, params["g1"], params["b1"], cp)

    # ---- BN1 normalize + ReLU (bf16, native channel width) ----
    out1 = _call_bn_relu(y1, scale1, shift1, n, cout)         # (m, cout) bf16

    # ---- conv2 + BN2 partial stats ----
    xg2, taps2 = _prep_conv_input(out1.reshape(n, ho, wo, cout), 1)
    w2 = _w3x3_to_mat(params["w2"], cp)
    y2, s2, q2 = _call_conv3x3_stats(xg2, w2, taps2, ho, wo)
    scale2, shift2 = _bn_fold(s2, q2, mblk, params["g2"], params["b2"], cp)

    # ---- BN2 normalize + ReLU + shortcut add + final ReLU ----
    if same_shape:
        res = x_bf.reshape(m, cin)                            # identity shortcut
        out = _call_bn_relu_add_relu(y2, scale2, shift2, res, n, cout)
    else:
        x_s = x_bf[:, ::stride, ::stride, :].reshape(m, cin)
        w3 = jnp.transpose(params["w3"][:, :, 0, 0]).astype(jnp.bfloat16)
        b3 = params["b3"].reshape(1, cout).astype(jnp.float32)
        out = _call_bn_relu_proj_add_relu(y2, scale2, shift2, x_s, w3, b3, n, cout)

    return out.reshape(n, ho, wo, cout)


@functools.partial(jax.jit, static_argnames=("same_shape",))
def residual_block_forward(x_nchw, params, same_shape=True):
    """PyTorch-interface wrapper: NCHW in / NCHW out."""
    x = jnp.transpose(x_nchw, (0, 2, 3, 1))
    out = residual_block_forward_nhwc(x, params, same_shape=same_shape)
    return jnp.transpose(out, (0, 3, 1, 2))


# ----------------------------------------------------------------------------
# Pure-JAX reference mirroring the kernel's rounding points (bf16 conv
# operands, f32 accumulation, bf16 storage of conv outputs / stage-1
# activation / residual) so the comparison stays meaningful.
# ----------------------------------------------------------------------------
def _ref_conv(x_nhwc, w_oihw, stride, padding):
    return jax.lax.conv_general_dilated(
        x_nhwc.astype(jnp.bfloat16),
        jnp.transpose(w_oihw, (2, 3, 1, 0)).astype(jnp.bfloat16),
        window_strides=(stride, stride), padding=padding,
        dimension_numbers=("NHWC", "HWIO", "NHWC"),
        preferred_element_type=jnp.float32)


def _ref_bn(y, g, b):
    # stats from the f32 conv output; normalization applied to the bf16-
    # rounded y (the kernel stores y as bf16 but takes stats from the f32 acc)
    mean = y.mean(axis=(0, 1, 2), keepdims=True)
    var = ((y - mean) ** 2).mean(axis=(0, 1, 2), keepdims=True)
    yb = y.astype(jnp.bfloat16).astype(jnp.float32)
    return g.reshape(1, 1, 1, -1) * (yb - mean) * jax.lax.rsqrt(var + EPS) \
        + b.reshape(1, 1, 1, -1)


def ref_forward(x_nchw, params, same_shape=True):
    x = jnp.transpose(x_nchw, (0, 2, 3, 1)).astype(jnp.float32)
    stride = 1 if same_shape else 2
    out = _ref_conv(x, params["w1"], stride, ((1, 1), (1, 1)))
    out = jax.nn.relu(_ref_bn(out, params["g1"], params["b1"]))
    out = out.astype(jnp.bfloat16).astype(jnp.float32)        # stage-1 act bf16
    out = _ref_conv(out, params["w2"], 1, ((1, 1), (1, 1)))
    out = jax.nn.relu(_ref_bn(out, params["g2"], params["b2"]))
    if same_shape:
        res = x.astype(jnp.bfloat16).astype(jnp.float32)
    else:
        res = _ref_conv(x, params["w3"], stride, "VALID") \
            + params["b3"].reshape(1, 1, 1, -1)
    out = jax.nn.relu(res + out)
    return jnp.transpose(out, (0, 3, 1, 2))


# ----------------------------------------------------------------------------
# Deterministic parameter init + demo
# ----------------------------------------------------------------------------
def make_params(key, in_ch, out_ch, same_shape):
    ks = jax.random.split(key, 6)
    p = {
        "w1": 0.1 * jax.random.normal(ks[0], (out_ch, in_ch, 3, 3), jnp.float32),
        "g1": jax.random.uniform(ks[1], (out_ch,), jnp.float32, 0.5, 1.5),
        "b1": 0.1 * jax.random.normal(ks[2], (out_ch,), jnp.float32),
        "w2": 0.1 * jax.random.normal(ks[3], (out_ch, out_ch, 3, 3), jnp.float32),
        "g2": jax.random.uniform(ks[4], (out_ch,), jnp.float32, 0.5, 1.5),
        "b2": 0.1 * jax.random.normal(ks[5], (out_ch,), jnp.float32),
    }
    if not same_shape:
        k7, k8 = jax.random.split(ks[0], 2)
        p["w3"] = 0.1 * jax.random.normal(k7, (out_ch, in_ch, 1, 1), jnp.float32)
        p["b3"] = 0.1 * jax.random.normal(k8, (out_ch,), jnp.float32)
    return p


if __name__ == "__main__":
    key = jax.random.PRNGKey(0)
    kx, kp1, kp2 = jax.random.split(key, 3)

    N, Cin, H, W = 2, 8, 16, 16
    x = jax.random.normal(kx, (N, Cin, H, W), jnp.float32)

    # tolerance reflects bf16 storage of the conv outputs / stage-1 activation
    TOL = 1e-2

    # case 1: same_shape=True (stride 1, identity shortcut)
    params1 = make_params(kp1, Cin, Cin, same_shape=True)
    out1 = jax.block_until_ready(residual_block_forward(x, params1, same_shape=True))
    ref1 = ref_forward(x, params1, same_shape=True)
    assert out1.shape == (N, Cin, H, W)
    err1 = float(jnp.max(jnp.abs(out1 - ref1)))
    assert jnp.allclose(out1, ref1, atol=TOL, rtol=TOL), \
        f"same_shape=True mismatch (max|d|={err1})"

    # case 2: same_shape=False (stride 2, fused 1x1 conv shortcut)
    Cout = 16
    params2 = make_params(kp2, Cin, Cout, same_shape=False)
    out2 = jax.block_until_ready(residual_block_forward(x, params2, same_shape=False))
    ref2 = ref_forward(x, params2, same_shape=False)
    assert out2.shape == (N, Cout, H // 2, W // 2)
    err2 = float(jnp.max(jnp.abs(out2 - ref2)))
    assert jnp.allclose(out2, ref2, atol=TOL, rtol=TOL), \
        f"same_shape=False mismatch (max|d|={err2})"

    print("KERNEL_OK")
</pallas_src>

<mosaic_0001>
module attributes {stable_mosaic.version = 11 : i64} {
  func.func @_bn_relu_add_relu_kernel(%arg0: i32, %arg1: memref<256x128xbf16, #tpu.memory_space<vmem>>, %arg2: memref<1x128xf32, #tpu.memory_space<vmem>>, %arg3: memref<1x128xf32, #tpu.memory_space<vmem>>, %arg4: memref<256x8xbf16, #tpu.memory_space<vmem>>, %arg5: memref<256x8xf32, #tpu.memory_space<vmem>>) attributes {dimension_semantics = [#tpu.dimension_semantics<parallel>], iteration_bounds = array<i64: 2>, scalar_prefetch = 0 : i64, scratch_operands = 0 : i64, tpu.core_type = #tpu.core_type<tc>, window_params = [{transform_indices = @transform_0, window_bounds = array<i64: 256, 128>}, {pipeline_mode = #tpu.pipeline_mode<synchronous>, transform_indices = @transform_1, window_bounds = array<i64: 1, 128>}, {pipeline_mode = #tpu.pipeline_mode<synchronous>, transform_indices = @transform_2, window_bounds = array<i64: 1, 128>}, {transform_indices = @transform_3, window_bounds = array<i64: 256, 8>}, {transform_indices = @transform_4, window_bounds = array<i64: 256, 8>}]} {
    %c0 = arith.constant 0 : index
    %c0_0 = arith.constant 0 : index
    %0 = vector.load %arg1[%c0, %c0_0] : memref<256x128xbf16, #tpu.memory_space<vmem>>, vector<256x128xbf16>
    %1 = arith.extf %0 : vector<256x128xbf16> to vector<256x128xf32>
    %c0_1 = arith.constant 0 : index
    %c0_2 = arith.constant 0 : index
    %2 = vector.load %arg2[%c0_1, %c0_2] : memref<1x128xf32, #tpu.memory_space<vmem>>, vector<1x128xf32>
    %3 = vector.broadcast %2 : vector<1x128xf32> to vector<256x128xf32>
    %4 = arith.mulf %1, %3 : vector<256x128xf32>
    %c0_3 = arith.constant 0 : index
    %c0_4 = arith.constant 0 : index
    %5 = vector.load %arg3[%c0_3, %c0_4] : memref<1x128xf32, #tpu.memory_space<vmem>>, vector<1x128xf32>
    %6 = vector.broadcast %5 : vector<1x128xf32> to vector<256x128xf32>
    %7 = arith.addf %4, %6 : vector<256x128xf32>
    %cst = arith.constant 0.000000e+00 : f32
    %8 = vector.broadcast %cst : f32 to vector<256x128xf32>
    %9 = arith.maximumf %7, %8 : vector<256x128xf32>
    %10 = vector.extract_strided_slice %9 {offsets = [0, 0], sizes = [256, 8], strides = [1, 1]} : vector<256x128xf32> to vector<256x8xf32>
    %c0_5 = arith.constant 0 : index
    %c0_6 = arith.constant 0 : index
    %11 = vector.load %arg4[%c0_5, %c0_6] : memref<256x8xbf16, #tpu.memory_space<vmem>>, vector<256x8xbf16>
    %12 = arith.extf %11 : vector<256x8xbf16> to vector<256x8xf32>
    %13 = arith.addf %10, %12 : vector<256x8xf32>
    %cst_7 = arith.constant 0.000000e+00 : f32
    %14 = vector.broadcast %cst_7 : f32 to vector<256x8xf32>
    %15 = arith.maximumf %13, %14 : vector<256x8xf32>
    %c0_8 = arith.constant 0 : index
    %c0_9 = arith.constant 0 : index
    %16 = vector.load %arg5[%c0_8, %c0_9] : memref<256x8xf32, #tpu.memory_space<vmem>>, vector<256x8xf32>
    tpu.vector_store %arg5[%c0_8, %c0_9], %15 {strides = array<i32>} : memref<256x8xf32, #tpu.memory_space<vmem>>, vector<256x8xf32>,
    return
  }
  func.func @transform_0(%arg0: i32) -> (i32, i32) {
    %c0_i32 = arith.constant 0 : i32
    %c0_i32_0 = arith.constant 0 : i32
    return %arg0, %c0_i32 : i32, i32
  }
  func.func @transform_1(%arg0: i32) -> (i32, i32) {
    %c0_i32 = arith.constant 0 : i32
    %c0_i32_0 = arith.constant 0 : i32
    %c0_i32_1 = arith.constant 0 : i32
    return %c0_i32, %c0_i32_0 : i32, i32
  }
  func.func @transform_2(%arg0: i32) -> (i32, i32) {
    %c0_i32 = arith.constant 0 : i32
    %c0_i32_0 = arith.constant 0 : i32
    %c0_i32_1 = arith.constant 0 : i32
    return %c0_i32, %c0_i32_0 : i32, i32
  }
  func.func @transform_3(%arg0: i32) -> (i32, i32) {
    %c0_i32 = arith.constant 0 : i32
    %c0_i32_0 = arith.constant 0 : i32
    return %arg0, %c0_i32 : i32, i32
  }
  func.func @transform_4(%arg0: i32) -> (i32, i32) {
    %c0_i32 = arith.constant 0 : i32
    %c0_i32_0 = arith.constant 0 : i32
    return %arg0, %c0_i32 : i32, i32
  }
}

module attributes {stable_mosaic.version = 11 : i64} {
  func.func @_conv3x3_stats_kernel(%arg0: i32, %arg1: memref<1x1x18x18x8xbf16, #tpu.memory_space<vmem>>, %arg2: memref<9x8x128xbf16, #tpu.memory_space<vmem>>, %arg3: memref<256x128xbf16, #tpu.memory_space<vmem>>, %arg4: memref<1x1x128xf32, #tpu.memory_space<vmem>>, %arg5: memref<1x1x128xf32, #tpu.memory_space<vmem>>) attributes {dimension_semantics = [#tpu.dimension_semantics<parallel>], iteration_bounds = array<i64: 2>, scalar_prefetch = 0 : i64, scratch_operands = 0 : i64, tpu.core_type = #tpu.core_type<tc>, window_params = [{transform_indices = @transform_0, window_bounds = array<i64: 1, 1, 18, 18, 8>}, {pipeline_mode = #tpu.pipeline_mode<synchronous>, transform_indices = @transform_1, window_bounds = array<i64: 9, 8, 128>}, {transform_indices = @transform_2, window_bounds = array<i64: 256, 128>}, {transform_indices = @transform_3, window_bounds = array<i64: 1, 1, 128>}, {transform_indices = @transform_4, window_bounds = array<i64: 1, 1, 128>}]} {
    %cst = arith.constant 0.000000e+00 : f32
    %0 = vector.broadcast %cst : f32 to vector<256x128xf32>
    %c0 = arith.constant 0 : index
    %c0_0 = arith.constant 0 : index
    %c0_1 = arith.constant 0 : index
    %c0_2 = arith.constant 0 : index
    %c0_3 = arith.constant 0 : index
    %1 = vector.load %arg1[%c0, %c0_0, %c0_1, %c0_2, %c0_3] : memref<1x1x18x18x8xbf16, #tpu.memory_space<vmem>>, vector<1x1x16x16x8xbf16>
    %2 = vector.shape_cast %1 : vector<1x1x16x16x8xbf16> to vector<16x16x8xbf16>
    %3 = vector.shape_cast %2 : vector<16x16x8xbf16> to vector<256x8xbf16>
    %c0_4 = arith.constant 0 : index
    %c0_5 = arith.constant 0 : index
    %c0_6 = arith.constant 0 : index
    %4 = vector.load %arg2[%c0_4, %c0_5, %c0_6] : memref<9x8x128xbf16, #tpu.memory_space<vmem>>, vector<1x8x128xbf16>
    %5 = vector.shape_cast %4 : vector<1x8x128xbf16> to vector<8x128xbf16>
    %cst_7 = arith.constant dense<0.000000e+00> : vector<256x128xf32>
    %6 = tpu.matmul %3, %5, %cst_7 {dimension_numbers = #tpu.dot_dimension_numbers<[1], [0], [0], [1], [0, 0, 1, 1], [], []>} : vector<256x8xbf16>, vector<8x128xbf16>, vector<256x128xf32> -> vector<256x128xf32>
    %7 = arith.addf %0, %6 : vector<256x128xf32>
    %c0_8 = arith.constant 0 : index
    %c0_9 = arith.constant 0 : index
    %c0_10 = arith.constant 0 : index
    %c1 = arith.constant 1 : index
    %c0_11 = arith.constant 0 : index
    %8 = vector.load %arg1[%c0_8, %c0_9, %c0_10, %c1, %c0_11] : memref<1x1x18x18x8xbf16, #tpu.memory_space<vmem>>, vector<1x1x16x16x8xbf16>
    %9 = vector.shape_cast %8 : vector<1x1x16x16x8xbf16> to vector<16x16x8xbf16>
    %10 = vector.shape_cast %9 : vector<16x16x8xbf16> to vector<256x8xbf16>
    %c1_12 = arith.constant 1 : index
    %c0_13 = arith.constant 0 : index
    %c0_14 = arith.constant 0 : index
    %11 = vector.load %arg2[%c1_12, %c0_13, %c0_14] : memref<9x8x128xbf16, #tpu.memory_space<vmem>>, vector<1x8x128xbf16>
    %12 = vector.shape_cast %11 : vector<1x8x128xbf16> to vector<8x128xbf16>
    %cst_15 = arith.constant dense<0.000000e+00> : vector<256x128xf32>
    %13 = tpu.matmul %10, %12, %cst_15 {dimension_numbers = #tpu.dot_dimension_numbers<[1], [0], [0], [1], [0, 0, 1, 1], [], []>} : vector<256x8xbf16>, vector<8x128xbf16>, vector<256x128xf32> -> vector<256x128xf32>
    %14 = arith.addf %7, %13 : vector<256x128xf32>
    %c0_16 = arith.constant 0 : index
    %c0_17 = arith.constant 0 : index
    %c0_18 = arith.constant 0 : index
    %c2 = arith.constant 2 : index
    %c0_19 = arith.constant 0 : index
    %15 = vector.load %arg1[%c0_16, %c0_17, %c0_18, %c2, %c0_19] : memref<1x1x18x18x8xbf16, #tpu.memory_space<vmem>>, vector<1x1x16x16x8xbf16>
    %16 = vector.shape_cast %15 : vector<1x1x16x16x8xbf16> to vector<16x16x8xbf16>
    %17 = vector.shape_cast %16 : vector<16x16x8xbf16> to vector<256x8xbf16>
    %c2_20 = arith.constant 2 : index
    %c0_21 = arith.constant 0 : index
    %c0_22 = arith.constant 0 : index
    %18 = vector.load %arg2[%c2_20, %c0_21, %c0_22] : memref<9x8x128xbf16, #tpu.memory_space<vmem>>, vector<1x8x128xbf16>
    %19 = vector.shape_cast %18 : vector<1x8x128xbf16> to vector<8x128xbf16>
    %cst_23 = arith.constant dense<0.000000e+00> : vector<256x128xf32>
    %20 = tpu.matmul %17, %19, %cst_23 {dimension_numbers = #tpu.dot_dimension_numbers<[1], [0], [0], [1], [0, 0, 1, 1], [], []>} : vector<256x8xbf16>, vector<8x128xbf16>, vector<256x128xf32> -> vector<256x128xf32>
    %21 = arith.addf %14, %20 : vector<256x128xf32>
    %c0_24 = arith.constant 0 : index
    %c0_25 = arith.constant 0 : index
    %c1_26 = arith.constant 1 : index
    %c0_27 = arith.constant 0 : index
    %c0_28 = arith.constant 0 : index
    %22 = vector.load %arg1[%c0_24, %c0_25, %c1_26, %c0_27, %c0_28] : memref<1x1x18x18x8xbf16, #tpu.memory_space<vmem>>, vector<1x1x16x16x8xbf16>
    %23 = vector.shape_cast %22 : vector<1x1x16x16x8xbf16> to vector<16x16x8xbf16>
    %24 = vector.shape_cast %23 : vector<16x16x8xbf16> to vector<256x8xbf16>
    %c3 = arith.constant 3 : index
    %c0_29 = arith.constant 0 : index
    %c0_30 = arith.constant 0 : index
    %25 = vector.load %arg2[%c3, %c0_29, %c0_30] : memref<9x8x128xbf16, #tpu.memory_space<vmem>>, vector<1x8x128xbf16>
    %26 = vector.shape_cast %25 : vector<1x8x128xbf16> to vector<8x128xbf16>
    %cst_31 = arith.constant dense<0.000000e+00> : vector<256x128xf32>
    %27 = tpu.matmul %24, %26, %cst_31 {dimension_numbers = #tpu.dot_dimension_numbers<[1], [0], [0], [1], [0, 0, 1, 1], [], []>} : vector<256x8xbf16>, vector<8x128xbf16>, vector<256x128xf32> -> vector<256x128xf32>
    %28 = arith.addf %21, %27 : vector<256x128xf32>
    %c0_32 = arith.constant 0 : index
    %c0_33 = arith.constant 0 : index
    %c1_34 = arith.constant 1 : index
    %c1_35 = arith.constant 1 : index
    %c0_36 = arith.constant 0 : index
    %29 = vector.load %arg1[%c0_32, %c0_33, %c1_34, %c1_35, %c0_36] : memref<1x1x18x18x8xbf16, #tpu.memory_space<vmem>>, vector<1x1x16x16x8xbf16>
    %30 = vector.shape_cast %29 : vector<1x1x16x16x8xbf16> to vector<16x16x8xbf16>
    %31 = vector.shape_cast %30 : vector<16x16x8xbf16> to vector<256x8xbf16>
    %c4 = arith.constant 4 : index
    %c0_37 = arith.constant 0 : index
    %c0_38 = arith.constant 0 : index
    %32 = vector.load %arg2[%c4, %c0_37, %c0_38] : memref<9x8x128xbf16, #tpu.memory_space<vmem>>, vector<1x8x128xbf16>
    %33 = vector.shape_cast %32 : vector<1x8x128xbf16> to vector<8x128xbf16>
    %cst_39 = arith.constant dense<0.000000e+00> : vector<256x128xf32>
    %34 = tpu.matmul %31, %33, %cst_39 {dimension_numbers = #tpu.dot_dimension_numbers<[1], [0], [0], [1], [0, 0, 1, 1], [], []>} : vector<256x8xbf16>, vector<8x128xbf16>, vector<256x128xf32> -> vector<256x128xf32>
    %35 = arith.addf %28, %34 : vector<256x128xf32>
    %c0_40 = arith.constant 0 : index
    %c0_41 = arith.constant 0 : index
    %c1_42 = arith.constant 1 : index
    %c2_43 = arith.constant 2 : index
    %c0_44 = arith.constant 0 : index
    %36 = vector.load %arg1[%c0_40, %c0_41, %c1_42, %c2_43, %c0_44] : memref<1x1x18x18x8xbf16, #tpu.memory_space<vmem>>, vector<1x1x16x16x8xbf16>
    %37 = vector.shape_cast %36 : vector<1x1x16x16x8xbf16> to vector<16x16x8xbf16>
    %38 = vector.shape_cast %37 : vector<16x16x8xbf16> to vector<256x8xbf16>
    %c5 = arith.constant 5 : index
    %c0_45 = arith.constant 0 : index
    %c0_46 = arith.constant 0 : index
    %39 = vector.load %arg2[%c5, %c0_45, %c0_46] : memref<9x8x128xbf16, #tpu.memory_space<vmem>>, vector<1x8x128xbf16>
    %40 = vector.shape_cast %39 : vector<1x8x128xbf16> to vector<8x128xbf16>
    %cst_47 = arith.constant dense<0.000000e+00> : vector<256x128xf32>
    %41 = tpu.matmul %38, %40, %cst_47 {dimension_numbers = #tpu.dot_dimension_numbers<[1], [0], [0], [1], [0, 0, 1, 1], [], []>} : vector<256x8xbf16>, vector<8x128xbf16>, vector<256x128xf32> -> vector<256x128xf32>
    %42 = arith.addf %35, %41 : vector<256x128xf32>
    %c0_48 = arith.constant 0 : index
    %c0_49 = arith.constant 0 : index
    %c2_50 = arith.constant 2 : index
    %c0_51 = arith.constant 0 : index
    %c0_52 = arith.constant 0 : index
    %43 = vector.load %arg1[%c0_48, %c0_49, %c2_50, %c0_51, %c0_52] : memref<1x1x18x18x8xbf16, #tpu.memory_space<vmem>>, vector<1x1x16x16x8xbf16>
    %44 = vector.shape_cast %43 : vector<1x1x16x16x8xbf16> to vector<16x16x8xbf16>
    %45 = vector.shape_cast %44 : vector<16x16x8xbf16> to vector<256x8xbf16>
    %c6 = arith.constant 6 : index
    %c0_53 = arith.constant 0 : index
    %c0_54 = arith.constant 0 : index
    %46 = vector.load %arg2[%c6, %c0_53, %c0_54] : memref<9x8x128xbf16, #tpu.memory_space<vmem>>, vector<1x8x128xbf16>
    %47 = vector.shape_cast %46 : vector<1x8x128xbf16> to vector<8x128xbf16>
    %cst_55 = arith.constant dense<0.000000e+00> : vector<256x128xf32>
    %48 = tpu.matmul %45, %47, %cst_55 {dimension_numbers = #tpu.dot_dimension_numbers<[1], [0], [0], [1], [0, 0, 1, 1], [], []>} : vector<256x8xbf16>, vector<8x128xbf16>, vector<256x128xf32> -> vector<256x128xf32>
    %49 = arith.addf %42, %48 : vector<256x128xf32>
    %c0_56 = arith.constant 0 : index
    %c0_57 = arith.constant 0 : index
    %c2_58 = arith.constant 2 : index
    %c1_59 = arith.constant 1 : index
    %c0_60 = arith.constant 0 : index
    %50 = vector.load %arg1[%c0_56, %c0_57, %c2_58, %c1_59, %c0_60] : memref<1x1x18x18x8xbf16, #tpu.memory_space<vmem>>, vector<1x1x16x16x8xbf16>
    %51 = vector.shape_cast %50 : vector<1x1x16x16x8xbf16> to vector<16x16x8xbf16>
    %52 = vector.shape_cast %51 : vector<16x16x8xbf16> to vector<256x8xbf16>
    %c7 = arith.constant 7 : index
    %c0_61 = arith.constant 0 : index
    %c0_62 = arith.constant 0 : index
    %53 = vector.load %arg2[%c7, %c0_61, %c0_62] : memref<9x8x128xbf16, #tpu.memory_space<vmem>>, vector<1x8x128xbf16>
    %54 = vector.shape_cast %53 : vector<1x8x128xbf16> to vector<8x128xbf16>
    %cst_63 = arith.constant dense<0.000000e+00> : vector<256x128xf32>
    %55 = tpu.matmul %52, %54, %cst_63 {dimension_numbers = #tpu.dot_dimension_numbers<[1], [0], [0], [1], [0, 0, 1, 1], [], []>} : vector<256x8xbf16>, vector<8x128xbf16>, vector<256x128xf32> -> vector<256x128xf32>
    %56 = arith.addf %49, %55 : vector<256x128xf32>
    %c0_64 = arith.constant 0 : index
    %c0_65 = arith.constant 0 : index
    %c2_66 = arith.constant 2 : index
    %c2_67 = arith.constant 2 : index
    %c0_68 = arith.constant 0 : index
    %57 = vector.load %arg1[%c0_64, %c0_65, %c2_66, %c2_67, %c0_68] : memref<1x1x18x18x8xbf16, #tpu.memory_space<vmem>>, vector<1x1x16x16x8xbf16>
    %58 = vector.shape_cast %57 : vector<1x1x16x16x8xbf16> to vector<16x16x8xbf16>
    %59 = vector.shape_cast %58 : vector<16x16x8xbf16> to vector<256x8xbf16>
    %c8 = arith.constant 8 : index
    %c0_69 = arith.constant 0 : index
    %c0_70 = arith.constant 0 : index
    %60 = vector.load %arg2[%c8, %c0_69, %c0_70] : memref<9x8x128xbf16, #tpu.memory_space<vmem>>, vector<1x8x128xbf16>
    %61 = vector.shape_cast %60 : vector<1x8x128xbf16> to vector<8x128xbf16>
    %cst_71 = arith.constant dense<0.000000e+00> : vector<256x128xf32>
    %62 = tpu.matmul %59, %61, %cst_71 {dimension_numbers = #tpu.dot_dimension_numbers<[1], [0], [0], [1], [0, 0, 1, 1], [], []>} : vector<256x8xbf16>, vector<8x128xbf16>, vector<256x128xf32> -> vector<256x128xf32>
    %63 = arith.addf %56, %62 : vector<256x128xf32>
    %64 = arith.truncf %63 : vector<256x128xf32> to vector<256x128xbf16>
    %c0_72 = arith.constant 0 : index
    %c0_73 = arith.constant 0 : index
    %65 = vector.load %arg3[%c0_72, %c0_73] : memref<256x128xbf16, #tpu.memory_space<vmem>>, vector<256x128xbf16>
    tpu.vector_store %arg3[%c0_72, %c0_73], %64 {strides = array<i32>} : memref<256x128xbf16, #tpu.memory_space<vmem>>, vector<256x128xbf16>,
    %cst_74 = arith.constant dense<0.000000e+00> : vector<128xf32>
    %66 = vector.multi_reduction <add>, %63, %cst_74 [0] : vector<256x128xf32> to vector<128xf32>
    %67 = vector.shape_cast %66 : vector<128xf32> to vector<1x128xf32>
    %68 = vector.shape_cast %67 : vector<1x128xf32> to vector<1x1x128xf32>
    %c0_75 = arith.constant 0 : index
    %c0_76 = arith.constant 0 : index
    %c0_77 = arith.constant 0 : index
    %69 = vector.load %arg4[%c0_75, %c0_76, %c0_77] : memref<1x1x128xf32, #tpu.memory_space<vmem>>, vector<1x1x128xf32>
    tpu.vector_store %arg4[%c0_75, %c0_76, %c0_77], %68 {strides = array<i32>} : memref<1x1x128xf32, #tpu.memory_space<vmem>>, vector<1x1x128xf32>,
    %70 = arith.mulf %63, %63 : vector<256x128xf32>
    %cst_78 = arith.constant dense<0.000000e+00> : vector<128xf32>
    %71 = vector.multi_reduction <add>, %70, %cst_78 [0] : vector<256x128xf32> to vector<128xf32>
    %72 = vector.shape_cast %71 : vector<128xf32> to vector<1x128xf32>
    %73 = vector.shape_cast %72 : vector<1x128xf32> to vector<1x1x128xf32>
    %c0_79 = arith.constant 0 : index
    %c0_80 = arith.constant 0 : index
    %c0_81 = arith.constant 0 : index
    %74 = vector.load %arg5[%c0_79, %c0_80, %c0_81] : memref<1x1x128xf32, #tpu.memory_space<vmem>>, vector<1x1x128xf32>
    tpu.vector_store %arg5[%c0_79, %c0_80, %c0_81], %73 {strides = array<i32>} : memref<1x1x128xf32, #tpu.memory_space<vmem>>, vector<1x1x128xf32>,
    return
  }
  func.func @transform_0(%arg0: i32) -> (i32, i32, i32, i32, i32) {
    %c0_i32 = arith.constant 0 : i32
    %c0_i32_0 = arith.constant 0 : i32
    %c0_i32_1 = arith.constant 0 : i32
    %c0_i32_2 = arith.constant 0 : i32
    %c0_i32_3 = arith.constant 0 : i32
    return %arg0, %c0_i32, %c0_i32_0, %c0_i32_1, %c0_i32_2 : i32, i32, i32, i32, i32
  }
  func.func @transform_1(%arg0: i32) -> (i32, i32, i32) {
    %c0_i32 = arith.constant 0 : i32
    %c0_i32_0 = arith.constant 0 : i32
    %c0_i32_1 = arith.constant 0 : i32
    %c0_i32_2 = arith.constant 0 : i32
    return %c0_i32, %c0_i32_0, %c0_i32_1 : i32, i32, i32
  }
  func.func @transform_2(%arg0: i32) -> (i32, i32) {
    %c0_i32 = arith.constant 0 : i32
    %c0_i32_0 = arith.constant 0 : i32
    return %arg0, %c0_i32 : i32, i32
  }
  func.func @transform_3(%arg0: i32) -> (i32, i32, i32) {
    %c0_i32 = arith.constant 0 : i32
    %c0_i32_0 = arith.constant 0 : i32
    %c0_i32_1 = arith.constant 0 : i32
    return %arg0, %c0_i32, %c0_i32_0 : i32, i32, i32
  }
  func.func @transform_4(%arg0: i32) -> (i32, i32, i32) {
    %c0_i32 = arith.constant 0 : i32
    %c0_i32_0 = arith.constant 0 : i32
    %c0_i32_1 = arith.constant 0 : i32
    return %arg0, %c0_i32, %c0_i32_0 : i32, i32, i32
  }
}

module attributes {stable_mosaic.version = 11 : i64} {
  func.func @_bn_relu_kernel(%arg0: i32, %arg1: memref<256x128xbf16, #tpu.memory_space<vmem>>, %arg2: memref<1x128xf32, #tpu.memory_space<vmem>>, %arg3: memref<1x128xf32, #tpu.memory_space<vmem>>, %arg4: memref<256x8xbf16, #tpu.memory_space<vmem>>) attributes {dimension_semantics = [#tpu.dimension_semantics<parallel>], iteration_bounds = array<i64: 2>, scalar_prefetch = 0 : i64, scratch_operands = 0 : i64, tpu.core_type = #tpu.core_type<tc>, window_params = [{transform_indices = @transform_0, window_bounds = array<i64: 256, 128>}, {pipeline_mode = #tpu.pipeline_mode<synchronous>, transform_indices = @transform_1, window_bounds = array<i64: 1, 128>}, {pipeline_mode = #tpu.pipeline_mode<synchronous>, transform_indices = @transform_2, window_bounds = array<i64: 1, 128>}, {transform_indices = @transform_3, window_bounds = array<i64: 256, 8>}]} {
    %c0 = arith.constant 0 : index
    %c0_0 = arith.constant 0 : index
    %0 = vector.load %arg1[%c0, %c0_0] : memref<256x128xbf16, #tpu.memory_space<vmem>>, vector<256x128xbf16>
    %1 = arith.extf %0 : vector<256x128xbf16> to vector<256x128xf32>
    %c0_1 = arith.constant 0 : index
    %c0_2 = arith.constant 0 : index
    %2 = vector.load %arg2[%c0_1, %c0_2] : memref<1x128xf32, #tpu.memory_space<vmem>>, vector<1x128xf32>
    %3 = vector.broadcast %2 : vector<1x128xf32> to vector<256x128xf32>
    %4 = arith.mulf %1, %3 : vector<256x128xf32>
    %c0_3 = arith.constant 0 : index
    %c0_4 = arith.constant 0 : index
    %5 = vector.load %arg3[%c0_3, %c0_4] : memref<1x128xf32, #tpu.memory_space<vmem>>, vector<1x128xf32>
    %6 = vector.broadcast %5 : vector<1x128xf32> to vector<256x128xf32>
    %7 = arith.addf %4, %6 : vector<256x128xf32>
    %cst = arith.constant 0.000000e+00 : f32
    %8 = vector.broadcast %cst : f32 to vector<256x128xf32>
    %9 = arith.maximumf %7, %8 : vector<256x128xf32>
    %10 = vector.extract_strided_slice %9 {offsets = [0, 0], sizes = [256, 8], strides = [1, 1]} : vector<256x128xf32> to vector<256x8xf32>
    %11 = arith.truncf %10 : vector<256x8xf32> to vector<256x8xbf16>
    %c0_5 = arith.constant 0 : index
    %c0_6 = arith.constant 0 : index
    %12 = vector.load %arg4[%c0_5, %c0_6] : memref<256x8xbf16, #tpu.memory_space<vmem>>, vector<256x8xbf16>
    tpu.vector_store %arg4[%c0_5, %c0_6], %11 {strides = array<i32>} : memref<256x8xbf16, #tpu.memory_space<vmem>>, vector<256x8xbf16>,
    return
  }
  func.func @transform_0(%arg0: i32) -> (i32, i32) {
    %c0_i32 = arith.constant 0 : i32
    %c0_i32_0 = arith.constant 0 : i32
    return %arg0, %c0_i32 : i32, i32
  }
  func.func @transform_1(%arg0: i32) -> (i32, i32) {
    %c0_i32 = arith.constant 0 : i32
    %c0_i32_0 = arith.constant 0 : i32
    %c0_i32_1 = arith.constant 0 : i32
    return %c0_i32, %c0_i32_0 : i32, i32
  }
  func.func @transform_2(%arg0: i32) -> (i32, i32) {
    %c0_i32 = arith.constant 0 : i32
    %c0_i32_0 = arith.constant 0 : i32
    %c0_i32_1 = arith.constant 0 : i32
    return %c0_i32, %c0_i32_0 : i32, i32
  }
  func.func @transform_3(%arg0: i32) -> (i32, i32) {
    %c0_i32 = arith.constant 0 : i32
    %c0_i32_0 = arith.constant 0 : i32
    return %arg0, %c0_i32 : i32, i32
  }
}

</mosaic_0001>

<llo_original>
// kernel: residual_block_forward.7
$region0: #{residual_block_forward.7}
  #allocation0 [shape = 'u32[]', space=smem, size = 0x4, offset = 0x4, fixed_abs, tag = 'smem constant byte address 0x4 - core index']
  #allocation1 [shape = 'u32[72,128]{1,0:T(1,128)}', space=vmem, size = 0x9000, scoped, tag = 'internal scratch']
  %s0 = inlined_call_operand.vmem [shape: bf16[512,128], index: 0, kind: input, shape index: {}]
  %s1 = inlined_call_operand.vmem [shape: f32[1,128], index: 1, kind: input, shape index: {}]
  %s2 = inlined_call_operand.vmem [shape: f32[1,128], index: 2, kind: input, shape index: {}]
  %s3 = inlined_call_operand.vmem [shape: bf16[512,8], index: 3, kind: input, shape index: {}]
  %s4 = inlined_call_operand.vmem [shape: f32[512,8], index: 4, kind: output, shape index: {}]
  %s5 = sld [smem:[#allocation0]]
  $region49: #{residual_block_forward.7} parent=0
    _
  %s7 = ssub.s32 1, %s5
  %s8 = scalar_select 0, %s7, %s5
  loop: start=0, step=1, limit=4
  $region2: #{residual_block_forward.7} parent=0 // loop_pre_header
    _
  $region3: #{residual_block_forward.7} parent=0 // loop_header
    %s10 = sphi 0, %s14
    %p11 = scmp.ge.s32.totalorder %s10, 4
    %s20 = sphi 0, %s22
    %s23 = sphi 0, %s20
    %s24 = sphi 0, %s23
    %s40 = sphi 0, %s24
    %s44 = sphi 0, %s44
    %s46 = sphi 0, %s44
    %s47 = sphi 0, %s46
    %s61 = sphi 0, %s47
    %s65 = sphi 0, %s65
    %s67 = sphi 0, %s65
    %s68 = sphi 0, %s67
    %s82 = sphi 0, %s68
    %s88 = sphi 0, %s90
    %s91 = sphi 0, %s88
    %s92 = sphi 0, %s91
    %s108 = sphi 0, %s92
    %s114 = sphi 0, %s116
    %s117 = sphi 0, %s114
    %s118 = sphi 0, %s117
    %s134 = sphi 0, %s118
  $region4: #{residual_block_forward.7} parent=0 // loop_header_branch
    %13 = sbr.rel (%p11) target = $region8
  $region5: #{residual_block_forward.7} parent=0 // loop_body
    %s15 = ssub.s32 %s10, 1
    %s16 = ssub.s32 %s10, 2
    %s17 = sadd.s32 %s10, 1
    %s18 = ssub.s32 %s10, %s17
    %p19 = scmp.eq.s32.totalorder %s18, 0
    %s21 = sadd.s32 %s20, 1
    %s22 = scalar_select %p19, %s20, %s21
    %p25 = pneg %p19
    %p26 = scmp.eq.s32.totalorder %s10, 1
    %p27 = por %p25, %p26
    %p28 = scmp.ne.s32.totalorder %s20, %s23
    %p29 = scmp.eq.s32.totalorder %s10, 0
    %p30 = por %p28, %p29
    %p31 = scmp.ne.s32.totalorder %s20, %s23
    %p32 = scmp.eq.s32.totalorder %s15, 1
    %p33 = por %p31, %p32
    %p34 = scmp.ne.s32.totalorder %s23, %s24
    %p35 = scmp.eq.s32.totalorder %s15, 0
    %p36 = por %p34, %p35
    %p37 = scmp.ne.s32.totalorder %s23, %s24
    %p38 = scmp.eq.s32.totalorder %s16, 1
    %p39 = por %p37, %p38
    %p41 = scmp.ne.s32.totalorder %s24, %s40
    %p42 = scmp.eq.s32.totalorder %s16, 0
    %p43 = por %p41, %p42
    %s45 = sadd.s32 %s44, 1
    %p48 = scmp.eq.s32.totalorder %s10, 1
    %p49 = scmp.ne.s32.totalorder %s44, %s46
    %p50 = scmp.eq.s32.totalorder %s10, 0
    %p51 = por %p49, %p50
    %p52 = scmp.ne.s32.totalorder %s44, %s46
    %p53 = scmp.eq.s32.totalorder %s15, 1
    %p54 = por %p52, %p53
    %p55 = scmp.ne.s32.totalorder %s46, %s47
    %p56 = scmp.eq.s32.totalorder %s15, 0
    %p57 = por %p55, %p56
    %p58 = scmp.ne.s32.totalorder %s46, %s47
    %p59 = scmp.eq.s32.totalorder %s16, 1
    %p60 = por %p58, %p59
    %p62 = scmp.ne.s32.totalorder %s47, %s61
    %p63 = scmp.eq.s32.totalorder %s16, 0
    %p64 = por %p62, %p63
    %s66 = sadd.s32 %s65, 1
    %p69 = scmp.eq.s32.totalorder %s10, 1
    %p70 = scmp.ne.s32.totalorder %s65, %s67
    %p71 = scmp.eq.s32.totalorder %s10, 0
    %p72 = por %p70, %p71
    %p73 = scmp.ne.s32.totalorder %s65, %s67
    %p74 = scmp.eq.s32.totalorder %s15, 1
    %p75 = por %p73, %p74
    %p76 = scmp.ne.s32.totalorder %s67, %s68
    %p77 = scmp.eq.s32.totalorder %s15, 0
    %p78 = por %p76, %p77
    %p79 = scmp.ne.s32.totalorder %s67, %s68
    %p80 = scmp.eq.s32.totalorder %s16, 1
    %p81 = por %p79, %p80
    %p83 = scmp.ne.s32.totalorder %s68, %s82
    %p84 = scmp.eq.s32.totalorder %s16, 0
    %p85 = por %p83, %p84
    %s86 = ssub.s32 %s10, %s17
    %p87 = scmp.eq.s32.totalorder %s86, 0
    %s89 = sadd.s32 %s88, 1
    %s90 = scalar_select %p87, %s88, %s89
    %p93 = pneg %p87
    %p94 = scmp.eq.s32.totalorder %s10, 1
    %p95 = por %p93, %p94
    %p96 = scmp.ne.s32.totalorder %s88, %s91
    %p97 = scmp.eq.s32.totalorder %s10, 0
    %p98 = por %p96, %p97
    %p99 = scmp.ne.s32.totalorder %s88, %s91
    %p100 = scmp.eq.s32.totalorder %s15, 1
    %p101 = por %p99, %p100
    %p102 = scmp.ne.s32.totalorder %s91, %s92
    %p103 = scmp.eq.s32.totalorder %s15, 0
    %p104 = por %p102, %p103
    %p105 = scmp.ne.s32.totalorder %s91, %s92
    %p106 = scmp.eq.s32.totalorder %s16, 1
    %p107 = por %p105, %p106
    %p109 = scmp.ne.s32.totalorder %s92, %s108
    %p110 = scmp.eq.s32.totalorder %s16, 0
    %p111 = por %p109, %p110
    %s112 = ssub.s32 %s10, %s17
    %p113 = scmp.eq.s32.totalorder %s112, 0
    %s115 = sadd.s32 %s114, 1
    %s116 = scalar_select %p113, %s114, %s115
    %p119 = pneg %p113
    %p120 = scmp.eq.s32.totalorder %s10, 1
    %p121 = por %p119, %p120
    %p122 = scmp.ne.s32.totalorder %s114, %s117
    %p123 = scmp.eq.s32.totalorder %s10, 0
    %p124 = por %p122, %p123
    %p125 = scmp.ne.s32.totalorder %s114, %s117
    %p126 = scmp.eq.s32.totalorder %s15, 1
    %p127 = por %p125, %p126
    %p128 = scmp.ne.s32.totalorder %s117, %s118
    %p129 = scmp.eq.s32.totalorder %s15, 0
    %p130 = por %p128, %p129
    %p131 = scmp.ne.s32.totalorder %s117, %s118
    %p132 = scmp.eq.s32.totalorder %s16, 1
    %p133 = por %p131, %p132
    %p135 = scmp.ne.s32.totalorder %s118, %s134
    %p136 = scmp.eq.s32.totalorder %s16, 0
    %p137 = por %p135, %p136
    %p138 = scmp.le.s32.totalorder 1, %s10
    %p139 = scmp.lt.s32.totalorder %s10, 3
    %p140 = pnand %p138, %p139
    %p141 = pneg %p140
    // Predicated region
    $region9: #{residual_block_forward.7} parent=5 // pred_check
      _
    $region10: #{residual_block_forward.7} parent=5 // pred_check_branch
      %143 = sbr.rel (%p140) target = $region12
    $region11: #{residual_block_forward.7} parent=5 // pred_region
      %s144 = ssub.s32 %s10, 1
      // Predicated region
      $region13: #{residual_block_forward.7} parent=11 // pred_check
        %p145 = pneg %p57
      $region14: #{residual_block_forward.7} parent=11 // pred_check_branch
        %147 = sbr.rel (%p145) target = $region16
      $region15: #{residual_block_forward.7} parent=11 // pred_region
        _
      $region16: #{residual_block_forward.7} parent=11 // pred_fallthru
        _
      // Predicated region
      $region17: #{residual_block_forward.7} parent=11 // pred_check
        %p148 = pneg %p78
      $region18: #{residual_block_forward.7} parent=11 // pred_check_branch
        %150 = sbr.rel (%p148) target = $region20
      $region19: #{residual_block_forward.7} parent=11 // pred_region
        _
      $region20: #{residual_block_forward.7} parent=11 // pred_fallthru
        _
    $region12: #{residual_block_forward.7} parent=5 // pred_fallthru
      _
    %p151 = scmp.lt.s32.totalorder %s10, 2
    // Predicated region
    $region21: #{residual_block_forward.7} parent=5 // pred_check
      %p152 = pneg %p151
    $region22: #{residual_block_forward.7} parent=5 // pred_check_branch
      %154 = sbr.rel (%p152) target = $region24
    $region23: #{residual_block_forward.7} parent=5 // pred_region
      // Predicated region
      $region25: #{residual_block_forward.7} parent=23 // pred_check
        %p155 = pneg %p30
      $region26: #{residual_block_forward.7} parent=23 // pred_check_branch
        %157 = sbr.rel (%p155) target = $region28
      $region27: #{residual_block_forward.7} parent=23 // pred_region
        %s158 = smul.u32 32, %s10
        %p159 = scmp.lt.s32.totalorder %s158, 63
        %s160 = scalar_select %p159, %s158, 63
        %s161 = smul.addr %s160, 4
        %s162 = scalar_lea.vmem %s0, %s161
        %s163 = smul.u32 32, %s10
      $region28: #{residual_block_forward.7} parent=23 // pred_fallthru
        _
      // Predicated region
      $region29: #{residual_block_forward.7} parent=23 // pred_check
        %p164 = pneg %p98
      $region30: #{residual_block_forward.7} parent=23 // pred_check_branch
        %166 = sbr.rel (%p164) target = $region32
      $region31: #{residual_block_forward.7} parent=23 // pred_region
        %s167 = smul.u32 32, %s10
        %p168 = scmp.lt.s32.totalorder %s167, 63
        %s169 = scalar_select %p168, %s167, 63
        %s170 = smul.addr %s169, 4
        %s171 = scalar_lea.vmem %s3, %s170
        %s172 = smul.u32 32, %s10
      $region32: #{residual_block_forward.7} parent=23 // pred_fallthru
        _
    $region24: #{residual_block_forward.7} parent=5 // pred_fallthru
      _
    %p173 = scmp.le.s32.totalorder 1, %s10
    %p174 = scmp.lt.s32.totalorder %s10, 3
    %p175 = pnand %p173, %p174
    %p176 = pneg %p175
    // Predicated region
    $region33: #{residual_block_forward.7} parent=5 // pred_check
      _
    $region34: #{residual_block_forward.7} parent=5 // pred_check_branch
      %178 = sbr.rel (%p175) target = $region36
    $region35: #{residual_block_forward.7} parent=5 // pred_region
      %s179 = ssub.s32 %s10, 1
      %s180 = smul.u32 32, %s15
      %p181 = scmp.lt.s32.totalorder %s180, 63
      %s182 = scalar_select %p181, %s180, 63
      %s183 = smul.addr %s182, 4
      %s184 = scalar_lea.vmem %s0, %s183
      %p185 = pneg %p36
      %p186 = pneg %p33
      %p187 = pneg %p57
      %p188 = pneg %p54
      %p189 = pneg %p78
      %p190 = pneg %p75
      %s191 = smul.u32 32, %s15
      %p192 = scmp.lt.s32.totalorder %s191, 63
      %s193 = scalar_select %p192, %s191, 63
      %s194 = smul.addr %s193, 4
      %s195 = scalar_lea.vmem %s3, %s194
      %p196 = pneg %p104
      %p197 = pneg %p101
      %p198 = pneg %p130
      %p199 = pneg %p127
      %s200 = smul.u32 32, %s15
      %p201 = scmp.lt.s32.totalorder %s200, 63
      %s202 = scalar_select %p201, %s200, 63
      %s203 = smul.addr %s202, 8
      %s204 = scalar_lea.vmem %s4, %s203
      %s205 = smul.u32 32, %s15
      %p206 = scmp.lt.s32.totalorder %s205, 63
      %s207 = scalar_select %p206, %s205, 63
      %s208 = smul.addr %s207, 4
      %s209 = scalar_lea.vmem %s0, %s208
      %s210 = smul.u32 32, %s15
      %s211 = smul.u32 32, %s15
      %p212 = scmp.lt.s32.totalorder %s211, 63
      %s213 = scalar_select %p212, %s211, 63
      %s214 = smul.addr %s213, 4
      %s215 = scalar_lea.vmem %s3, %s214
      %s216 = smul.u32 32, %s15
      %s217 = smul.u32 32, %s15
      %p218 = scmp.lt.s32.totalorder %s217, 63
      %s219 = scalar_select %p218, %s217, 63
      %s220 = smul.addr %s219, 8
      %s221 = scalar_lea.vmem %s4, %s220
      %s222 = smul.u32 32, %s15
      %v223 = vld [vmem:[%s209] sm:$0xf]
      %v224 = vld [vmem:[%s209 + $0x4] sm:$0xf]
      %v225 = vld [vmem:[%s209 + $0x8] sm:$0xf]
      %v226 = vld [vmem:[%s209 + $0xc] sm:$0xf]
      %v227 = vld [vmem:[%s209 + $0x10] sm:$0xf]
      %v228 = vld [vmem:[%s209 + $0x14] sm:$0xf]
      %v229 = vld [vmem:[%s209 + $0x18] sm:$0xf]
      %v230 = vld [vmem:[%s209 + $0x1c] sm:$0xf]
      %v231 = vld [vmem:[%s209 + $0x20] sm:$0xf]
      %v232 = vld [vmem:[%s209 + $0x24] sm:$0xf]
      %v233 = vld [vmem:[%s209 + $0x28] sm:$0xf]
      %v234 = vld [vmem:[%s209 + $0x2c] sm:$0xf]
      %v235 = vld [vmem:[%s209 + $0x30] sm:$0xf]
      %v236 = vld [vmem:[%s209 + $0x34] sm:$0xf]
      %v237 = vld [vmem:[%s209 + $0x38] sm:$0xf]
      %v238 = vld [vmem:[%s209 + $0x3c] sm:$0xf]
      %v239 = vld [vmem:[%s209 + $0x40] sm:$0xf]
      %v240 = vld [vmem:[%s209 + $0x44] sm:$0xf]
      %v241 = vld [vmem:[%s209 + $0x48] sm:$0xf]
      %v242 = vld [vmem:[%s209 + $0x4c] sm:$0xf]
      %v243 = vld [vmem:[%s209 + $0x50] sm:$0xf]
      %v244 = vld [vmem:[%s209 + $0x54] sm:$0xf]
      %v245 = vld [vmem:[%s209 + $0x58] sm:$0xf]
      %v246 = vld [vmem:[%s209 + $0x5c] sm:$0xf]
      %v247 = vld [vmem:[%s209 + $0x60] sm:$0xf]
      %v248 = vld [vmem:[%s209 + $0x64] sm:$0xf]
      %v249 = vld [vmem:[%s209 + $0x68] sm:$0xf]
      %v250 = vld [vmem:[%s209 + $0x6c] sm:$0xf]
      %v251 = vld [vmem:[%s209 + $0x70] sm:$0xf]
      %v252 = vld [vmem:[%s209 + $0x74] sm:$0xf]
      %v253 = vld [vmem:[%s209 + $0x78] sm:$0xf]
      %v254 = vld [vmem:[%s209 + $0x7c] sm:$0xf]
      %v255 = vunpack.c.l.bf16 %v223
      %v256 = vunpack.c.l.bf16 %v224
      %v257 = vunpack.c.l.bf16 %v225
      %v258 = vunpack.c.l.bf16 %v226
      %v259 = vunpack.c.l.bf16 %v227
      %v260 = vunpack.c.l.bf16 %v228
      %v261 = vunpack.c.l.bf16 %v229
      %v262 = vunpack.c.l.bf16 %v230
      %v263 = vunpack.c.l.bf16 %v231
      %v264 = vunpack.c.l.bf16 %v232
      %v265 = vunpack.c.l.bf16 %v233
      %v266 = vunpack.c.l.bf16 %v234
      %v267 = vunpack.c.l.bf16 %v235
      %v268 = vunpack.c.l.bf16 %v236
      %v269 = vunpack.c.l.bf16 %v237
      %v270 = vunpack.c.l.bf16 %v238
      %v271 = vunpack.c.l.bf16 %v239
      %v272 = vunpack.c.l.bf16 %v240
      %v273 = vunpack.c.l.bf16 %v241
      %v274 = vunpack.c.l.bf16 %v242
      %v275 = vunpack.c.l.bf16 %v243
      %v276 = vunpack.c.l.bf16 %v244
      %v277 = vunpack.c.l.bf16 %v245
      %v278 = vunpack.c.l.bf16 %v246
      %v279 = vunpack.c.l.bf16 %v247
      %v280 = vunpack.c.l.bf16 %v248
      %v281 = vunpack.c.l.bf16 %v249
      %v282 = vunpack.c.l.bf16 %v250
      %v283 = vunpack.c.l.bf16 %v251
      %v284 = vunpack.c.l.bf16 %v252
      %v285 = vunpack.c.l.bf16 %v253
      %v286 = vunpack.c.l.bf16 %v254
      %v287 = vld [vmem:[%s1] sm:$0x1]
      %v289 = vperm.slane %v287, 0
      %v291 = vmul.f32 %v255, %v289
      %v292 = vmul.f32 %v256, %v289
      %v293 = vmul.f32 %v257, %v289
      %v294 = vmul.f32 %v258, %v289
      %v295 = vmul.f32 %v259, %v289
      %v296 = vmul.f32 %v260, %v289
      %v297 = vmul.f32 %v261, %v289
      %v298 = vmul.f32 %v262, %v289
      %v299 = vmul.f32 %v263, %v289
      %v300 = vmul.f32 %v264, %v289
      %v301 = vmul.f32 %v265, %v289
      %v302 = vmul.f32 %v266, %v289
      %v303 = vmul.f32 %v267, %v289
      %v304 = vmul.f32 %v268, %v289
      %v305 = vmul.f32 %v269, %v289
      %v306 = vmul.f32 %v270, %v289
      %v307 = vmul.f32 %v271, %v289
      %v308 = vmul.f32 %v272, %v289
      %v309 = vmul.f32 %v273, %v289
      %v310 = vmul.f32 %v274, %v289
      %v311 = vmul.f32 %v275, %v289
      %v312 = vmul.f32 %v276, %v289
      %v313 = vmul.f32 %v277, %v289
      %v314 = vmul.f32 %v278, %v289
      %v315 = vmul.f32 %v279, %v289
      %v316 = vmul.f32 %v280, %v289
      %v317 = vmul.f32 %v281, %v289
      %v318 = vmul.f32 %v282, %v289
      %v319 = vmul.f32 %v283, %v289
      %v320 = vmul.f32 %v284, %v289
      %v321 = vmul.f32 %v285, %v289
      %v322 = vmul.f32 %v286, %v289
      %v323 = vld [vmem:[%s2] sm:$0x1]
      %v325 = vperm.slane %v323, 0
      %v327 = vadd.f32 %v291, %v325
      %v328 = vadd.f32 %v292, %v325
      %v329 = vadd.f32 %v293, %v325
      %v330 = vadd.f32 %v294, %v325
      %v331 = vadd.f32 %v295, %v325
      %v332 = vadd.f32 %v296, %v325
      %v333 = vadd.f32 %v297, %v325
      %v334 = vadd.f32 %v298, %v325
      %v335 = vadd.f32 %v299, %v325
      %v336 = vadd.f32 %v300, %v325
      %v337 = vadd.f32 %v301, %v325
      %v338 = vadd.f32 %v302, %v325
      %v339 = vadd.f32 %v303, %v325
      %v340 = vadd.f32 %v304, %v325
      %v341 = vadd.f32 %v305, %v325
      %v342 = vadd.f32 %v306, %v325
      %v343 = vadd.f32 %v307, %v325
      %v344 = vadd.f32 %v308, %v325
      %v345 = vadd.f32 %v309, %v325
      %v346 = vadd.f32 %v310, %v325
      %v347 = vadd.f32 %v311, %v325
      %v348 = vadd.f32 %v312, %v325
      %v349 = vadd.f32 %v313, %v325
      %v350 = vadd.f32 %v314, %v325
      %v351 = vadd.f32 %v315, %v325
      %v352 = vadd.f32 %v316, %v325
      %v353 = vadd.f32 %v317, %v325
      %v354 = vadd.f32 %v318, %v325
      %v355 = vadd.f32 %v319, %v325
      %v356 = vadd.f32 %v320, %v325
      %v357 = vadd.f32 %v321, %v325
      %v358 = vadd.f32 %v322, %v325
      %v359 = vmax.f32 %v327, 0.0
      %v360 = vmax.f32 %v328, 0.0
      %v361 = vmax.f32 %v329, 0.0
      %v362 = vmax.f32 %v330, 0.0
      %v363 = vmax.f32 %v331, 0.0
      %v364 = vmax.f32 %v332, 0.0
      %v365 = vmax.f32 %v333, 0.0
      %v366 = vmax.f32 %v334, 0.0
      %v367 = vmax.f32 %v335, 0.0
      %v368 = vmax.f32 %v336, 0.0
      %v369 = vmax.f32 %v337, 0.0
      %v370 = vmax.f32 %v338, 0.0
      %v371 = vmax.f32 %v339, 0.0
      %v372 = vmax.f32 %v340, 0.0
      %v373 = vmax.f32 %v341, 0.0
      %v374 = vmax.f32 %v342, 0.0
      %v375 = vmax.f32 %v343, 0.0
      %v376 = vmax.f32 %v344, 0.0
      %v377 = vmax.f32 %v345, 0.0
      %v378 = vmax.f32 %v346, 0.0
      %v379 = vmax.f32 %v347, 0.0
      %v380 = vmax.f32 %v348, 0.0
      %v381 = vmax.f32 %v349, 0.0
      %v382 = vmax.f32 %v350, 0.0
      %v383 = vmax.f32 %v351, 0.0
      %v384 = vmax.f32 %v352, 0.0
      %v385 = vmax.f32 %v353, 0.0
      %v386 = vmax.f32 %v354, 0.0
      %v387 = vmax.f32 %v355, 0.0
      %v388 = vmax.f32 %v356, 0.0
      %v389 = vmax.f32 %v357, 0.0
      %v390 = vmax.f32 %v358, 0.0
      %v391 = vld [vmem:[%s215] sm:$0xf]
      %v392 = vld [vmem:[%s215 + $0x4] sm:$0xf]
      %v393 = vld [vmem:[%s215 + $0x8] sm:$0xf]
      %v394 = vld [vmem:[%s215 + $0xc] sm:$0xf]
      %v395 = vld [vmem:[%s215 + $0x10] sm:$0xf]
      %v396 = vld [vmem:[%s215 + $0x14] sm:$0xf]
      %v397 = vld [vmem:[%s215 + $0x18] sm:$0xf]
      %v398 = vld [vmem:[%s215 + $0x1c] sm:$0xf]
      %v399 = vld [vmem:[%s215 + $0x20] sm:$0xf]
      %v400 = vld [vmem:[%s215 + $0x24] sm:$0xf]
      %v401 = vld [vmem:[%s215 + $0x28] sm:$0xf]
      %v402 = vld [vmem:[%s215 + $0x2c] sm:$0xf]
      %v403 = vld [vmem:[%s215 + $0x30] sm:$0xf]
      %v404 = vld [vmem:[%s215 + $0x34] sm:$0xf]
      %v405 = vld [vmem:[%s215 + $0x38] sm:$0xf]
      %v406 = vld [vmem:[%s215 + $0x3c] sm:$0xf]
      %v407 = vld [vmem:[%s215 + $0x40] sm:$0xf]
      %v408 = vld [vmem:[%s215 + $0x44] sm:$0xf]
      %v409 = vld [vmem:[%s215 + $0x48] sm:$0xf]
      %v410 = vld [vmem:[%s215 + $0x4c] sm:$0xf]
      %v411 = vld [vmem:[%s215 + $0x50] sm:$0xf]
      %v412 = vld [vmem:[%s215 + $0x54] sm:$0xf]
      %v413 = vld [vmem:[%s215 + $0x58] sm:$0xf]
      %v414 = vld [vmem:[%s215 + $0x5c] sm:$0xf]
      %v415 = vld [vmem:[%s215 + $0x60] sm:$0xf]
      %v416 = vld [vmem:[%s215 + $0x64] sm:$0xf]
      %v417 = vld [vmem:[%s215 + $0x68] sm:$0xf]
      %v418 = vld [vmem:[%s215 + $0x6c] sm:$0xf]
      %v419 = vld [vmem:[%s215 + $0x70] sm:$0xf]
      %v420 = vld [vmem:[%s215 + $0x74] sm:$0xf]
      %v421 = vld [vmem:[%s215 + $0x78] sm:$0xf]
      %v422 = vld [vmem:[%s215 + $0x7c] sm:$0xf]
      %v423 = vunpack.c.l.bf16 %v391
      %v424 = vunpack.c.l.bf16 %v392
      %v425 = vunpack.c.l.bf16 %v393
      %v426 = vunpack.c.l.bf16 %v394
      %v427 = vunpack.c.l.bf16 %v395
      %v428 = vunpack.c.l.bf16 %v396
      %v429 = vunpack.c.l.bf16 %v397
      %v430 = vunpack.c.l.bf16 %v398
      %v431 = vunpack.c.l.bf16 %v399
      %v432 = vunpack.c.l.bf16 %v400
      %v433 = vunpack.c.l.bf16 %v401
      %v434 = vunpack.c.l.bf16 %v402
      %v435 = vunpack.c.l.bf16 %v403
      %v436 = vunpack.c.l.bf16 %v404
      %v437 = vunpack.c.l.bf16 %v405
      %v438 = vunpack.c.l.bf16 %v406
      %v439 = vunpack.c.l.bf16 %v407
      %v440 = vunpack.c.l.bf16 %v408
      %v441 = vunpack.c.l.bf16 %v409
      %v442 = vunpack.c.l.bf16 %v410
      %v443 = vunpack.c.l.bf16 %v411
      %v444 = vunpack.c.l.bf16 %v412
      %v445 = vunpack.c.l.bf16 %v413
      %v446 = vunpack.c.l.bf16 %v414
      %v447 = vunpack.c.l.bf16 %v415
      %v448 = vunpack.c.l.bf16 %v416
      %v449 = vunpack.c.l.bf16 %v417
      %v450 = vunpack.c.l.bf16 %v418
      %v451 = vunpack.c.l.bf16 %v419
      %v452 = vunpack.c.l.bf16 %v420
      %v453 = vunpack.c.l.bf16 %v421
      %v454 = vunpack.c.l.bf16 %v422
      %v455 = vadd.f32 %v359, %v423
      %v456 = vadd.f32 %v360, %v424
      %v457 = vadd.f32 %v361, %v425
      %v458 = vadd.f32 %v362, %v426
      %v459 = vadd.f32 %v363, %v427
      %v460 = vadd.f32 %v364, %v428
      %v461 = vadd.f32 %v365, %v429
      %v462 = vadd.f32 %v366, %v430
      %v463 = vadd.f32 %v367, %v431
      %v464 = vadd.f32 %v368, %v432
      %v465 = vadd.f32 %v369, %v433
      %v466 = vadd.f32 %v370, %v434
      %v467 = vadd.f32 %v371, %v435
      %v468 = vadd.f32 %v372, %v436
      %v469 = vadd.f32 %v373, %v437
      %v470 = vadd.f32 %v374, %v438
      %v471 = vadd.f32 %v375, %v439
      %v472 = vadd.f32 %v376, %v440
      %v473 = vadd.f32 %v377, %v441
      %v474 = vadd.f32 %v378, %v442
      %v475 = vadd.f32 %v379, %v443
      %v476 = vadd.f32 %v380, %v444
      %v477 = vadd.f32 %v381, %v445
      %v478 = vadd.f32 %v382, %v446
      %v479 = vadd.f32 %v383, %v447
      %v480 = vadd.f32 %v384, %v448
      %v481 = vadd.f32 %v385, %v449
      %v482 = vadd.f32 %v386, %v450
      %v483 = vadd.f32 %v387, %v451
      %v484 = vadd.f32 %v388, %v452
      %v485 = vadd.f32 %v389, %v453
      %v486 = vadd.f32 %v390, %v454
      %v487 = vmax.f32 %v455, 0.0
      %v488 = vmax.f32 %v456, 0.0
      %v489 = vmax.f32 %v457, 0.0
      %v490 = vmax.f32 %v458, 0.0
      %v491 = vmax.f32 %v459, 0.0
      %v492 = vmax.f32 %v460, 0.0
      %v493 = vmax.f32 %v461, 0.0
      %v494 = vmax.f32 %v462, 0.0
      %v495 = vmax.f32 %v463, 0.0
      %v496 = vmax.f32 %v464, 0.0
      %v497 = vmax.f32 %v465, 0.0
      %v498 = vmax.f32 %v466, 0.0
      %v499 = vmax.f32 %v467, 0.0
      %v500 = vmax.f32 %v468, 0.0
      %v501 = vmax.f32 %v469, 0.0
      %v502 = vmax.f32 %v470, 0.0
      %v503 = vmax.f32 %v471, 0.0
      %v504 = vmax.f32 %v472, 0.0
      %v505 = vmax.f32 %v473, 0.0
      %v506 = vmax.f32 %v474, 0.0
      %v507 = vmax.f32 %v475, 0.0
      %v508 = vmax.f32 %v476, 0.0
      %v509 = vmax.f32 %v477, 0.0
      %v510 = vmax.f32 %v478, 0.0
      %v511 = vmax.f32 %v479, 0.0
      %v512 = vmax.f32 %v480, 0.0
      %v513 = vmax.f32 %v481, 0.0
      %v514 = vmax.f32 %v482, 0.0
      %v515 = vmax.f32 %v483, 0.0
      %v516 = vmax.f32 %v484, 0.0
      %v517 = vmax.f32 %v485, 0.0
      %v518 = vmax.f32 %v486, 0.0
      %vm519 = vcmask 64512
      %520 = vst.msk [vmem:[%s221] sm:$0xff] %vm519, %v487
      %521 = vst.msk [vmem:[%s221 + $0x8] sm:$0xff] %vm519, %v488
      %522 = vst.msk [vmem:[%s221 + $0x10] sm:$0xff] %vm519, %v489
      %523 = vst.msk [vmem:[%s221 + $0x18] sm:$0xff] %vm519, %v490
      %524 = vst.msk [vmem:[%s221 + $0x20] sm:$0xff] %vm519, %v491
      %525 = vst.msk [vmem:[%s221 + $0x28] sm:$0xff] %vm519, %v492
      %526 = vst.msk [vmem:[%s221 + $0x30] sm:$0xff] %vm519, %v493
      %527 = vst.msk [vmem:[%s221 + $0x38] sm:$0xff] %vm519, %v494
      %528 = vst.msk [vmem:[%s221 + $0x40] sm:$0xff] %vm519, %v495
      %529 = vst.msk [vmem:[%s221 + $0x48] sm:$0xff] %vm519, %v496
      %530 = vst.msk [vmem:[%s221 + $0x50] sm:$0xff] %vm519, %v497
      %531 = vst.msk [vmem:[%s221 + $0x58] sm:$0xff] %vm519, %v498
      %532 = vst.msk [vmem:[%s221 + $0x60] sm:$0xff] %vm519, %v499
      %533 = vst.msk [vmem:[%s221 + $0x68] sm:$0xff] %vm519, %v500
      %534 = vst.msk [vmem:[%s221 + $0x70] sm:$0xff] %vm519, %v501
      %535 = vst.msk [vmem:[%s221 + $0x78] sm:$0xff] %vm519, %v502
      %536 = vst.msk [vmem:[%s221 + $0x80] sm:$0xff] %vm519, %v503
      %537 = vst.msk [vmem:[%s221 + $0x88] sm:$0xff] %vm519, %v504
      %538 = vst.msk [vmem:[%s221 + $0x90] sm:$0xff] %vm519, %v505
      %539 = vst.msk [vmem:[%s221 + $0x98] sm:$0xff] %vm519, %v506
      %540 = vst.msk [vmem:[%s221 + $0xa0] sm:$0xff] %vm519, %v507
      %541 = vst.msk [vmem:[%s221 + $0xa8] sm:$0xff] %vm519, %v508
      %542 = vst.msk [vmem:[%s221 + $0xb0] sm:$0xff] %vm519, %v509
      %543 = vst.msk [vmem:[%s221 + $0xb8] sm:$0xff] %vm519, %v510
      %544 = vst.msk [vmem:[%s221 + $0xc0] sm:$0xff] %vm519, %v511
      %545 = vst.msk [vmem:[%s221 + $0xc8] sm:$0xff] %vm519, %v512
      %546 = vst.msk [vmem:[%s221 + $0xd0] sm:$0xff] %vm519, %v513
      %547 = vst.msk [vmem:[%s221 + $0xd8] sm:$0xff] %vm519, %v514
      %548 = vst.msk [vmem:[%s221 + $0xe0] sm:$0xff] %vm519, %v515
      %549 = vst.msk [vmem:[%s221 + $0xe8] sm:$0xff] %vm519, %v516
      %550 = vst.msk [vmem:[%s221 + $0xf0] sm:$0xff] %vm519, %v517
      %551 = vst.msk [vmem:[%s221 + $0xf8] sm:$0xff] %vm519, %v518
      %s552 = smul.u32 32, %s15
      %p553 = scmp.lt.s32.totalorder %s552, 63
      %s554 = scalar_select %p553, %s552, 63
      %s555 = smul.addr %s554, 8
      %s556 = scalar_lea.vmem %s4, %s555
      // Predicated region
      $region37: #{residual_block_forward.7} parent=35 // pred_check
        %p557 = pneg %p127
      $region38: #{residual_block_forward.7} parent=35 // pred_check_branch
        %559 = sbr.rel (%p557) target = $region40
      $region39: #{residual_block_forward.7} parent=35 // pred_region
        %s560 = smul.u32 32, %s15
      $region40: #{residual_block_forward.7} parent=35 // pred_fallthru
        _
    $region36: #{residual_block_forward.7} parent=5 // pred_fallthru
      _
    %p561 = scmp.le.s32.totalorder 2, %s10
    // Predicated region
    $region41: #{residual_block_forward.7} parent=5 // pred_check
      %p562 = pneg %p561
    $region42: #{residual_block_forward.7} parent=5 // pred_check_branch
      %564 = sbr.rel (%p562) target = $region44
    $region43: #{residual_block_forward.7} parent=5 // pred_region
      %s565 = ssub.s32 %s10, 2
      // Predicated region
      $region45: #{residual_block_forward.7} parent=43 // pred_check
        %p566 = pneg %p133
      $region46: #{residual_block_forward.7} parent=43 // pred_check_branch
        %568 = sbr.rel (%p566) target = $region48
      $region47: #{residual_block_forward.7} parent=43 // pred_region
        %s569 = smul.u32 32, %s16
        %p570 = scmp.lt.s32.totalorder %s569, 63
        %s571 = scalar_select %p570, %s569, 63
        %s572 = smul.addr %s571, 8
        %s573 = scalar_lea.vmem %s4, %s572
      $region48: #{residual_block_forward.7} parent=43 // pred_fallthru
        _
    $region44: #{residual_block_forward.7} parent=5 // pred_fallthru
      _
  $region6: #{residual_block_forward.7} parent=0 // loop_footer
    %s14 = sadd.s32 1, %s10
  $region7: #{residual_block_forward.7} parent=0 // loop_footer_branch
    %9 = sbr.rel target = $region3
  $region8: #{residual_block_forward.7} parent=0 // loop_exit
    _

// kernel: residual_block_forward.5
$region0: #{residual_block_forward.5}
  #allocation0 [shape = 'u32[]', space=smem, size = 0x4, offset = 0x4, fixed_abs, tag = 'smem constant byte address 0x4 - core index']
  #allocation1 [shape = 'u32[72,128]{1,0:T(1,128)}', space=vmem, size = 0x9000, scoped, tag = 'internal scratch']
  %s0 = inlined_call_operand.vmem [shape: bf16[512,128], index: 0, kind: input, shape index: {}]
  %s1 = inlined_call_operand.vmem [shape: f32[1,128], index: 1, kind: input, shape index: {}]
  %s2 = inlined_call_operand.vmem [shape: f32[1,128], index: 2, kind: input, shape index: {}]
  %s3 = inlined_call_operand.vmem [shape: bf16[512,8], index: 3, kind: output, shape index: {}]
  %s4 = sld [smem:[#allocation0]]
  $region45: #{residual_block_forward.5} parent=0
    _
  %s6 = ssub.s32 1, %s4
  %s7 = scalar_select 0, %s6, %s4
  loop: start=0, step=1, limit=4
  $region2: #{residual_block_forward.5} parent=0 // loop_pre_header
    _
  $region3: #{residual_block_forward.5} parent=0 // loop_header
    %s9 = sphi 0, %s13
    %p10 = scmp.ge.s32.totalorder %s9, 4
    %s19 = sphi 0, %s21
    %s22 = sphi 0, %s19
    %s23 = sphi 0, %s22
    %s39 = sphi 0, %s23
    %s43 = sphi 0, %s43
    %s45 = sphi 0, %s43
    %s46 = sphi 0, %s45
    %s60 = sphi 0, %s46
    %s64 = sphi 0, %s64
    %s66 = sphi 0, %s64
    %s67 = sphi 0, %s66
    %s81 = sphi 0, %s67
    %s87 = sphi 0, %s89
    %s90 = sphi 0, %s87
    %s91 = sphi 0, %s90
    %s107 = sphi 0, %s91
  $region4: #{residual_block_forward.5} parent=0 // loop_header_branch
    %12 = sbr.rel (%p10) target = $region8
  $region5: #{residual_block_forward.5} parent=0 // loop_body
    %s14 = ssub.s32 %s9, 1
    %s15 = ssub.s32 %s9, 2
    %s16 = sadd.s32 %s9, 1
    %s17 = ssub.s32 %s9, %s16
    %p18 = scmp.eq.s32.totalorder %s17, 0
    %s20 = sadd.s32 %s19, 1
    %s21 = scalar_select %p18, %s19, %s20
    %p24 = pneg %p18
    %p25 = scmp.eq.s32.totalorder %s9, 1
    %p26 = por %p24, %p25
    %p27 = scmp.ne.s32.totalorder %s19, %s22
    %p28 = scmp.eq.s32.totalorder %s9, 0
    %p29 = por %p27, %p28
    %p30 = scmp.ne.s32.totalorder %s19, %s22
    %p31 = scmp.eq.s32.totalorder %s14, 1
    %p32 = por %p30, %p31
    %p33 = scmp.ne.s32.totalorder %s22, %s23
    %p34 = scmp.eq.s32.totalorder %s14, 0
    %p35 = por %p33, %p34
    %p36 = scmp.ne.s32.totalorder %s22, %s23
    %p37 = scmp.eq.s32.totalorder %s15, 1
    %p38 = por %p36, %p37
    %p40 = scmp.ne.s32.totalorder %s23, %s39
    %p41 = scmp.eq.s32.totalorder %s15, 0
    %p42 = por %p40, %p41
    %s44 = sadd.s32 %s43, 1
    %p47 = scmp.eq.s32.totalorder %s9, 1
    %p48 = scmp.ne.s32.totalorder %s43, %s45
    %p49 = scmp.eq.s32.totalorder %s9, 0
    %p50 = por %p48, %p49
    %p51 = scmp.ne.s32.totalorder %s43, %s45
    %p52 = scmp.eq.s32.totalorder %s14, 1
    %p53 = por %p51, %p52
    %p54 = scmp.ne.s32.totalorder %s45, %s46
    %p55 = scmp.eq.s32.totalorder %s14, 0
    %p56 = por %p54, %p55
    %p57 = scmp.ne.s32.totalorder %s45, %s46
    %p58 = scmp.eq.s32.totalorder %s15, 1
    %p59 = por %p57, %p58
    %p61 = scmp.ne.s32.totalorder %s46, %s60
    %p62 = scmp.eq.s32.totalorder %s15, 0
    %p63 = por %p61, %p62
    %s65 = sadd.s32 %s64, 1
    %p68 = scmp.eq.s32.totalorder %s9, 1
    %p69 = scmp.ne.s32.totalorder %s64, %s66
    %p70 = scmp.eq.s32.totalorder %s9, 0
    %p71 = por %p69, %p70
    %p72 = scmp.ne.s32.totalorder %s64, %s66
    %p73 = scmp.eq.s32.totalorder %s14, 1
    %p74 = por %p72, %p73
    %p75 = scmp.ne.s32.totalorder %s66, %s67
    %p76 = scmp.eq.s32.totalorder %s14, 0
    %p77 = por %p75, %p76
    %p78 = scmp.ne.s32.totalorder %s66, %s67
    %p79 = scmp.eq.s32.totalorder %s15, 1
    %p80 = por %p78, %p79
    %p82 = scmp.ne.s32.totalorder %s67, %s81
    %p83 = scmp.eq.s32.totalorder %s15, 0
    %p84 = por %p82, %p83
    %s85 = ssub.s32 %s9, %s16
    %p86 = scmp.eq.s32.totalorder %s85, 0
    %s88 = sadd.s32 %s87, 1
    %s89 = scalar_select %p86, %s87, %s88
    %p92 = pneg %p86
    %p93 = scmp.eq.s32.totalorder %s9, 1
    %p94 = por %p92, %p93
    %p95 = scmp.ne.s32.totalorder %s87, %s90
    %p96 = scmp.eq.s32.totalorder %s9, 0
    %p97 = por %p95, %p96
    %p98 = scmp.ne.s32.totalorder %s87, %s90
    %p99 = scmp.eq.s32.totalorder %s14, 1
    %p100 = por %p98, %p99
    %p101 = scmp.ne.s32.totalorder %s90, %s91
    %p102 = scmp.eq.s32.totalorder %s14, 0
    %p103 = por %p101, %p102
    %p104 = scmp.ne.s32.totalorder %s90, %s91
    %p105 = scmp.eq.s32.totalorder %s15, 1
    %p106 = por %p104, %p105
    %p108 = scmp.ne.s32.totalorder %s91, %s107
    %p109 = scmp.eq.s32.totalorder %s15, 0
    %p110 = por %p108, %p109
    %p111 = scmp.le.s32.totalorder 1, %s9
    %p112 = scmp.lt.s32.totalorder %s9, 3
    %p113 = pnand %p111, %p112
    %p114 = pneg %p113
    // Predicated region
    $region9: #{residual_block_forward.5} parent=5 // pred_check
      _
    $region10: #{residual_block_forward.5} parent=5 // pred_check_branch
      %116 = sbr.rel (%p113) target = $region12
    $region11: #{residual_block_forward.5} parent=5 // pred_region
      %s117 = ssub.s32 %s9, 1
      // Predicated region
      $region13: #{residual_block_forward.5} parent=11 // pred_check
        %p118 = pneg %p56
      $region14: #{residual_block_forward.5} parent=11 // pred_check_branch
        %120 = sbr.rel (%p118) target = $region16
      $region15: #{residual_block_forward.5} parent=11 // pred_region
        _
      $region16: #{residual_block_forward.5} parent=11 // pred_fallthru
        _
      // Predicated region
      $region17: #{residual_block_forward.5} parent=11 // pred_check
        %p121 = pneg %p77
      $region18: #{residual_block_forward.5} parent=11 // pred_check_branch
        %123 = sbr.rel (%p121) target = $region20
      $region19: #{residual_block_forward.5} parent=11 // pred_region
        _
      $region20: #{residual_block_forward.5} parent=11 // pred_fallthru
        _
    $region12: #{residual_block_forward.5} parent=5 // pred_fallthru
      _
    %p124 = scmp.lt.s32.totalorder %s9, 2
    // Predicated region
    $region21: #{residual_block_forward.5} parent=5 // pred_check
      %p125 = pneg %p124
    $region22: #{residual_block_forward.5} parent=5 // pred_check_branch
      %127 = sbr.rel (%p125) target = $region24
    $region23: #{residual_block_forward.5} parent=5 // pred_region
      // Predicated region
      $region25: #{residual_block_forward.5} parent=23 // pred_check
        %p128 = pneg %p29
      $region26: #{residual_block_forward.5} parent=23 // pred_check_branch
        %130 = sbr.rel (%p128) target = $region28
      $region27: #{residual_block_forward.5} parent=23 // pred_region
        %s131 = smul.u32 32, %s9
        %p132 = scmp.lt.s32.totalorder %s131, 63
        %s133 = scalar_select %p132, %s131, 63
        %s134 = smul.addr %s133, 4
        %s135 = scalar_lea.vmem %s0, %s134
        %s136 = smul.u32 32, %s9
      $region28: #{residual_block_forward.5} parent=23 // pred_fallthru
        _
    $region24: #{residual_block_forward.5} parent=5 // pred_fallthru
      _
    %p137 = scmp.le.s32.totalorder 1, %s9
    %p138 = scmp.lt.s32.totalorder %s9, 3
    %p139 = pnand %p137, %p138
    %p140 = pneg %p139
    // Predicated region
    $region29: #{residual_block_forward.5} parent=5 // pred_check
      _
    $region30: #{residual_block_forward.5} parent=5 // pred_check_branch
      %142 = sbr.rel (%p139) target = $region32
    $region31: #{residual_block_forward.5} parent=5 // pred_region
      %s143 = ssub.s32 %s9, 1
      %s144 = smul.u32 32, %s14
      %p145 = scmp.lt.s32.totalorder %s144, 63
      %s146 = scalar_select %p145, %s144, 63
      %s147 = smul.addr %s146, 4
      %s148 = scalar_lea.vmem %s0, %s147
      %p149 = pneg %p35
      %p150 = pneg %p32
      %p151 = pneg %p56
      %p152 = pneg %p53
      %p153 = pneg %p77
      %p154 = pneg %p74
      %p155 = pneg %p103
      %p156 = pneg %p100
      %s157 = smul.u32 32, %s14
      %p158 = scmp.lt.s32.totalorder %s157, 63
      %s159 = scalar_select %p158, %s157, 63
      %s160 = smul.addr %s159, 4
      %s161 = scalar_lea.vmem %s3, %s160
      %s162 = smul.u32 32, %s14
      %p163 = scmp.lt.s32.totalorder %s162, 63
      %s164 = scalar_select %p163, %s162, 63
      %s165 = smul.addr %s164, 4
      %s166 = scalar_lea.vmem %s0, %s165
      %s167 = smul.u32 32, %s14
      %s168 = smul.u32 32, %s14
      %p169 = scmp.lt.s32.totalorder %s168, 63
      %s170 = scalar_select %p169, %s168, 63
      %s171 = smul.addr %s170, 4
      %s172 = scalar_lea.vmem %s3, %s171
      %s173 = smul.u32 32, %s14
      %v174 = vld [vmem:[%s166] sm:$0xf]
      %v175 = vld [vmem:[%s166 + $0x4] sm:$0xf]
      %v176 = vld [vmem:[%s166 + $0x8] sm:$0xf]
      %v177 = vld [vmem:[%s166 + $0xc] sm:$0xf]
      %v178 = vld [vmem:[%s166 + $0x10] sm:$0xf]
      %v179 = vld [vmem:[%s166 + $0x14] sm:$0xf]
      %v180 = vld [vmem:[%s166 + $0x18] sm:$0xf]
      %v181 = vld [vmem:[%s166 + $0x1c] sm:$0xf]
      %v182 = vld [vmem:[%s166 + $0x20] sm:$0xf]
      %v183 = vld [vmem:[%s166 + $0x24] sm:$0xf]
      %v184 = vld [vmem:[%s166 + $0x28] sm:$0xf]
      %v185 = vld [vmem:[%s166 + $0x2c] sm:$0xf]
      %v186 = vld [vmem:[%s166 + $0x30] sm:$0xf]
      %v187 = vld [vmem:[%s166 + $0x34] sm:$0xf]
      %v188 = vld [vmem:[%s166 + $0x38] sm:$0xf]
      %v189 = vld [vmem:[%s166 + $0x3c] sm:$0xf]
      %v190 = vld [vmem:[%s166 + $0x40] sm:$0xf]
      %v191 = vld [vmem:[%s166 + $0x44] sm:$0xf]
      %v192 = vld [vmem:[%s166 + $0x48] sm:$0xf]
      %v193 = vld [vmem:[%s166 + $0x4c] sm:$0xf]
      %v194 = vld [vmem:[%s166 + $0x50] sm:$0xf]
      %v195 = vld [vmem:[%s166 + $0x54] sm:$0xf]
      %v196 = vld [vmem:[%s166 + $0x58] sm:$0xf]
      %v197 = vld [vmem:[%s166 + $0x5c] sm:$0xf]
      %v198 = vld [vmem:[%s166 + $0x60] sm:$0xf]
      %v199 = vld [vmem:[%s166 + $0x64] sm:$0xf]
      %v200 = vld [vmem:[%s166 + $0x68] sm:$0xf]
      %v201 = vld [vmem:[%s166 + $0x6c] sm:$0xf]
      %v202 = vld [vmem:[%s166 + $0x70] sm:$0xf]
      %v203 = vld [vmem:[%s166 + $0x74] sm:$0xf]
      %v204 = vld [vmem:[%s166 + $0x78] sm:$0xf]
      %v205 = vld [vmem:[%s166 + $0x7c] sm:$0xf]
      %v206 = vunpack.c.l.bf16 %v174
      %v207 = vunpack.c.l.bf16 %v175
      %v208 = vunpack.c.l.bf16 %v176
      %v209 = vunpack.c.l.bf16 %v177
      %v210 = vunpack.c.l.bf16 %v178
      %v211 = vunpack.c.l.bf16 %v179
      %v212 = vunpack.c.l.bf16 %v180
      %v213 = vunpack.c.l.bf16 %v181
      %v214 = vunpack.c.l.bf16 %v182
      %v215 = vunpack.c.l.bf16 %v183
      %v216 = vunpack.c.l.bf16 %v184
      %v217 = vunpack.c.l.bf16 %v185
      %v218 = vunpack.c.l.bf16 %v186
      %v219 = vunpack.c.l.bf16 %v187
      %v220 = vunpack.c.l.bf16 %v188
      %v221 = vunpack.c.l.bf16 %v189
      %v222 = vunpack.c.l.bf16 %v190
      %v223 = vunpack.c.l.bf16 %v191
      %v224 = vunpack.c.l.bf16 %v192
      %v225 = vunpack.c.l.bf16 %v193
      %v226 = vunpack.c.l.bf16 %v194
      %v227 = vunpack.c.l.bf16 %v195
      %v228 = vunpack.c.l.bf16 %v196
      %v229 = vunpack.c.l.bf16 %v197
      %v230 = vunpack.c.l.bf16 %v198
      %v231 = vunpack.c.l.bf16 %v199
      %v232 = vunpack.c.l.bf16 %v200
      %v233 = vunpack.c.l.bf16 %v201
      %v234 = vunpack.c.l.bf16 %v202
      %v235 = vunpack.c.l.bf16 %v203
      %v236 = vunpack.c.l.bf16 %v204
      %v237 = vunpack.c.l.bf16 %v205
      %v238 = vld [vmem:[%s1] sm:$0x1]
      %v240 = vperm.slane %v238, 0
      %v242 = vmul.f32 %v206, %v240
      %v243 = vmul.f32 %v207, %v240
      %v244 = vmul.f32 %v208, %v240
      %v245 = vmul.f32 %v209, %v240
      %v246 = vmul.f32 %v210, %v240
      %v247 = vmul.f32 %v211, %v240
      %v248 = vmul.f32 %v212, %v240
      %v249 = vmul.f32 %v213, %v240
      %v250 = vmul.f32 %v214, %v240
      %v251 = vmul.f32 %v215, %v240
      %v252 = vmul.f32 %v216, %v240
      %v253 = vmul.f32 %v217, %v240
      %v254 = vmul.f32 %v218, %v240
      %v255 = vmul.f32 %v219, %v240
      %v256 = vmul.f32 %v220, %v240
      %v257 = vmul.f32 %v221, %v240
      %v258 = vmul.f32 %v222, %v240
      %v259 = vmul.f32 %v223, %v240
      %v260 = vmul.f32 %v224, %v240
      %v261 = vmul.f32 %v225, %v240
      %v262 = vmul.f32 %v226, %v240
      %v263 = vmul.f32 %v227, %v240
      %v264 = vmul.f32 %v228, %v240
      %v265 = vmul.f32 %v229, %v240
      %v266 = vmul.f32 %v230, %v240
      %v267 = vmul.f32 %v231, %v240
      %v268 = vmul.f32 %v232, %v240
      %v269 = vmul.f32 %v233, %v240
      %v270 = vmul.f32 %v234, %v240
      %v271 = vmul.f32 %v235, %v240
      %v272 = vmul.f32 %v236, %v240
      %v273 = vmul.f32 %v237, %v240
      %v274 = vld [vmem:[%s2] sm:$0x1]
      %v276 = vperm.slane %v274, 0
      %v278 = vadd.f32 %v242, %v276
      %v279 = vadd.f32 %v243, %v276
      %v280 = vadd.f32 %v244, %v276
      %v281 = vadd.f32 %v245, %v276
      %v282 = vadd.f32 %v246, %v276
      %v283 = vadd.f32 %v247, %v276
      %v284 = vadd.f32 %v248, %v276
      %v285 = vadd.f32 %v249, %v276
      %v286 = vadd.f32 %v250, %v276
      %v287 = vadd.f32 %v251, %v276
      %v288 = vadd.f32 %v252, %v276
      %v289 = vadd.f32 %v253, %v276
      %v290 = vadd.f32 %v254, %v276
      %v291 = vadd.f32 %v255, %v276
      %v292 = vadd.f32 %v256, %v276
      %v293 = vadd.f32 %v257, %v276
      %v294 = vadd.f32 %v258, %v276
      %v295 = vadd.f32 %v259, %v276
      %v296 = vadd.f32 %v260, %v276
      %v297 = vadd.f32 %v261, %v276
      %v298 = vadd.f32 %v262, %v276
      %v299 = vadd.f32 %v263, %v276
      %v300 = vadd.f32 %v264, %v276
      %v301 = vadd.f32 %v265, %v276
      %v302 = vadd.f32 %v266, %v276
      %v303 = vadd.f32 %v267, %v276
      %v304 = vadd.f32 %v268, %v276
      %v305 = vadd.f32 %v269, %v276
      %v306 = vadd.f32 %v270, %v276
      %v307 = vadd.f32 %v271, %v276
      %v308 = vadd.f32 %v272, %v276
      %v309 = vadd.f32 %v273, %v276
      %v310 = vmax.f32 %v278, 0.0
      %v311 = vmax.f32 %v279, 0.0
      %v312 = vmax.f32 %v280, 0.0
      %v313 = vmax.f32 %v281, 0.0
      %v314 = vmax.f32 %v282, 0.0
      %v315 = vmax.f32 %v283, 0.0
      %v316 = vmax.f32 %v284, 0.0
      %v317 = vmax.f32 %v285, 0.0
      %v318 = vmax.f32 %v286, 0.0
      %v319 = vmax.f32 %v287, 0.0
      %v320 = vmax.f32 %v288, 0.0
      %v321 = vmax.f32 %v289, 0.0
      %v322 = vmax.f32 %v290, 0.0
      %v323 = vmax.f32 %v291, 0.0
      %v324 = vmax.f32 %v292, 0.0
      %v325 = vmax.f32 %v293, 0.0
      %v326 = vmax.f32 %v294, 0.0
      %v327 = vmax.f32 %v295, 0.0
      %v328 = vmax.f32 %v296, 0.0
      %v329 = vmax.f32 %v297, 0.0
      %v330 = vmax.f32 %v298, 0.0
      %v331 = vmax.f32 %v299, 0.0
      %v332 = vmax.f32 %v300, 0.0
      %v333 = vmax.f32 %v301, 0.0
      %v334 = vmax.f32 %v302, 0.0
      %v335 = vmax.f32 %v303, 0.0
      %v336 = vmax.f32 %v304, 0.0
      %v337 = vmax.f32 %v305, 0.0
      %v338 = vmax.f32 %v306, 0.0
      %v339 = vmax.f32 %v307, 0.0
      %v340 = vmax.f32 %v308, 0.0
      %v341 = vmax.f32 %v309, 0.0
      %v342 = vpack.c.bf16 %v310, %v310
      %v343 = vpack.c.bf16 %v311, %v311
      %v344 = vpack.c.bf16 %v312, %v312
      %v345 = vpack.c.bf16 %v313, %v313
      %v346 = vpack.c.bf16 %v314, %v314
      %v347 = vpack.c.bf16 %v315, %v315
      %v348 = vpack.c.bf16 %v316, %v316
      %v349 = vpack.c.bf16 %v317, %v317
      %v350 = vpack.c.bf16 %v318, %v318
      %v351 = vpack.c.bf16 %v319, %v319
      %v352 = vpack.c.bf16 %v320, %v320
      %v353 = vpack.c.bf16 %v321, %v321
      %v354 = vpack.c.bf16 %v322, %v322
      %v355 = vpack.c.bf16 %v323, %v323
      %v356 = vpack.c.bf16 %v324, %v324
      %v357 = vpack.c.bf16 %v325, %v325
      %v358 = vpack.c.bf16 %v326, %v326
      %v359 = vpack.c.bf16 %v327, %v327
      %v360 = vpack.c.bf16 %v328, %v328
      %v361 = vpack.c.bf16 %v329, %v329
      %v362 = vpack.c.bf16 %v330, %v330
      %v363 = vpack.c.bf16 %v331, %v331
      %v364 = vpack.c.bf16 %v332, %v332
      %v365 = vpack.c.bf16 %v333, %v333
      %v366 = vpack.c.bf16 %v334, %v334
      %v367 = vpack.c.bf16 %v335, %v335
      %v368 = vpack.c.bf16 %v336, %v336
      %v369 = vpack.c.bf16 %v337, %v337
      %v370 = vpack.c.bf16 %v338, %v338
      %v371 = vpack.c.bf16 %v339, %v339
      %v372 = vpack.c.bf16 %v340, %v340
      %v373 = vpack.c.bf16 %v341, %v341
      %vm374 = vcmask 60416
      %375 = vst.msk [vmem:[%s172] sm:$0xf] %vm374, %v342
      %376 = vst.msk [vmem:[%s172 + $0x4] sm:$0xf] %vm374, %v343
      %377 = vst.msk [vmem:[%s172 + $0x8] sm:$0xf] %vm374, %v344
      %378 = vst.msk [vmem:[%s172 + $0xc] sm:$0xf] %vm374, %v345
      %379 = vst.msk [vmem:[%s172 + $0x10] sm:$0xf] %vm374, %v346
      %380 = vst.msk [vmem:[%s172 + $0x14] sm:$0xf] %vm374, %v347
      %381 = vst.msk [vmem:[%s172 + $0x18] sm:$0xf] %vm374, %v348
      %382 = vst.msk [vmem:[%s172 + $0x1c] sm:$0xf] %vm374, %v349
      %383 = vst.msk [vmem:[%s172 + $0x20] sm:$0xf] %vm374, %v350
      %384 = vst.msk [vmem:[%s172 + $0x24] sm:$0xf] %vm374, %v351
      %385 = vst.msk [vmem:[%s172 + $0x28] sm:$0xf] %vm374, %v352
      %386 = vst.msk [vmem:[%s172 + $0x2c] sm:$0xf] %vm374, %v353
      %387 = vst.msk [vmem:[%s172 + $0x30] sm:$0xf] %vm374, %v354
      %388 = vst.msk [vmem:[%s172 + $0x34] sm:$0xf] %vm374, %v355
      %389 = vst.msk [vmem:[%s172 + $0x38] sm:$0xf] %vm374, %v356
      %390 = vst.msk [vmem:[%s172 + $0x3c] sm:$0xf] %vm374, %v357
      %391 = vst.msk [vmem:[%s172 + $0x40] sm:$0xf] %vm374, %v358
      %392 = vst.msk [vmem:[%s172 + $0x44] sm:$0xf] %vm374, %v359
      %393 = vst.msk [vmem:[%s172 + $0x48] sm:$0xf] %vm374, %v360
      %394 = vst.msk [vmem:[%s172 + $0x4c] sm:$0xf] %vm374, %v361
      %395 = vst.msk [vmem:[%s172 + $0x50] sm:$0xf] %vm374, %v362
      %396 = vst.msk [vmem:[%s172 + $0x54] sm:$0xf] %vm374, %v363
      %397 = vst.msk [vmem:[%s172 + $0x58] sm:$0xf] %vm374, %v364
      %398 = vst.msk [vmem:[%s172 + $0x5c] sm:$0xf] %vm374, %v365
      %399 = vst.msk [vmem:[%s172 + $0x60] sm:$0xf] %vm374, %v366
      %400 = vst.msk [vmem:[%s172 + $0x64] sm:$0xf] %vm374, %v367
      %401 = vst.msk [vmem:[%s172 + $0x68] sm:$0xf] %vm374, %v368
      %402 = vst.msk [vmem:[%s172 + $0x6c] sm:$0xf] %vm374, %v369
      %403 = vst.msk [vmem:[%s172 + $0x70] sm:$0xf] %vm374, %v370
      %404 = vst.msk [vmem:[%s172 + $0x74] sm:$0xf] %vm374, %v371
      %405 = vst.msk [vmem:[%s172 + $0x78] sm:$0xf] %vm374, %v372
      %406 = vst.msk [vmem:[%s172 + $0x7c] sm:$0xf] %vm374, %v373
      %s407 = smul.u32 32, %s14
      %p408 = scmp.lt.s32.totalorder %s407, 63
      %s409 = scalar_select %p408, %s407, 63
      %s410 = smul.addr %s409, 4
      %s411 = scalar_lea.vmem %s3, %s410
      // Predicated region
      $region33: #{residual_block_forward.5} parent=31 // pred_check
        %p412 = pneg %p100
      $region34: #{residual_block_forward.5} parent=31 // pred_check_branch
        %414 = sbr.rel (%p412) target = $region36
      $region35: #{residual_block_forward.5} parent=31 // pred_region
        %s415 = smul.u32 32, %s14
      $region36: #{residual_block_forward.5} parent=31 // pred_fallthru
        _
    $region32: #{residual_block_forward.5} parent=5 // pred_fallthru
      _
    %p416 = scmp.le.s32.totalorder 2, %s9
    // Predicated region
    $region37: #{residual_block_forward.5} parent=5 // pred_check
      %p417 = pneg %p416
    $region38: #{residual_block_forward.5} parent=5 // pred_check_branch
      %419 = sbr.rel (%p417) target = $region40
    $region39: #{residual_block_forward.5} parent=5 // pred_region
      %s420 = ssub.s32 %s9, 2
      // Predicated region
      $region41: #{residual_block_forward.5} parent=39 // pred_check
        %p421 = pneg %p106
      $region42: #{residual_block_forward.5} parent=39 // pred_check_branch
        %423 = sbr.rel (%p421) target = $region44
      $region43: #{residual_block_forward.5} parent=39 // pred_region
        %s424 = smul.u32 32, %s15
        %p425 = scmp.lt.s32.totalorder %s424, 63
        %s426 = scalar_select %p425, %s424, 63
        %s427 = smul.addr %s426, 4
        %s428 = scalar_lea.vmem %s3, %s427
      $region44: #{residual_block_forward.5} parent=39 // pred_fallthru
        _
    $region40: #{residual_block_forward.5} parent=5 // pred_fallthru
      _
  $region6: #{residual_block_forward.5} parent=0 // loop_footer
    %s13 = sadd.s32 1, %s9
  $region7: #{residual_block_forward.5} parent=0 // loop_footer_branch
    %8 = sbr.rel target = $region3
  $region8: #{residual_block_forward.5} parent=0 // loop_exit
    _

// kernel: residual_block_forward.4
$region0: #{residual_block_forward.4}
  #allocation0 [shape = 'u32[]', space=smem, size = 0x4, offset = 0x4, fixed_abs, tag = 'smem constant byte address 0x4 - core index']
  #allocation1 [shape = 'u32[72,128]{1,0:T(1,128)}', space=vmem, size = 0x9000, scoped, tag = 'internal scratch']
  %s0 = inlined_call_operand.vmem [shape: bf16[2,1,18,18,8], index: 0, kind: input, shape index: {}]
  %s1 = inlined_call_operand.vmem [shape: bf16[9,8,128], index: 1, kind: input, shape index: {}]
  %s2 = inlined_call_operand.vmem [shape: bf16[512,128], index: 2, kind: output, shape index: {0}]
  %s3 = inlined_call_operand.vmem [shape: f32[2,1,128], index: 3, kind: output, shape index: {1}]
  %s4 = inlined_call_operand.vmem [shape: f32[2,1,128], index: 4, kind: output, shape index: {2}]
  %5 = xla_tuple %s2, %s3, %s4
  %s6 = sld [smem:[#allocation0]]
  $region57: #{residual_block_forward.4} parent=0
    _
  %s8 = ssub.s32 1, %s6
  %s9 = scalar_select 0, %s8, %s6
  loop: start=0, step=1, limit=4
  $region2: #{residual_block_forward.4} parent=0 // loop_pre_header
    _
  $region3: #{residual_block_forward.4} parent=0 // loop_header
    %s11 = sphi 0, %s15
    %p12 = scmp.ge.s32.totalorder %s11, 4
    %s21 = sphi 0, %s23
    %s24 = sphi 0, %s21
    %s25 = sphi 0, %s24
    %s41 = sphi 0, %s25
    %s45 = sphi 0, %s45
    %s47 = sphi 0, %s45
    %s48 = sphi 0, %s47
    %s62 = sphi 0, %s48
    %s68 = sphi 0, %s70
    %s71 = sphi 0, %s68
    %s72 = sphi 0, %s71
    %s88 = sphi 0, %s72
    %s94 = sphi 0, %s96
    %s97 = sphi 0, %s94
    %s98 = sphi 0, %s97
    %s114 = sphi 0, %s98
    %s120 = sphi 0, %s122
    %s123 = sphi 0, %s120
    %s124 = sphi 0, %s123
    %s140 = sphi 0, %s124
  $region4: #{residual_block_forward.4} parent=0 // loop_header_branch
    %14 = sbr.rel (%p12) target = $region8
  $region5: #{residual_block_forward.4} parent=0 // loop_body
    %s16 = ssub.s32 %s11, 1
    %s17 = ssub.s32 %s11, 2
    %s18 = sadd.s32 %s11, 1
    %s19 = ssub.s32 %s11, %s18
    %p20 = scmp.eq.s32.totalorder %s19, 0
    %s22 = sadd.s32 %s21, 1
    %s23 = scalar_select %p20, %s21, %s22
    %p26 = pneg %p20
    %p27 = scmp.eq.s32.totalorder %s11, 1
    %p28 = por %p26, %p27
    %p29 = scmp.ne.s32.totalorder %s21, %s24
    %p30 = scmp.eq.s32.totalorder %s11, 0
    %p31 = por %p29, %p30
    %p32 = scmp.ne.s32.totalorder %s21, %s24
    %p33 = scmp.eq.s32.totalorder %s16, 1
    %p34 = por %p32, %p33
    %p35 = scmp.ne.s32.totalorder %s24, %s25
    %p36 = scmp.eq.s32.totalorder %s16, 0
    %p37 = por %p35, %p36
    %p38 = scmp.ne.s32.totalorder %s24, %s25
    %p39 = scmp.eq.s32.totalorder %s17, 1
    %p40 = por %p38, %p39
    %p42 = scmp.ne.s32.totalorder %s25, %s41
    %p43 = scmp.eq.s32.totalorder %s17, 0
    %p44 = por %p42, %p43
    %s46 = sadd.s32 %s45, 1
    %p49 = scmp.eq.s32.totalorder %s11, 1
    %p50 = scmp.ne.s32.totalorder %s45, %s47
    %p51 = scmp.eq.s32.totalorder %s11, 0
    %p52 = por %p50, %p51
    %p53 = scmp.ne.s32.totalorder %s45, %s47
    %p54 = scmp.eq.s32.totalorder %s16, 1
    %p55 = por %p53, %p54
    %p56 = scmp.ne.s32.totalorder %s47, %s48
    %p57 = scmp.eq.s32.totalorder %s16, 0
    %p58 = por %p56, %p57
    %p59 = scmp.ne.s32.totalorder %s47, %s48
    %p60 = scmp.eq.s32.totalorder %s17, 1
    %p61 = por %p59, %p60
    %p63 = scmp.ne.s32.totalorder %s48, %s62
    %p64 = scmp.eq.s32.totalorder %s17, 0
    %p65 = por %p63, %p64
    %s66 = ssub.s32 %s11, %s18
    %p67 = scmp.eq.s32.totalorder %s66, 0
    %s69 = sadd.s32 %s68, 1
    %s70 = scalar_select %p67, %s68, %s69
    %p73 = pneg %p67
    %p74 = scmp.eq.s32.totalorder %s11, 1
    %p75 = por %p73, %p74
    %p76 = scmp.ne.s32.totalorder %s68, %s71
    %p77 = scmp.eq.s32.totalorder %s11, 0
    %p78 = por %p76, %p77
    %p79 = scmp.ne.s32.totalorder %s68, %s71
    %p80 = scmp.eq.s32.totalorder %s16, 1
    %p81 = por %p79, %p80
    %p82 = scmp.ne.s32.totalorder %s71, %s72
    %p83 = scmp.eq.s32.totalorder %s16, 0
    %p84 = por %p82, %p83
    %p85 = scmp.ne.s32.totalorder %s71, %s72
    %p86 = scmp.eq.s32.totalorder %s17, 1
    %p87 = por %p85, %p86
    %p89 = scmp.ne.s32.totalorder %s72, %s88
    %p90 = scmp.eq.s32.totalorder %s17, 0
    %p91 = por %p89, %p90
    %s92 = ssub.s32 %s11, %s18
    %p93 = scmp.eq.s32.totalorder %s92, 0
    %s95 = sadd.s32 %s94, 1
    %s96 = scalar_select %p93, %s94, %s95
    %p99 = pneg %p93
    %p100 = scmp.eq.s32.totalorder %s11, 1
    %p101 = por %p99, %p100
    %p102 = scmp.ne.s32.totalorder %s94, %s97
    %p103 = scmp.eq.s32.totalorder %s11, 0
    %p104 = por %p102, %p103
    %p105 = scmp.ne.s32.totalorder %s94, %s97
    %p106 = scmp.eq.s32.totalorder %s16, 1
    %p107 = por %p105, %p106
    %p108 = scmp.ne.s32.totalorder %s97, %s98
    %p109 = scmp.eq.s32.totalorder %s16, 0
    %p110 = por %p108, %p109
    %p111 = scmp.ne.s32.totalorder %s97, %s98
    %p112 = scmp.eq.s32.totalorder %s17, 1
    %p113 = por %p111, %p112
    %p115 = scmp.ne.s32.totalorder %s98, %s114
    %p116 = scmp.eq.s32.totalorder %s17, 0
    %p117 = por %p115, %p116
    %s118 = ssub.s32 %s11, %s18
    %p119 = scmp.eq.s32.totalorder %s118, 0
    %s121 = sadd.s32 %s120, 1
    %s122 = scalar_select %p119, %s120, %s121
    %p125 = pneg %p119
    %p126 = scmp.eq.s32.totalorder %s11, 1
    %p127 = por %p125, %p126
    %p128 = scmp.ne.s32.totalorder %s120, %s123
    %p129 = scmp.eq.s32.totalorder %s11, 0
    %p130 = por %p128, %p129
    %p131 = scmp.ne.s32.totalorder %s120, %s123
    %p132 = scmp.eq.s32.totalorder %s16, 1
    %p133 = por %p131, %p132
    %p134 = scmp.ne.s32.totalorder %s123, %s124
    %p135 = scmp.eq.s32.totalorder %s16, 0
    %p136 = por %p134, %p135
    %p137 = scmp.ne.s32.totalorder %s123, %s124
    %p138 = scmp.eq.s32.totalorder %s17, 1
    %p139 = por %p137, %p138
    %p141 = scmp.ne.s32.totalorder %s124, %s140
    %p142 = scmp.eq.s32.totalorder %s17, 0
    %p143 = por %p141, %p142
    %p144 = scmp.le.s32.totalorder 1, %s11
    %p145 = scmp.lt.s32.totalorder %s11, 3
    %p146 = pnand %p144, %p145
    %p147 = pneg %p146
    // Predicated region
    $region9: #{residual_block_forward.4} parent=5 // pred_check
      _
    $region10: #{residual_block_forward.4} parent=5 // pred_check_branch
      %149 = sbr.rel (%p146) target = $region12
    $region11: #{residual_block_forward.4} parent=5 // pred_region
      %s150 = ssub.s32 %s11, 1
      // Predicated region
      $region13: #{residual_block_forward.4} parent=11 // pred_check
        %p151 = pneg %p58
      $region14: #{residual_block_forward.4} parent=11 // pred_check_branch
        %153 = sbr.rel (%p151) target = $region16
      $region15: #{residual_block_forward.4} parent=11 // pred_region
        _
      $region16: #{residual_block_forward.4} parent=11 // pred_fallthru
        _
    $region12: #{residual_block_forward.4} parent=5 // pred_fallthru
      _
    %p154 = scmp.lt.s32.totalorder %s11, 2
    // Predicated region
    $region17: #{residual_block_forward.4} parent=5 // pred_check
      %p155 = pneg %p154
    $region18: #{residual_block_forward.4} parent=5 // pred_check_branch
      %157 = sbr.rel (%p155) target = $region20
    $region19: #{residual_block_forward.4} parent=5 // pred_region
      // Predicated region
      $region21: #{residual_block_forward.4} parent=19 // pred_check
        %p158 = pneg %p31
      $region22: #{residual_block_forward.4} parent=19 // pred_check_branch
        %160 = sbr.rel (%p158) target = $region24
      $region23: #{residual_block_forward.4} parent=19 // pred_region
        %p161 = scmp.lt.s32.totalorder %s11, 1
        %s162 = scalar_select %p161, %s11, 1
        %s163 = smul.addr %s162, 54
        %s164 = smul.addr %s163, 4
        %s165 = scalar_lea.vmem %s0, %s164
      $region24: #{residual_block_forward.4} parent=19 // pred_fallthru
        _
    $region20: #{residual_block_forward.4} parent=5 // pred_fallthru
      _
    %p166 = scmp.le.s32.totalorder 1, %s11
    %p167 = scmp.lt.s32.totalorder %s11, 3
    %p168 = pnand %p166, %p167
    %p169 = pneg %p168
    // Predicated region
    $region25: #{residual_block_forward.4} parent=5 // pred_check
      _
    $region26: #{residual_block_forward.4} parent=5 // pred_check_branch
      %171 = sbr.rel (%p168) target = $region28
    $region27: #{residual_block_forward.4} parent=5 // pred_region
      %s172 = ssub.s32 %s11, 1
      %p173 = scmp.lt.s32.totalorder %s16, 1
      %s174 = scalar_select %p173, %s16, 1
      %s175 = smul.addr %s174, 54
      %s176 = smul.addr %s175, 4
      %s177 = scalar_lea.vmem %s0, %s176
      %p178 = pneg %p37
      %p179 = pneg %p34
      %p180 = pneg %p58
      %p181 = pneg %p55
      %p182 = pneg %p84
      %p183 = pneg %p81
      %s184 = smul.u32 32, %s16
      %p185 = scmp.lt.s32.totalorder %s184, 63
      %s186 = scalar_select %p185, %s184, 63
      %s187 = smul.addr %s186, 4
      %s188 = scalar_lea.vmem %s2, %s187
      %p189 = pneg %p110
      %p190 = pneg %p107
      %p191 = scmp.lt.s32.totalorder %s16, 1
      %s192 = scalar_select %p191, %s16, 1
      %s193 = scalar_lea.vmem %s3, %s192
      %p194 = pneg %p136
      %p195 = pneg %p133
      %p196 = scmp.lt.s32.totalorder %s16, 1
      %s197 = scalar_select %p196, %s16, 1
      %s198 = scalar_lea.vmem %s4, %s197
      %p199 = scmp.lt.s32.totalorder %s16, 1
      %s200 = scalar_select %p199, %s16, 1
      %s201 = smul.addr %s200, 54
      %s202 = smul.addr %s201, 4
      %s203 = scalar_lea.vmem %s0, %s202
      %s204 = smul.u32 32, %s16
      %p205 = scmp.lt.s32.totalorder %s204, 63
      %s206 = scalar_select %p205, %s204, 63
      %s207 = smul.addr %s206, 4
      %s208 = scalar_lea.vmem %s2, %s207
      %s209 = smul.u32 32, %s16
      %p210 = scmp.lt.s32.totalorder %s16, 1
      %s211 = scalar_select %p210, %s16, 1
      %s212 = scalar_lea.vmem %s3, %s211
      %p213 = scmp.lt.s32.totalorder %s16, 1
      %s214 = scalar_select %p213, %s16, 1
      %s215 = scalar_lea.vmem %s4, %s214
      %v217 = vld [vmem:[%s203] sm:$0xf]
      %v218 = vld [vmem:[%s203 + $0x4] sm:$0xf]
      %v219 = vld [vmem:[%s203 + $0xc] sm:$0xf]
      %v220 = vld [vmem:[%s203 + $0x10] sm:$0xf]
      %v221 = vld [vmem:[%s203 + $0x18] sm:$0xf]
      %v222 = vld [vmem:[%s203 + $0x1c] sm:$0xf]
      %v223 = vld [vmem:[%s203 + $0x24] sm:$0xf]
      %v224 = vld [vmem:[%s203 + $0x28] sm:$0xf]
      %v225 = vld [vmem:[%s203 + $0x30] sm:$0xf]
      %v226 = vld [vmem:[%s203 + $0x34] sm:$0xf]
      %v227 = vld [vmem:[%s203 + $0x3c] sm:$0xf]
      %v228 = vld [vmem:[%s203 + $0x40] sm:$0xf]
      %v229 = vld [vmem:[%s203 + $0x48] sm:$0xf]
      %v230 = vld [vmem:[%s203 + $0x4c] sm:$0xf]
      %v231 = vld [vmem:[%s203 + $0x54] sm:$0xf]
      %v232 = vld [vmem:[%s203 + $0x58] sm:$0xf]
      %v233 = vld [vmem:[%s203 + $0x60] sm:$0xf]
      %v234 = vld [vmem:[%s203 + $0x64] sm:$0xf]
      %v235 = vld [vmem:[%s203 + $0x6c] sm:$0xf]
      %v236 = vld [vmem:[%s203 + $0x70] sm:$0xf]
      %v237 = vld [vmem:[%s203 + $0x78] sm:$0xf]
      %v238 = vld [vmem:[%s203 + $0x7c] sm:$0xf]
      %v239 = vld [vmem:[%s203 + $0x84] sm:$0xf]
      %v240 = vld [vmem:[%s203 + $0x88] sm:$0xf]
      %v241 = vld [vmem:[%s203 + $0x90] sm:$0xf]
      %v242 = vld [vmem:[%s203 + $0x94] sm:$0xf]
      %v243 = vld [vmem:[%s203 + $0x9c] sm:$0xf]
      %v244 = vld [vmem:[%s203 + $0xa0] sm:$0xf]
      %v245 = vld [vmem:[%s203 + $0xa8] sm:$0xf]
      %v246 = vld [vmem:[%s203 + $0xac] sm:$0xf]
      %v247 = vld [vmem:[%s203 + $0xb4] sm:$0xf]
      %v248 = vld [vmem:[%s203 + $0xb8] sm:$0xf]
      %v249 = vld [vmem:[%s1] sm:$0xf]
      %v250 = vld [vmem:[%s203 + $0x8] sm:$0x1]
      %v251 = vld [vmem:[%s203 + $0x14] sm:$0x1]
      %v252 = vld [vmem:[%s203 + $0x20] sm:$0x1]
      %v253 = vld [vmem:[%s203 + $0x2c] sm:$0x1]
      %v254 = vld [vmem:[%s203 + $0x38] sm:$0x1]
      %v255 = vld [vmem:[%s203 + $0x44] sm:$0x1]
      %v256 = vld [vmem:[%s203 + $0x50] sm:$0x1]
      %v257 = vld [vmem:[%s203 + $0x5c] sm:$0x1]
      %v258 = vld [vmem:[%s203 + $0x68] sm:$0x1]
      %v259 = vld [vmem:[%s203 + $0x74] sm:$0x1]
      %v260 = vld [vmem:[%s203 + $0x80] sm:$0x1]
      %v261 = vld [vmem:[%s203 + $0x8c] sm:$0x1]
      %v262 = vld [vmem:[%s203 + $0x98] sm:$0x1]
      %v263 = vld [vmem:[%s203 + $0xa4] sm:$0x1]
      %v264 = vld [vmem:[%s203 + $0xb0] sm:$0x1]
      %v265 = vld [vmem:[%s203 + $0xbc] sm:$0x1]
      %vm266 = vsmask.f32 3328
      %vm267 = vsmask.f32 7440
      %vm268 = vmor %vm266, %vm267
      %v270 = vshrl.u32 %v217, 16
      %v272 = vrot.slane %v270, 4
      %v273 = vshll.u32 %v217, 16
      %v275 = vrot.slane %v273, 5
      %v276 = vor.u32 %v272, %v275
      %v277 = vrot.slane %v276, 4
      %v279 = vshll.u32 %v218, 16
      %v281 = vrot.slane %v279, 5
      %v282 = vsel %vm268, %v277, %v281
      %v283 = vshrl.u32 %v218, 16
      %v285 = vrot.slane %v283, 4
      %v286 = vor.u32 %v285, %v281
      %v287 = vrot.slane %v286, 4
      %v289 = vshll.u32 %v250, 16
      %v291 = vrot.slane %v289, 5
      %v292 = vsel %vm268, %v287, %v291
      %v294 = vshrl.u32 %v219, 16
      %v296 = vrot.slane %v294, 4
      %v297 = vshll.u32 %v219, 16
      %v299 = vrot.slane %v297, 5
      %v300 = vor.u32 %v296, %v299
      %v301 = vrot.slane %v300, 4
      %v303 = vshll.u32 %v220, 16
      %v305 = vrot.slane %v303, 5
      %v306 = vsel %vm268, %v301, %v305
      %v307 = vshrl.u32 %v220, 16
      %v309 = vrot.slane %v307, 4
      %v310 = vor.u32 %v309, %v305
      %v311 = vrot.slane %v310, 4
      %v313 = vshll.u32 %v251, 16
      %v315 = vrot.slane %v313, 5
      %v316 = vsel %vm268, %v311, %v315
      %v318 = vshrl.u32 %v221, 16
      %v320 = vrot.slane %v318, 4
      %v321 = vshll.u32 %v221, 16
      %v323 = vrot.slane %v321, 5
      %v324 = vor.u32 %v320, %v323
      %v325 = vrot.slane %v324, 4
      %v327 = vshll.u32 %v222, 16
      %v329 = vrot.slane %v327, 5
      %v330 = vsel %vm268, %v325, %v329
      %v331 = vshrl.u32 %v222, 16
      %v333 = vrot.slane %v331, 4
      %v334 = vor.u32 %v333, %v329
      %v335 = vrot.slane %v334, 4
      %v337 = vshll.u32 %v252, 16
      %v339 = vrot.slane %v337, 5
      %v340 = vsel %vm268, %v335, %v339
      %v342 = vshrl.u32 %v223, 16
      %v344 = vrot.slane %v342, 4
      %v345 = vshll.u32 %v223, 16
      %v347 = vrot.slane %v345, 5
      %v348 = vor.u32 %v344, %v347
      %v349 = vrot.slane %v348, 4
      %v351 = vshll.u32 %v224, 16
      %v353 = vrot.slane %v351, 5
      %v354 = vsel %vm268, %v349, %v353
      %v355 = vshrl.u32 %v224, 16
      %v357 = vrot.slane %v355, 4
      %v358 = vor.u32 %v357, %v353
      %v359 = vrot.slane %v358, 4
      %v361 = vshll.u32 %v253, 16
      %v363 = vrot.slane %v361, 5
      %v364 = vsel %vm268, %v359, %v363
      %v366 = vshrl.u32 %v225, 16
      %v368 = vrot.slane %v366, 4
      %v369 = vshll.u32 %v225, 16
      %v371 = vrot.slane %v369, 5
      %v372 = vor.u32 %v368, %v371
      %v373 = vrot.slane %v372, 4
      %v375 = vshll.u32 %v226, 16
      %v377 = vrot.slane %v375, 5
      %v378 = vsel %vm268, %v373, %v377
      %v379 = vshrl.u32 %v226, 16
      %v381 = vrot.slane %v379, 4
      %v382 = vor.u32 %v381, %v377
      %v383 = vrot.slane %v382, 4
      %v385 = vshll.u32 %v254, 16
      %v387 = vrot.slane %v385, 5
      %v388 = vsel %vm268, %v383, %v387
      %v390 = vshrl.u32 %v227, 16
      %v392 = vrot.slane %v390, 4
      %v393 = vshll.u32 %v227, 16
      %v395 = vrot.slane %v393, 5
      %v396 = vor.u32 %v392, %v395
      %v397 = vrot.slane %v396, 4
      %v399 = vshll.u32 %v228, 16
      %v401 = vrot.slane %v399, 5
      %v402 = vsel %vm268, %v397, %v401
      %v403 = vshrl.u32 %v228, 16
      %v405 = vrot.slane %v403, 4
      %v406 = vor.u32 %v405, %v401
      %v407 = vrot.slane %v406, 4
      %v409 = vshll.u32 %v255, 16
      %v411 = vrot.slane %v409, 5
      %v412 = vsel %vm268, %v407, %v411
      %v414 = vshrl.u32 %v229, 16
      %v416 = vrot.slane %v414, 4
      %v417 = vshll.u32 %v229, 16
      %v419 = vrot.slane %v417, 5
      %v420 = vor.u32 %v416, %v419
      %v421 = vrot.slane %v420, 4
      %v423 = vshll.u32 %v230, 16
      %v425 = vrot.slane %v423, 5
      %v426 = vsel %vm268, %v421, %v425
      %v427 = vshrl.u32 %v230, 16
      %v429 = vrot.slane %v427, 4
      %v430 = vor.u32 %v429, %v425
      %v431 = vrot.slane %v430, 4
      %v433 = vshll.u32 %v256, 16
      %v435 = vrot.slane %v433, 5
      %v436 = vsel %vm268, %v431, %v435
      %v438 = vshrl.u32 %v231, 16
      %v440 = vrot.slane %v438, 4
      %v441 = vshll.u32 %v231, 16
      %v443 = vrot.slane %v441, 5
      %v444 = vor.u32 %v440, %v443
      %v445 = vrot.slane %v444, 4
      %v447 = vshll.u32 %v232, 16
      %v449 = vrot.slane %v447, 5
      %v450 = vsel %vm268, %v445, %v449
      %v451 = vshrl.u32 %v232, 16
      %v453 = vrot.slane %v451, 4
      %v454 = vor.u32 %v453, %v449
      %v455 = vrot.slane %v454, 4
      %v457 = vshll.u32 %v257, 16
      %v459 = vrot.slane %v457, 5
      %v460 = vsel %vm268, %v455, %v459
      %v462 = vshrl.u32 %v233, 16
      %v464 = vrot.slane %v462, 4
      %v465 = vshll.u32 %v233, 16
      %v467 = vrot.slane %v465, 5
      %v468 = vor.u32 %v464, %v467
      %v469 = vrot.slane %v468, 4
      %v471 = vshll.u32 %v234, 16
      %v473 = vrot.slane %v471, 5
      %v474 = vsel %vm268, %v469, %v473
      %v475 = vshrl.u32 %v234, 16
      %v477 = vrot.slane %v475, 4
      %v478 = vor.u32 %v477, %v473
      %v479 = vrot.slane %v478, 4
      %v481 = vshll.u32 %v258, 16
      %v483 = vrot.slane %v481, 5
      %v484 = vsel %vm268, %v479, %v483
      %v486 = vshrl.u32 %v235, 16
      %v488 = vrot.slane %v486, 4
      %v489 = vshll.u32 %v235, 16
      %v491 = vrot.slane %v489, 5
      %v492 = vor.u32 %v488, %v491
      %v493 = vrot.slane %v492, 4
      %v495 = vshll.u32 %v236, 16
      %v497 = vrot.slane %v495, 5
      %v498 = vsel %vm268, %v493, %v497
      %v499 = vshrl.u32 %v236, 16
      %v501 = vrot.slane %v499, 4
      %v502 = vor.u32 %v501, %v497
      %v503 = vrot.slane %v502, 4
      %v505 = vshll.u32 %v259, 16
      %v507 = vrot.slane %v505, 5
      %v508 = vsel %vm268, %v503, %v507
      %v510 = vshrl.u32 %v237, 16
      %v512 = vrot.slane %v510, 4
      %v513 = vshll.u32 %v237, 16
      %v515 = vrot.slane %v513, 5
      %v516 = vor.u32 %v512, %v515
      %v517 = vrot.slane %v516, 4
      %v519 = vshll.u32 %v238, 16
      %v521 = vrot.slane %v519, 5
      %v522 = vsel %vm268, %v517, %v521
      %v523 = vshrl.u32 %v238, 16
      %v525 = vrot.slane %v523, 4
      %v526 = vor.u32 %v525, %v521
      %v527 = vrot.slane %v526, 4
      %v529 = vshll.u32 %v260, 16
      %v531 = vrot.slane %v529, 5
      %v532 = vsel %vm268, %v527, %v531
      %v534 = vshrl.u32 %v239, 16
      %v536 = vrot.slane %v534, 4
      %v537 = vshll.u32 %v239, 16
      %v539 = vrot.slane %v537, 5
      %v540 = vor.u32 %v536, %v539
      %v541 = vrot.slane %v540, 4
      %v543 = vshll.u32 %v240, 16
      %v545 = vrot.slane %v543, 5
      %v546 = vsel %vm268, %v541, %v545
      %v547 = vshrl.u32 %v240, 16
      %v549 = vrot.slane %v547, 4
      %v550 = vor.u32 %v549, %v545
      %v551 = vrot.slane %v550, 4
      %v553 = vshll.u32 %v261, 16
      %v555 = vrot.slane %v553, 5
      %v556 = vsel %vm268, %v551, %v555
      %v558 = vshrl.u32 %v241, 16
      %v560 = vrot.slane %v558, 4
      %v561 = vshll.u32 %v241, 16
      %v563 = vrot.slane %v561, 5
      %v564 = vor.u32 %v560, %v563
      %v565 = vrot.slane %v564, 4
      %v567 = vshll.u32 %v242, 16
      %v569 = vrot.slane %v567, 5
      %v570 = vsel %vm268, %v565, %v569
      %v571 = vshrl.u32 %v242, 16
      %v573 = vrot.slane %v571, 4
      %v574 = vor.u32 %v573, %v569
      %v575 = vrot.slane %v574, 4
      %v577 = vshll.u32 %v262, 16
      %v579 = vrot.slane %v577, 5
      %v580 = vsel %vm268, %v575, %v579
      %v582 = vshrl.u32 %v243, 16
      %v584 = vrot.slane %v582, 4
      %v585 = vshll.u32 %v243, 16
      %v587 = vrot.slane %v585, 5
      %v588 = vor.u32 %v584, %v587
      %v589 = vrot.slane %v588, 4
      %v591 = vshll.u32 %v244, 16
      %v593 = vrot.slane %v591, 5
      %v594 = vsel %vm268, %v589, %v593
      %v595 = vshrl.u32 %v244, 16
      %v597 = vrot.slane %v595, 4
      %v598 = vor.u32 %v597, %v593
      %v599 = vrot.slane %v598, 4
      %v601 = vshll.u32 %v263, 16
      %v603 = vrot.slane %v601, 5
      %v604 = vsel %vm268, %v599, %v603
      %v606 = vshrl.u32 %v245, 16
      %v608 = vrot.slane %v606, 4
      %v609 = vshll.u32 %v245, 16
      %v611 = vrot.slane %v609, 5
      %v612 = vor.u32 %v608, %v611
      %v613 = vrot.slane %v612, 4
      %v615 = vshll.u32 %v246, 16
      %v617 = vrot.slane %v615, 5
      %v618 = vsel %vm268, %v613, %v617
      %v619 = vshrl.u32 %v246, 16
      %v621 = vrot.slane %v619, 4
      %v622 = vor.u32 %v621, %v617
      %v623 = vrot.slane %v622, 4
      %v625 = vshll.u32 %v264, 16
      %v627 = vrot.slane %v625, 5
      %v628 = vsel %vm268, %v623, %v627
      %v630 = vshrl.u32 %v247, 16
      %v632 = vrot.slane %v630, 4
      %v633 = vshll.u32 %v247, 16
      %v635 = vrot.slane %v633, 5
      %v636 = vor.u32 %v632, %v635
      %v637 = vrot.slane %v636, 4
      %v639 = vshll.u32 %v248, 16
      %v641 = vrot.slane %v639, 5
      %v642 = vsel %vm268, %v637, %v641
      %v643 = vshrl.u32 %v248, 16
      %v645 = vrot.slane %v643, 4
      %v646 = vor.u32 %v645, %v641
      %v647 = vrot.slane %v646, 4
      %v649 = vshll.u32 %v265, 16
      %v651 = vrot.slane %v649, 5
      %v652 = vsel %vm268, %v647, %v651
      %s653 = scalar_lea.vmem %s1, 4
      %v654 = vld [vmem:[%s653] sm:$0xf]
      %v655 = vunpack.c.l.b16 %v282
      %v656 = vunpack.c.l.b16 %v292
      %v657 = vunpack.c.l.b16 %v306
      %v658 = vunpack.c.l.b16 %v316
      %v659 = vunpack.c.l.b16 %v330
      %v660 = vunpack.c.l.b16 %v340
      %v661 = vunpack.c.l.b16 %v354
      %v662 = vunpack.c.l.b16 %v364
      %v663 = vunpack.c.l.b16 %v378
      %v664 = vunpack.c.l.b16 %v388
      %v665 = vunpack.c.l.b16 %v402
      %v666 = vunpack.c.l.b16 %v412
      %v667 = vunpack.c.l.b16 %v426
      %v668 = vunpack.c.l.b16 %v436
      %v669 = vunpack.c.l.b16 %v450
      %v670 = vunpack.c.l.b16 %v460
      %v671 = vunpack.c.l.b16 %v474
      %v672 = vunpack.c.l.b16 %v484
      %v673 = vunpack.c.l.b16 %v498
      %v674 = vunpack.c.l.b16 %v508
      %v675 = vunpack.c.l.b16 %v522
      %v676 = vunpack.c.l.b16 %v532
      %v677 = vunpack.c.l.b16 %v546
      %v678 = vunpack.c.l.b16 %v556
      %v679 = vunpack.c.l.b16 %v570
      %v680 = vunpack.c.l.b16 %v580
      %v681 = vunpack.c.l.b16 %v594
      %v682 = vunpack.c.l.b16 %v604
      %v683 = vunpack.c.l.b16 %v618
      %v684 = vunpack.c.l.b16 %v628
      %v685 = vunpack.c.l.b16 %v642
      %v686 = vunpack.c.l.b16 %v652
      %v687 = vpack.c.b16 %v656, %v655
      %v688 = vpack.c.b16 %v658, %v657
      %v689 = vpack.c.b16 %v660, %v659
      %v690 = vpack.c.b16 %v662, %v661
      %v691 = vpack.c.b16 %v664, %v663
      %v692 = vpack.c.b16 %v666, %v665
      %v693 = vpack.c.b16 %v668, %v667
      %v694 = vpack.c.b16 %v670, %v669
      %v695 = vpack.c.b16 %v672, %v671
      %v696 = vpack.c.b16 %v674, %v673
      %v697 = vpack.c.b16 %v676, %v675
      %v698 = vpack.c.b16 %v678, %v677
      %v699 = vpack.c.b16 %v680, %v679
      %v700 = vpack.c.b16 %v682, %v681
      %v701 = vpack.c.b16 %v684, %v683
      %v702 = vpack.c.b16 %v686, %v685
      %vm703 = vcmask 64512
      %v705 = vsel %vm703, %v687, 0
      %v708 = vsel %vm703, %v688, 0
      %v711 = vsel %vm703, %v689, 0
      %v714 = vsel %vm703, %v690, 0
      %v717 = vsel %vm703, %v691, 0
      %v720 = vsel %vm703, %v692, 0
      %v723 = vsel %vm703, %v693, 0
      %v726 = vsel %vm703, %v694, 0
      %v729 = vsel %vm703, %v695, 0
      %v732 = vsel %vm703, %v696, 0
      %v735 = vsel %vm703, %v697, 0
      %v738 = vsel %vm703, %v698, 0
      %v741 = vsel %vm703, %v699, 0
      %v744 = vsel %vm703, %v700, 0
      %v747 = vsel %vm703, %v701, 0
      %v750 = vsel %vm703, %v702, 0
      %vm752 = vcmask 1043456
      %v754 = vsel %vm752, %v654, 0
      %756 = vmatpush.bf16.msra.mxu0 0
      %757 = vmatpush.bf16.msra.mxu0 0
      %758 = vmatpush.bf16.msra.mxu0 0
      %759 = vmatpush.bf16.msra.mxu0 0
      %760 = vmatpush.bf16.msra.mxu0 0
      %761 = vmatpush.bf16.msra.mxu0 0
      %762 = vmatpush.bf16.msra.mxu0 0
      %763 = vmatpush.bf16.msra.mxu0 %v754
      %764 = vmatmul.bf16.gmra.mxu0 %v705
      %v765 = vpop.f32.mrf.mxu0
      %v766 = vadd.f32 0.0, %v765
      %v767 = vpop.f32.mrf.mxu0
      %v768 = vadd.f32 0.0, %v767
      %769 = vmatmul.bf16.gmra.mxu0 %v708
      %v770 = vpop.f32.mrf.mxu0
      %v771 = vadd.f32 0.0, %v770
      %v772 = vpop.f32.mrf.mxu0
      %v773 = vadd.f32 0.0, %v772
      %774 = vmatmul.bf16.gmra.mxu0 %v711
      %v775 = vpop.f32.mrf.mxu0
      %v776 = vadd.f32 0.0, %v775
      %v777 = vpop.f32.mrf.mxu0
      %v778 = vadd.f32 0.0, %v777
      %779 = vmatmul.bf16.gmra.mxu0 %v714
      %v780 = vpop.f32.mrf.mxu0
      %v781 = vadd.f32 0.0, %v780
      %v782 = vpop.f32.mrf.mxu0
      %v783 = vadd.f32 0.0, %v782
      %784 = vmatmul.bf16.gmra.mxu0 %v717
      %v785 = vpop.f32.mrf.mxu0
      %v786 = vadd.f32 0.0, %v785
      %v787 = vpop.f32.mrf.mxu0
      %v788 = vadd.f32 0.0, %v787
      %789 = vmatmul.bf16.gmra.mxu0 %v720
      %v790 = vpop.f32.mrf.mxu0
      %v791 = vadd.f32 0.0, %v790
      %v792 = vpop.f32.mrf.mxu0
      %v793 = vadd.f32 0.0, %v792
      %794 = vmatmul.bf16.gmra.mxu0 %v723
      %v795 = vpop.f32.mrf.mxu0
      %v796 = vadd.f32 0.0, %v795
      %v797 = vpop.f32.mrf.mxu0
      %v798 = vadd.f32 0.0, %v797
      %799 = vmatmul.bf16.gmra.mxu0 %v726
      %v800 = vpop.f32.mrf.mxu0
      %v801 = vadd.f32 0.0, %v800
      %v802 = vpop.f32.mrf.mxu0
      %v803 = vadd.f32 0.0, %v802
      %804 = vmatmul.bf16.gmra.mxu0 %v729
      %v805 = vpop.f32.mrf.mxu0
      %v806 = vadd.f32 0.0, %v805
      %v807 = vpop.f32.mrf.mxu0
      %v808 = vadd.f32 0.0, %v807
      %809 = vmatmul.bf16.gmra.mxu0 %v732
      %v810 = vpop.f32.mrf.mxu0
      %v811 = vadd.f32 0.0, %v810
      %v812 = vpop.f32.mrf.mxu0
      %v813 = vadd.f32 0.0, %v812
      %814 = vmatmul.bf16.gmra.mxu0 %v735
      %v815 = vpop.f32.mrf.mxu0
      %v816 = vadd.f32 0.0, %v815
      %v817 = vpop.f32.mrf.mxu0
      %v818 = vadd.f32 0.0, %v817
      %819 = vmatmul.bf16.gmra.mxu0 %v738
      %v820 = vpop.f32.mrf.mxu0
      %v821 = vadd.f32 0.0, %v820
      %v822 = vpop.f32.mrf.mxu0
      %v823 = vadd.f32 0.0, %v822
      %824 = vmatmul.bf16.gmra.mxu0 %v741
      %v825 = vpop.f32.mrf.mxu0
      %v826 = vadd.f32 0.0, %v825
      %v827 = vpop.f32.mrf.mxu0
      %v828 = vadd.f32 0.0, %v827
      %829 = vmatmul.bf16.gmra.mxu0 %v744
      %v830 = vpop.f32.mrf.mxu0
      %v831 = vadd.f32 0.0, %v830
      %v832 = vpop.f32.mrf.mxu0
      %v833 = vadd.f32 0.0, %v832
      %834 = vmatmul.bf16.gmra.mxu0 %v747
      %v835 = vpop.f32.mrf.mxu0
      %v836 = vadd.f32 0.0, %v835
      %v837 = vpop.f32.mrf.mxu0
      %v838 = vadd.f32 0.0, %v837
      %839 = vmatmul.bf16.gmra.mxu0 %v750
      %v840 = vpop.f32.mrf.mxu0
      %v841 = vadd.f32 0.0, %v840
      %v842 = vpop.f32.mrf.mxu0
      %v843 = vadd.f32 0.0, %v842
      %844 = vdwg.mxu0
      %v877 = vunpack.c.l.b16 %v217
      %v878 = vunpack.c.l.b16 %v218
      %v879 = vunpack.c.l.b16 %v219
      %v880 = vunpack.c.l.b16 %v220
      %v881 = vunpack.c.l.b16 %v221
      %v882 = vunpack.c.l.b16 %v222
      %v883 = vunpack.c.l.b16 %v223
      %v884 = vunpack.c.l.b16 %v224
      %v885 = vunpack.c.l.b16 %v225
      %v886 = vunpack.c.l.b16 %v226
      %v887 = vunpack.c.l.b16 %v227
      %v888 = vunpack.c.l.b16 %v228
      %v889 = vunpack.c.l.b16 %v229
      %v890 = vunpack.c.l.b16 %v230
      %v891 = vunpack.c.l.b16 %v231
      %v892 = vunpack.c.l.b16 %v232
      %v893 = vunpack.c.l.b16 %v233
      %v894 = vunpack.c.l.b16 %v234
      %v895 = vunpack.c.l.b16 %v235
      %v896 = vunpack.c.l.b16 %v236
      %v897 = vunpack.c.l.b16 %v237
      %v898 = vunpack.c.l.b16 %v238
      %v899 = vunpack.c.l.b16 %v239
      %v900 = vunpack.c.l.b16 %v240
      %v901 = vunpack.c.l.b16 %v241
      %v902 = vunpack.c.l.b16 %v242
      %v903 = vunpack.c.l.b16 %v243
      %v904 = vunpack.c.l.b16 %v244
      %v905 = vunpack.c.l.b16 %v245
      %v906 = vunpack.c.l.b16 %v246
      %v907 = vunpack.c.l.b16 %v247
      %v908 = vunpack.c.l.b16 %v248
      %v909 = vpack.c.b16 %v878, %v877
      %v910 = vpack.c.b16 %v880, %v879
      %v911 = vpack.c.b16 %v882, %v881
      %v912 = vpack.c.b16 %v884, %v883
      %v913 = vpack.c.b16 %v886, %v885
      %v914 = vpack.c.b16 %v888, %v887
      %v915 = vpack.c.b16 %v890, %v889
      %v916 = vpack.c.b16 %v892, %v891
      %v917 = vpack.c.b16 %v894, %v893
      %v918 = vpack.c.b16 %v896, %v895
      %v919 = vpack.c.b16 %v898, %v897
      %v920 = vpack.c.b16 %v900, %v899
      %v921 = vpack.c.b16 %v902, %v901
      %v922 = vpack.c.b16 %v904, %v903
      %v923 = vpack.c.b16 %v906, %v905
      %v924 = vpack.c.b16 %v908, %v907
      %v926 = vsel %vm703, %v909, 0
      %v929 = vsel %vm703, %v910, 0
      %v932 = vsel %vm703, %v911, 0
      %v935 = vsel %vm703, %v912, 0
      %v938 = vsel %vm703, %v913, 0
      %v941 = vsel %vm703, %v914, 0
      %v944 = vsel %vm703, %v915, 0
      %v947 = vsel %vm703, %v916, 0
      %v950 = vsel %vm703, %v917, 0
      %v953 = vsel %vm703, %v918, 0
      %v956 = vsel %vm703, %v919, 0
      %v959 = vsel %vm703, %v920, 0
      %v962 = vsel %vm703, %v921, 0
      %v965 = vsel %vm703, %v922, 0
      %v968 = vsel %vm703, %v923, 0
      %v971 = vsel %vm703, %v924, 0
      %v974 = vsel %vm752, %v249, 0
      %976 = vmatpush.bf16.msra.mxu0 0
      %977 = vmatpush.bf16.msra.mxu0 0
      %978 = vmatpush.bf16.msra.mxu0 0
      %979 = vmatpush.bf16.msra.mxu0 0
      %980 = vmatpush.bf16.msra.mxu0 0
      %981 = vmatpush.bf16.msra.mxu0 0
      %982 = vmatpush.bf16.msra.mxu0 0
      %983 = vmatpush.bf16.msra.mxu0 %v974
      %984 = vmatmul.bf16.gmra.mxu0 %v926
      %v985 = vpop.f32.mrf.mxu0
      %v986 = vadd.f32 %v766, %v985
      %v987 = vpop.f32.mrf.mxu0
      %v988 = vadd.f32 %v768, %v987
      %989 = vmatmul.bf16.gmra.mxu0 %v929
      %v990 = vpop.f32.mrf.mxu0
      %v991 = vadd.f32 %v771, %v990
      %v992 = vpop.f32.mrf.mxu0
      %v993 = vadd.f32 %v773, %v992
      %994 = vmatmul.bf16.gmra.mxu0 %v932
      %v995 = vpop.f32.mrf.mxu0
      %v996 = vadd.f32 %v776, %v995
      %v997 = vpop.f32.mrf.mxu0
      %v998 = vadd.f32 %v778, %v997
      %999 = vmatmul.bf16.gmra.mxu0 %v935
      %v1000 = vpop.f32.mrf.mxu0
      %v1001 = vadd.f32 %v781, %v1000
      %v1002 = vpop.f32.mrf.mxu0
      %v1003 = vadd.f32 %v783, %v1002
      %1004 = vmatmul.bf16.gmra.mxu0 %v938
      %v1005 = vpop.f32.mrf.mxu0
      %v1006 = vadd.f32 %v786, %v1005
      %v1007 = vpop.f32.mrf.mxu0
      %v1008 = vadd.f32 %v788, %v1007
      %1009 = vmatmul.bf16.gmra.mxu0 %v941
      %v1010 = vpop.f32.mrf.mxu0
      %v1011 = vadd.f32 %v791, %v1010
      %v1012 = vpop.f32.mrf.mxu0
      %v1013 = vadd.f32 %v793, %v1012
      %1014 = vmatmul.bf16.gmra.mxu0 %v944
      %v1015 = vpop.f32.mrf.mxu0
      %v1016 = vadd.f32 %v796, %v1015
      %v1017 = vpop.f32.mrf.mxu0
      %v1018 = vadd.f32 %v798, %v1017
      %1019 = vmatmul.bf16.gmra.mxu0 %v947
      %v1020 = vpop.f32.mrf.mxu0
      %v1021 = vadd.f32 %v801, %v1020
      %v1022 = vpop.f32.mrf.mxu0
      %v1023 = vadd.f32 %v803, %v1022
      %1024 = vmatmul.bf16.gmra.mxu0 %v950
      %v1025 = vpop.f32.mrf.mxu0
      %v1026 = vadd.f32 %v806, %v1025
      %v1027 = vpop.f32.mrf.mxu0
      %v1028 = vadd.f32 %v808, %v1027
      %1029 = vmatmul.bf16.gmra.mxu0 %v953
      %v1030 = vpop.f32.mrf.mxu0
      %v1031 = vadd.f32 %v811, %v1030
      %v1032 = vpop.f32.mrf.mxu0
      %v1033 = vadd.f32 %v813, %v1032
      %1034 = vmatmul.bf16.gmra.mxu0 %v956
      %v1035 = vpop.f32.mrf.mxu0
      %v1036 = vadd.f32 %v816, %v1035
      %v1037 = vpop.f32.mrf.mxu0
      %v1038 = vadd.f32 %v818, %v1037
      %1039 = vmatmul.bf16.gmra.mxu0 %v959
      %v1040 = vpop.f32.mrf.mxu0
      %v1041 = vadd.f32 %v821, %v1040
      %v1042 = vpop.f32.mrf.mxu0
      %v1043 = vadd.f32 %v823, %v1042
      %1044 = vmatmul.bf16.gmra.mxu0 %v962
      %v1045 = vpop.f32.mrf.mxu0
      %v1046 = vadd.f32 %v826, %v1045
      %v1047 = vpop.f32.mrf.mxu0
      %v1048 = vadd.f32 %v828, %v1047
      %1049 = vmatmul.bf16.gmra.mxu0 %v965
      %v1050 = vpop.f32.mrf.mxu0
      %v1051 = vadd.f32 %v831, %v1050
      %v1052 = vpop.f32.mrf.mxu0
      %v1053 = vadd.f32 %v833, %v1052
      %1054 = vmatmul.bf16.gmra.mxu0 %v968
      %v1055 = vpop.f32.mrf.mxu0
      %v1056 = vadd.f32 %v836, %v1055
      %v1057 = vpop.f32.mrf.mxu0
      %v1058 = vadd.f32 %v838, %v1057
      %1059 = vmatmul.bf16.gmra.mxu0 %v971
      %v1060 = vpop.f32.mrf.mxu0
      %v1061 = vadd.f32 %v841, %v1060
      %v1062 = vpop.f32.mrf.mxu0
      %v1063 = vadd.f32 %v843, %v1062
      %1064 = vdwg.mxu0
      %v1065 = vld [vmem:[%s203] sm:$0xe]
      %v1066 = vld [vmem:[%s203 + $0xc] sm:$0xe]
      %v1067 = vld [vmem:[%s203 + $0x18] sm:$0xe]
      %v1068 = vld [vmem:[%s203 + $0x24] sm:$0xe]
      %v1069 = vld [vmem:[%s203 + $0x30] sm:$0xe]
      %v1070 = vld [vmem:[%s203 + $0x3c] sm:$0xe]
      %v1071 = vld [vmem:[%s203 + $0x48] sm:$0xe]
      %v1072 = vld [vmem:[%s203 + $0x54] sm:$0xe]
      %v1073 = vld [vmem:[%s203 + $0x60] sm:$0xe]
      %v1074 = vld [vmem:[%s203 + $0x6c] sm:$0xe]
      %v1075 = vld [vmem:[%s203 + $0x78] sm:$0xe]
      %v1076 = vld [vmem:[%s203 + $0x84] sm:$0xe]
      %v1077 = vld [vmem:[%s203 + $0x90] sm:$0xe]
      %v1078 = vld [vmem:[%s203 + $0x9c] sm:$0xe]
      %v1079 = vld [vmem:[%s203 + $0xa8] sm:$0xe]
      %v1080 = vld [vmem:[%s203 + $0xb4] sm:$0xe]
      %vm1113 = vcmask 1042432
      %vm1114 = vcmask 1046532
      %vm1115 = vmor %vm1113, %vm1114
      %v1116 = vrot.slane %v1065, 5
      %v1117 = vrot.slane %v1116, 4
      %v1118 = vrot.slane %v218, 5
      %v1119 = vsel %vm1115, %v1117, %v1118
      %v1120 = vrot.slane %v1118, 4
      %v1121 = vrot.slane %v250, 5
      %v1122 = vsel %vm1115, %v1120, %v1121
      %v1123 = vrot.slane %v1066, 5
      %v1124 = vrot.slane %v1123, 4
      %v1125 = vrot.slane %v220, 5
      %v1126 = vsel %vm1115, %v1124, %v1125
      %v1127 = vrot.slane %v1125, 4
      %v1128 = vrot.slane %v251, 5
      %v1129 = vsel %vm1115, %v1127, %v1128
      %v1130 = vrot.slane %v1067, 5
      %v1131 = vrot.slane %v1130, 4
      %v1132 = vrot.slane %v222, 5
      %v1133 = vsel %vm1115, %v1131, %v1132
      %v1134 = vrot.slane %v1132, 4
      %v1135 = vrot.slane %v252, 5
      %v1136 = vsel %vm1115, %v1134, %v1135
      %v1137 = vrot.slane %v1068, 5
      %v1138 = vrot.slane %v1137, 4
      %v1139 = vrot.slane %v224, 5
      %v1140 = vsel %vm1115, %v1138, %v1139
      %v1141 = vrot.slane %v1139, 4
      %v1142 = vrot.slane %v253, 5
      %v1143 = vsel %vm1115, %v1141, %v1142
      %v1144 = vrot.slane %v1069, 5
      %v1145 = vrot.slane %v1144, 4
      %v1146 = vrot.slane %v226, 5
      %v1147 = vsel %vm1115, %v1145, %v1146
      %v1148 = vrot.slane %v1146, 4
      %v1149 = vrot.slane %v254, 5
      %v1150 = vsel %vm1115, %v1148, %v1149
      %v1151 = vrot.slane %v1070, 5
      %v1152 = vrot.slane %v1151, 4
      %v1153 = vrot.slane %v228, 5
      %v1154 = vsel %vm1115, %v1152, %v1153
      %v1155 = vrot.slane %v1153, 4
      %v1156 = vrot.slane %v255, 5
      %v1157 = vsel %vm1115, %v1155, %v1156
      %v1158 = vrot.slane %v1071, 5
      %v1159 = vrot.slane %v1158, 4
      %v1160 = vrot.slane %v230, 5
      %v1161 = vsel %vm1115, %v1159, %v1160
      %v1162 = vrot.slane %v1160, 4
      %v1163 = vrot.slane %v256, 5
      %v1164 = vsel %vm1115, %v1162, %v1163
      %v1165 = vrot.slane %v1072, 5
      %v1166 = vrot.slane %v1165, 4
      %v1167 = vrot.slane %v232, 5
      %v1168 = vsel %vm1115, %v1166, %v1167
      %v1169 = vrot.slane %v1167, 4
      %v1170 = vrot.slane %v257, 5
      %v1171 = vsel %vm1115, %v1169, %v1170
      %v1172 = vrot.slane %v1073, 5
      %v1173 = vrot.slane %v1172, 4
      %v1174 = vrot.slane %v234, 5
      %v1175 = vsel %vm1115, %v1173, %v1174
      %v1176 = vrot.slane %v1174, 4
      %v1177 = vrot.slane %v258, 5
      %v1178 = vsel %vm1115, %v1176, %v1177
      %v1179 = vrot.slane %v1074, 5
      %v1180 = vrot.slane %v1179, 4
      %v1181 = vrot.slane %v236, 5
      %v1182 = vsel %vm1115, %v1180, %v1181
      %v1183 = vrot.slane %v1181, 4
      %v1184 = vrot.slane %v259, 5
      %v1185 = vsel %vm1115, %v1183, %v1184
      %v1186 = vrot.slane %v1075, 5
      %v1187 = vrot.slane %v1186, 4
      %v1188 = vrot.slane %v238, 5
      %v1189 = vsel %vm1115, %v1187, %v1188
      %v1190 = vrot.slane %v1188, 4
      %v1191 = vrot.slane %v260, 5
      %v1192 = vsel %vm1115, %v1190, %v1191
      %v1193 = vrot.slane %v1076, 5
      %v1194 = vrot.slane %v1193, 4
      %v1195 = vrot.slane %v240, 5
      %v1196 = vsel %vm1115, %v1194, %v1195
      %v1197 = vrot.slane %v1195, 4
      %v1198 = vrot.slane %v261, 5
      %v1199 = vsel %vm1115, %v1197, %v1198
      %v1200 = vrot.slane %v1077, 5
      %v1201 = vrot.slane %v1200, 4
      %v1202 = vrot.slane %v242, 5
      %v1203 = vsel %vm1115, %v1201, %v1202
      %v1204 = vrot.slane %v1202, 4
      %v1205 = vrot.slane %v262, 5
      %v1206 = vsel %vm1115, %v1204, %v1205
      %v1207 = vrot.slane %v1078, 5
      %v1208 = vrot.slane %v1207, 4
      %v1209 = vrot.slane %v244, 5
      %v1210 = vsel %vm1115, %v1208, %v1209
      %v1211 = vrot.slane %v1209, 4
      %v1212 = vrot.slane %v263, 5
      %v1213 = vsel %vm1115, %v1211, %v1212
      %v1214 = vrot.slane %v1079, 5
      %v1215 = vrot.slane %v1214, 4
      %v1216 = vrot.slane %v246, 5
      %v1217 = vsel %vm1115, %v1215, %v1216
      %v1218 = vrot.slane %v1216, 4
      %v1219 = vrot.slane %v264, 5
      %v1220 = vsel %vm1115, %v1218, %v1219
      %v1221 = vrot.slane %v1080, 5
      %v1222 = vrot.slane %v1221, 4
      %v1223 = vrot.slane %v248, 5
      %v1224 = vsel %vm1115, %v1222, %v1223
      %v1225 = vrot.slane %v1223, 4
      %v1226 = vrot.slane %v265, 5
      %v1227 = vsel %vm1115, %v1225, %v1226
      %s1228 = scalar_lea.vmem %s1, 8
      %v1229 = vld [vmem:[%s1228] sm:$0xf]
      %v1230 = vunpack.c.l.b16 %v1119
      %v1231 = vunpack.c.l.b16 %v1122
      %v1232 = vunpack.c.l.b16 %v1126
      %v1233 = vunpack.c.l.b16 %v1129
      %v1234 = vunpack.c.l.b16 %v1133
      %v1235 = vunpack.c.l.b16 %v1136
      %v1236 = vunpack.c.l.b16 %v1140
      %v1237 = vunpack.c.l.b16 %v1143
      %v1238 = vunpack.c.l.b16 %v1147
      %v1239 = vunpack.c.l.b16 %v1150
      %v1240 = vunpack.c.l.b16 %v1154
      %v1241 = vunpack.c.l.b16 %v1157
      %v1242 = vunpack.c.l.b16 %v1161
      %v1243 = vunpack.c.l.b16 %v1164
      %v1244 = vunpack.c.l.b16 %v1168
      %v1245 = vunpack.c.l.b16 %v1171
      %v1246 = vunpack.c.l.b16 %v1175
      %v1247 = vunpack.c.l.b16 %v1178
      %v1248 = vunpack.c.l.b16 %v1182
      %v1249 = vunpack.c.l.b16 %v1185
      %v1250 = vunpack.c.l.b16 %v1189
      %v1251 = vunpack.c.l.b16 %v1192
      %v1252 = vunpack.c.l.b16 %v1196
      %v1253 = vunpack.c.l.b16 %v1199
      %v1254 = vunpack.c.l.b16 %v1203
      %v1255 = vunpack.c.l.b16 %v1206
      %v1256 = vunpack.c.l.b16 %v1210
      %v1257 = vunpack.c.l.b16 %v1213
      %v1258 = vunpack.c.l.b16 %v1217
      %v1259 = vunpack.c.l.b16 %v1220
      %v1260 = vunpack.c.l.b16 %v1224
      %v1261 = vunpack.c.l.b16 %v1227
      %v1262 = vpack.c.b16 %v1231, %v1230
      %v1263 = vpack.c.b16 %v1233, %v1232
      %v1264 = vpack.c.b16 %v1235, %v1234
      %v1265 = vpack.c.b16 %v1237, %v1236
      %v1266 = vpack.c.b16 %v1239, %v1238
      %v1267 = vpack.c.b16 %v1241, %v1240
      %v1268 = vpack.c.b16 %v1243, %v1242
      %v1269 = vpack.c.b16 %v1245, %v1244
      %v1270 = vpack.c.b16 %v1247, %v1246
      %v1271 = vpack.c.b16 %v1249, %v1248
      %v1272 = vpack.c.b16 %v1251, %v1250
      %v1273 = vpack.c.b16 %v1253, %v1252
      %v1274 = vpack.c.b16 %v1255, %v1254
      %v1275 = vpack.c.b16 %v1257, %v1256
      %v1276 = vpack.c.b16 %v1259, %v1258
      %v1277 = vpack.c.b16 %v1261, %v1260
      %v1279 = vsel %vm703, %v1262, 0
      %v1282 = vsel %vm703, %v1263, 0
      %v1285 = vsel %vm703, %v1264, 0
      %v1288 = vsel %vm703, %v1265, 0
      %v1291 = vsel %vm703, %v1266, 0
      %v1294 = vsel %vm703, %v1267, 0
      %v1297 = vsel %vm703, %v1268, 0
      %v1300 = vsel %vm703, %v1269, 0
      %v1303 = vsel %vm703, %v1270, 0
      %v1306 = vsel %vm703, %v1271, 0
      %v1309 = vsel %vm703, %v1272, 0
      %v1312 = vsel %vm703, %v1273, 0
      %v1315 = vsel %vm703, %v1274, 0
      %v1318 = vsel %vm703, %v1275, 0
      %v1321 = vsel %vm703, %v1276, 0
      %v1324 = vsel %vm703, %v1277, 0
      %v1327 = vsel %vm752, %v1229, 0
      %1329 = vmatpush.bf16.msra.mxu0 0
      %1330 = vmatpush.bf16.msra.mxu0 0
      %1331 = vmatpush.bf16.msra.mxu0 0
      %1332 = vmatpush.bf16.msra.mxu0 0
      %1333 = vmatpush.bf16.msra.mxu0 0
      %1334 = vmatpush.bf16.msra.mxu0 0
      %1335 = vmatpush.bf16.msra.mxu0 0
      %1336 = vmatpush.bf16.msra.mxu0 %v1327
      %1337 = vmatmul.bf16.gmra.mxu0 %v1279
      %v1338 = vpop.f32.mrf.mxu0
      %v1339 = vadd.f32 0.0, %v1338
      %v1340 = vpop.f32.mrf.mxu0
      %v1341 = vadd.f32 0.0, %v1340
      %1342 = vmatmul.bf16.gmra.mxu0 %v1282
      %v1343 = vpop.f32.mrf.mxu0
      %v1344 = vadd.f32 0.0, %v1343
      %v1345 = vpop.f32.mrf.mxu0
      %v1346 = vadd.f32 0.0, %v1345
      %1347 = vmatmul.bf16.gmra.mxu0 %v1285
      %v1348 = vpop.f32.mrf.mxu0
      %v1349 = vadd.f32 0.0, %v1348
      %v1350 = vpop.f32.mrf.mxu0
      %v1351 = vadd.f32 0.0, %v1350
      %1352 = vmatmul.bf16.gmra.mxu0 %v1288
      %v1353 = vpop.f32.mrf.mxu0
      %v1354 = vadd.f32 0.0, %v1353
      %v1355 = vpop.f32.mrf.mxu0
      %v1356 = vadd.f32 0.0, %v1355
      %1357 = vmatmul.bf16.gmra.mxu0 %v1291
      %v1358 = vpop.f32.mrf.mxu0
      %v1359 = vadd.f32 0.0, %v1358
      %v1360 = vpop.f32.mrf.mxu0
      %v1361 = vadd.f32 0.0, %v1360
      %1362 = vmatmul.bf16.gmra.mxu0 %v1294
      %v1363 = vpop.f32.mrf.mxu0
      %v1364 = vadd.f32 0.0, %v1363
      %v1365 = vpop.f32.mrf.mxu0
      %v1366 = vadd.f32 0.0, %v1365
      %1367 = vmatmul.bf16.gmra.mxu0 %v1297
      %v1368 = vpop.f32.mrf.mxu0
      %v1369 = vadd.f32 0.0, %v1368
      %v1370 = vpop.f32.mrf.mxu0
      %v1371 = vadd.f32 0.0, %v1370
      %1372 = vmatmul.bf16.gmra.mxu0 %v1300
      %v1373 = vpop.f32.mrf.mxu0
      %v1374 = vadd.f32 0.0, %v1373
      %v1375 = vpop.f32.mrf.mxu0
      %v1376 = vadd.f32 0.0, %v1375
      %1377 = vmatmul.bf16.gmra.mxu0 %v1303
      %v1378 = vpop.f32.mrf.mxu0
      %v1379 = vadd.f32 0.0, %v1378
      %v1380 = vpop.f32.mrf.mxu0
      %v1381 = vadd.f32 0.0, %v1380
      %1382 = vmatmul.bf16.gmra.mxu0 %v1306
      %v1383 = vpop.f32.mrf.mxu0
      %v1384 = vadd.f32 0.0, %v1383
      %v1385 = vpop.f32.mrf.mxu0
      %v1386 = vadd.f32 0.0, %v1385
      %1387 = vmatmul.bf16.gmra.mxu0 %v1309
      %v1388 = vpop.f32.mrf.mxu0
      %v1389 = vadd.f32 0.0, %v1388
      %v1390 = vpop.f32.mrf.mxu0
      %v1391 = vadd.f32 0.0, %v1390
      %1392 = vmatmul.bf16.gmra.mxu0 %v1312
      %v1393 = vpop.f32.mrf.mxu0
      %v1394 = vadd.f32 0.0, %v1393
      %v1395 = vpop.f32.mrf.mxu0
      %v1396 = vadd.f32 0.0, %v1395
      %1397 = vmatmul.bf16.gmra.mxu0 %v1315
      %v1398 = vpop.f32.mrf.mxu0
      %v1399 = vadd.f32 0.0, %v1398
      %v1400 = vpop.f32.mrf.mxu0
      %v1401 = vadd.f32 0.0, %v1400
      %1402 = vmatmul.bf16.gmra.mxu0 %v1318
      %v1403 = vpop.f32.mrf.mxu0
      %v1404 = vadd.f32 0.0, %v1403
      %v1405 = vpop.f32.mrf.mxu0
      %v1406 = vadd.f32 0.0, %v1405
      %1407 = vmatmul.bf16.gmra.mxu0 %v1321
      %v1408 = vpop.f32.mrf.mxu0
      %v1409 = vadd.f32 0.0, %v1408
      %v1410 = vpop.f32.mrf.mxu0
      %v1411 = vadd.f32 0.0, %v1410
      %1412 = vmatmul.bf16.gmra.mxu0 %v1324
      %v1413 = vpop.f32.mrf.mxu0
      %v1414 = vadd.f32 0.0, %v1413
      %v1415 = vpop.f32.mrf.mxu0
      %v1416 = vadd.f32 0.0, %v1415
      %1417 = vdwg.mxu0
      %v1418 = vadd.f32 %v986, %v1339
      %v1419 = vadd.f32 %v988, %v1341
      %v1420 = vadd.f32 %v991, %v1344
      %v1421 = vadd.f32 %v993, %v1346
      %v1422 = vadd.f32 %v996, %v1349
      %v1423 = vadd.f32 %v998, %v1351
      %v1424 = vadd.f32 %v1001, %v1354
      %v1425 = vadd.f32 %v1003, %v1356
      %v1426 = vadd.f32 %v1006, %v1359
      %v1427 = vadd.f32 %v1008, %v1361
      %v1428 = vadd.f32 %v1011, %v1364
      %v1429 = vadd.f32 %v1013, %v1366
      %v1430 = vadd.f32 %v1016, %v1369
      %v1431 = vadd.f32 %v1018, %v1371
      %v1432 = vadd.f32 %v1021, %v1374
      %v1433 = vadd.f32 %v1023, %v1376
      %v1434 = vadd.f32 %v1026, %v1379
      %v1435 = vadd.f32 %v1028, %v1381
      %v1436 = vadd.f32 %v1031, %v1384
      %v1437 = vadd.f32 %v1033, %v1386
      %v1438 = vadd.f32 %v1036, %v1389
      %v1439 = vadd.f32 %v1038, %v1391
      %v1440 = vadd.f32 %v1041, %v1394
      %v1441 = vadd.f32 %v1043, %v1396
      %v1442 = vadd.f32 %v1046, %v1399
      %v1443 = vadd.f32 %v1048, %v1401
      %v1444 = vadd.f32 %v1051, %v1404
      %v1445 = vadd.f32 %v1053, %v1406
      %v1446 = vadd.f32 %v1056, %v1409
      %v1447 = vadd.f32 %v1058, %v1411
      %v1448 = vadd.f32 %v1061, %v1414
      %v1449 = vadd.f32 %v1063, %v1416
      %s1450 = scalar_lea.vmem %s203, 12
      %v1451 = vld [vmem:[%s1450] sm:$0xf]
      %v1452 = vld [vmem:[%s1450 + $0x4] sm:$0xf]
      %v1453 = vld [vmem:[%s1450 + $0xc] sm:$0xf]
      %v1454 = vld [vmem:[%s1450 + $0x10] sm:$0xf]
      %v1455 = vld [vmem:[%s1450 + $0x18] sm:$0xf]
      %v1456 = vld [vmem:[%s1450 + $0x1c] sm:$0xf]
      %v1457 = vld [vmem:[%s1450 + $0x24] sm:$0xf]
      %v1458 = vld [vmem:[%s1450 + $0x28] sm:$0xf]
      %v1459 = vld [vmem:[%s1450 + $0x30] sm:$0xf]
      %v1460 = vld [vmem:[%s1450 + $0x34] sm:$0xf]
      %v1461 = vld [vmem:[%s1450 + $0x3c] sm:$0xf]
      %v1462 = vld [vmem:[%s1450 + $0x40] sm:$0xf]
      %v1463 = vld [vmem:[%s1450 + $0x48] sm:$0xf]
      %v1464 = vld [vmem:[%s1450 + $0x4c] sm:$0xf]
      %v1465 = vld [vmem:[%s1450 + $0x54] sm:$0xf]
      %v1466 = vld [vmem:[%s1450 + $0x58] sm:$0xf]
      %v1467 = vld [vmem:[%s1450 + $0x60] sm:$0xf]
      %v1468 = vld [vmem:[%s1450 + $0x64] sm:$0xf]
      %v1469 = vld [vmem:[%s1450 + $0x6c] sm:$0xf]
      %v1470 = vld [vmem:[%s1450 + $0x70] sm:$0xf]
      %v1471 = vld [vmem:[%s1450 + $0x78] sm:$0xf]
      %v1472 = vld [vmem:[%s1450 + $0x7c] sm:$0xf]
      %v1473 = vld [vmem:[%s1450 + $0x84] sm:$0xf]
      %v1474 = vld [vmem:[%s1450 + $0x88] sm:$0xf]
      %v1475 = vld [vmem:[%s1450 + $0x90] sm:$0xf]
      %v1476 = vld [vmem:[%s1450 + $0x94] sm:$0xf]
      %v1477 = vld [vmem:[%s1450 + $0x9c] sm:$0xf]
      %v1478 = vld [vmem:[%s1450 + $0xa0] sm:$0xf]
      %v1479 = vld [vmem:[%s1450 + $0xa8] sm:$0xf]
      %v1480 = vld [vmem:[%s1450 + $0xac] sm:$0xf]
      %v1481 = vld [vmem:[%s1450 + $0xb4] sm:$0xf]
      %v1482 = vld [vmem:[%s1450 + $0xb8] sm:$0xf]
      %s1483 = scalar_lea.vmem %s1, 12
      %v1484 = vld [vmem:[%s1483] sm:$0xf]
      %v1517 = vunpack.c.l.b16 %v1451
      %v1518 = vunpack.c.l.b16 %v1452
      %v1519 = vunpack.c.l.b16 %v1453
      %v1520 = vunpack.c.l.b16 %v1454
      %v1521 = vunpack.c.l.b16 %v1455
      %v1522 = vunpack.c.l.b16 %v1456
      %v1523 = vunpack.c.l.b16 %v1457
      %v1524 = vunpack.c.l.b16 %v1458
      %v1525 = vunpack.c.l.b16 %v1459
      %v1526 = vunpack.c.l.b16 %v1460
      %v1527 = vunpack.c.l.b16 %v1461
      %v1528 = vunpack.c.l.b16 %v1462
      %v1529 = vunpack.c.l.b16 %v1463
      %v1530 = vunpack.c.l.b16 %v1464
      %v1531 = vunpack.c.l.b16 %v1465
      %v1532 = vunpack.c.l.b16 %v1466
      %v1533 = vunpack.c.l.b16 %v1467
      %v1534 = vunpack.c.l.b16 %v1468
      %v1535 = vunpack.c.l.b16 %v1469
      %v1536 = vunpack.c.l.b16 %v1470
      %v1537 = vunpack.c.l.b16 %v1471
      %v1538 = vunpack.c.l.b16 %v1472
      %v1539 = vunpack.c.l.b16 %v1473
      %v1540 = vunpack.c.l.b16 %v1474
      %v1541 = vunpack.c.l.b16 %v1475
      %v1542 = vunpack.c.l.b16 %v1476
      %v1543 = vunpack.c.l.b16 %v1477
      %v1544 = vunpack.c.l.b16 %v1478
      %v1545 = vunpack.c.l.b16 %v1479
      %v1546 = vunpack.c.l.b16 %v1480
      %v1547 = vunpack.c.l.b16 %v1481
      %v1548 = vunpack.c.l.b16 %v1482
      %v1549 = vpack.c.b16 %v1518, %v1517
      %v1550 = vpack.c.b16 %v1520, %v1519
      %v1551 = vpack.c.b16 %v1522, %v1521
      %v1552 = vpack.c.b16 %v1524, %v1523
      %v1553 = vpack.c.b16 %v1526, %v1525
      %v1554 = vpack.c.b16 %v1528, %v1527
      %v1555 = vpack.c.b16 %v1530, %v1529
      %v1556 = vpack.c.b16 %v1532, %v1531
      %v1557 = vpack.c.b16 %v1534, %v1533
      %v1558 = vpack.c.b16 %v1536, %v1535
      %v1559 = vpack.c.b16 %v1538, %v1537
      %v1560 = vpack.c.b16 %v1540, %v1539
      %v1561 = vpack.c.b16 %v1542, %v1541
      %v1562 = vpack.c.b16 %v1544, %v1543
      %v1563 = vpack.c.b16 %v1546, %v1545
      %v1564 = vpack.c.b16 %v1548, %v1547
      %v1566 = vsel %vm703, %v1549, 0
      %v1569 = vsel %vm703, %v1550, 0
      %v1572 = vsel %vm703, %v1551, 0
      %v1575 = vsel %vm703, %v1552, 0
      %v1578 = vsel %vm703, %v1553, 0
      %v1581 = vsel %vm703, %v1554, 0
      %v1584 = vsel %vm703, %v1555, 0
      %v1587 = vsel %vm703, %v1556, 0
      %v1590 = vsel %vm703, %v1557, 0
      %v1593 = vsel %vm703, %v1558, 0
      %v1596 = vsel %vm703, %v1559, 0
      %v1599 = vsel %vm703, %v1560, 0
      %v1602 = vsel %vm703, %v1561, 0
      %v1605 = vsel %vm703, %v1562, 0
      %v1608 = vsel %vm703, %v1563, 0
      %v1611 = vsel %vm703, %v1564, 0
      %v1614 = vsel %vm752, %v1484, 0
      %1616 = vmatpush.bf16.msra.mxu0 0
      %1617 = vmatpush.bf16.msra.mxu0 0
      %1618 = vmatpush.bf16.msra.mxu0 0
      %1619 = vmatpush.bf16.msra.mxu0 0
      %1620 = vmatpush.bf16.msra.mxu0 0
      %1621 = vmatpush.bf16.msra.mxu0 0
      %1622 = vmatpush.bf16.msra.mxu0 0
      %1623 = vmatpush.bf16.msra.mxu0 %v1614
      %1624 = vmatmul.bf16.gmra.mxu0 %v1566
      %v1625 = vpop.f32.mrf.mxu0
      %v1626 = vadd.f32 0.0, %v1625
      %v1627 = vpop.f32.mrf.mxu0
      %v1628 = vadd.f32 0.0, %v1627
      %1629 = vmatmul.bf16.gmra.mxu0 %v1569
      %v1630 = vpop.f32.mrf.mxu0
      %v1631 = vadd.f32 0.0, %v1630
      %v1632 = vpop.f32.mrf.mxu0
      %v1633 = vadd.f32 0.0, %v1632
      %1634 = vmatmul.bf16.gmra.mxu0 %v1572
      %v1635 = vpop.f32.mrf.mxu0
      %v1636 = vadd.f32 0.0, %v1635
      %v1637 = vpop.f32.mrf.mxu0
      %v1638 = vadd.f32 0.0, %v1637
      %1639 = vmatmul.bf16.gmra.mxu0 %v1575
      %v1640 = vpop.f32.mrf.mxu0
      %v1641 = vadd.f32 0.0, %v1640
      %v1642 = vpop.f32.mrf.mxu0
      %v1643 = vadd.f32 0.0, %v1642
      %1644 = vmatmul.bf16.gmra.mxu0 %v1578
      %v1645 = vpop.f32.mrf.mxu0
      %v1646 = vadd.f32 0.0, %v1645
      %v1647 = vpop.f32.mrf.mxu0
      %v1648 = vadd.f32 0.0, %v1647
      %1649 = vmatmul.bf16.gmra.mxu0 %v1581
      %v1650 = vpop.f32.mrf.mxu0
      %v1651 = vadd.f32 0.0, %v1650
      %v1652 = vpop.f32.mrf.mxu0
      %v1653 = vadd.f32 0.0, %v1652
      %1654 = vmatmul.bf16.gmra.mxu0 %v1584
      %v1655 = vpop.f32.mrf.mxu0
      %v1656 = vadd.f32 0.0, %v1655
      %v1657 = vpop.f32.mrf.mxu0
      %v1658 = vadd.f32 0.0, %v1657
      %1659 = vmatmul.bf16.gmra.mxu0 %v1587
      %v1660 = vpop.f32.mrf.mxu0
      %v1661 = vadd.f32 0.0, %v1660
      %v1662 = vpop.f32.mrf.mxu0
      %v1663 = vadd.f32 0.0, %v1662
      %1664 = vmatmul.bf16.gmra.mxu0 %v1590
      %v1665 = vpop.f32.mrf.mxu0
      %v1666 = vadd.f32 0.0, %v1665
      %v1667 = vpop.f32.mrf.mxu0
      %v1668 = vadd.f32 0.0, %v1667
      %1669 = vmatmul.bf16.gmra.mxu0 %v1593
      %v1670 = vpop.f32.mrf.mxu0
      %v1671 = vadd.f32 0.0, %v1670
      %v1672 = vpop.f32.mrf.mxu0
      %v1673 = vadd.f32 0.0, %v1672
      %1674 = vmatmul.bf16.gmra.mxu0 %v1596
      %v1675 = vpop.f32.mrf.mxu0
      %v1676 = vadd.f32 0.0, %v1675
      %v1677 = vpop.f32.mrf.mxu0
      %v1678 = vadd.f32 0.0, %v1677
      %1679 = vmatmul.bf16.gmra.mxu0 %v1599
      %v1680 = vpop.f32.mrf.mxu0
      %v1681 = vadd.f32 0.0, %v1680
      %v1682 = vpop.f32.mrf.mxu0
      %v1683 = vadd.f32 0.0, %v1682
      %1684 = vmatmul.bf16.gmra.mxu0 %v1602
      %v1685 = vpop.f32.mrf.mxu0
      %v1686 = vadd.f32 0.0, %v1685
      %v1687 = vpop.f32.mrf.mxu0
      %v1688 = vadd.f32 0.0, %v1687
      %1689 = vmatmul.bf16.gmra.mxu0 %v1605
      %v1690 = vpop.f32.mrf.mxu0
      %v1691 = vadd.f32 0.0, %v1690
      %v1692 = vpop.f32.mrf.mxu0
      %v1693 = vadd.f32 0.0, %v1692
      %1694 = vmatmul.bf16.gmra.mxu0 %v1608
      %v1695 = vpop.f32.mrf.mxu0
      %v1696 = vadd.f32 0.0, %v1695
      %v1697 = vpop.f32.mrf.mxu0
      %v1698 = vadd.f32 0.0, %v1697
      %1699 = vmatmul.bf16.gmra.mxu0 %v1611
      %v1700 = vpop.f32.mrf.mxu0
      %v1701 = vadd.f32 0.0, %v1700
      %v1702 = vpop.f32.mrf.mxu0
      %v1703 = vadd.f32 0.0, %v1702
      %1704 = vdwg.mxu0
      %v1705 = vadd.f32 %v1418, %v1626
      %v1706 = vadd.f32 %v1419, %v1628
      %v1707 = vadd.f32 %v1420, %v1631
      %v1708 = vadd.f32 %v1421, %v1633
      %v1709 = vadd.f32 %v1422, %v1636
      %v1710 = vadd.f32 %v1423, %v1638
      %v1711 = vadd.f32 %v1424, %v1641
      %v1712 = vadd.f32 %v1425, %v1643
      %v1713 = vadd.f32 %v1426, %v1646
      %v1714 = vadd.f32 %v1427, %v1648
      %v1715 = vadd.f32 %v1428, %v1651
      %v1716 = vadd.f32 %v1429, %v1653
      %v1717 = vadd.f32 %v1430, %v1656
      %v1718 = vadd.f32 %v1431, %v1658
      %v1719 = vadd.f32 %v1432, %v1661
      %v1720 = vadd.f32 %v1433, %v1663
      %v1721 = vadd.f32 %v1434, %v1666
      %v1722 = vadd.f32 %v1435, %v1668
      %v1723 = vadd.f32 %v1436, %v1671
      %v1724 = vadd.f32 %v1437, %v1673
      %v1725 = vadd.f32 %v1438, %v1676
      %v1726 = vadd.f32 %v1439, %v1678
      %v1727 = vadd.f32 %v1440, %v1681
      %v1728 = vadd.f32 %v1441, %v1683
      %v1729 = vadd.f32 %v1442, %v1686
      %v1730 = vadd.f32 %v1443, %v1688
      %v1731 = vadd.f32 %v1444, %v1691
      %v1732 = vadd.f32 %v1445, %v1693
      %v1733 = vadd.f32 %v1446, %v1696
      %v1734 = vadd.f32 %v1447, %v1698
      %v1735 = vadd.f32 %v1448, %v1701
      %v1736 = vadd.f32 %v1449, %v1703
      %v1737 = vld [vmem:[%s1450] sm:$0xf]
      %v1738 = vld [vmem:[%s1450 + $0x4] sm:$0xf]
      %v1739 = vld [vmem:[%s1450 + $0x8] sm:$0x1]
      %v1740 = vld [vmem:[%s1450 + $0xc] sm:$0xf]
      %v1741 = vld [vmem:[%s1450 + $0x10] sm:$0xf]
      %v1742 = vld [vmem:[%s1450 + $0x14] sm:$0x1]
      %v1743 = vld [vmem:[%s1450 + $0x18] sm:$0xf]
      %v1744 = vld [vmem:[%s1450 + $0x1c] sm:$0xf]
      %v1745 = vld [vmem:[%s1450 + $0x20] sm:$0x1]
      %v1746 = vld [vmem:[%s1450 + $0x24] sm:$0xf]
      %v1747 = vld [vmem:[%s1450 + $0x28] sm:$0xf]
      %v1748 = vld [vmem:[%s1450 + $0x2c] sm:$0x1]
      %v1749 = vld [vmem:[%s1450 + $0x30] sm:$0xf]
      %v1750 = vld [vmem:[%s1450 + $0x34] sm:$0xf]
      %v1751 = vld [vmem:[%s1450 + $0x38] sm:$0x1]
      %v1752 = vld [vmem:[%s1450 + $0x3c] sm:$0xf]
      %v1753 = vld [vmem:[%s1450 + $0x40] sm:$0xf]
      %v1754 = vld [vmem:[%s1450 + $0x44] sm:$0x1]
      %v1755 = vld [vmem:[%s1450 + $0x48] sm:$0xf]
      %v1756 = vld [vmem:[%s1450 + $0x4c] sm:$0xf]
      %v1757 = vld [vmem:[%s1450 + $0x50] sm:$0x1]
      %v1758 = vld [vmem:[%s1450 + $0x54] sm:$0xf]
      %v1759 = vld [vmem:[%s1450 + $0x58] sm:$0xf]
      %v1760 = vld [vmem:[%s1450 + $0x5c] sm:$0x1]
      %v1761 = vld [vmem:[%s1450 + $0x60] sm:$0xf]
      %v1762 = vld [vmem:[%s1450 + $0x64] sm:$0xf]
      %v1763 = vld [vmem:[%s1450 + $0x68] sm:$0x1]
      %v1764 = vld [vmem:[%s1450 + $0x6c] sm:$0xf]
      %v1765 = vld [vmem:[%s1450 + $0x70] sm:$0xf]
      %v1766 = vld [vmem:[%s1450 + $0x74] sm:$0x1]
      %v1767 = vld [vmem:[%s1450 + $0x78] sm:$0xf]
      %v1768 = vld [vmem:[%s1450 + $0x7c] sm:$0xf]
      %v1769 = vld [vmem:[%s1450 + $0x80] sm:$0x1]
      %v1770 = vld [vmem:[%s1450 + $0x84] sm:$0xf]
      %v1771 = vld [vmem:[%s1450 + $0x88] sm:$0xf]
      %v1772 = vld [vmem:[%s1450 + $0x8c] sm:$0x1]
      %v1773 = vld [vmem:[%s1450 + $0x90] sm:$0xf]
      %v1774 = vld [vmem:[%s1450 + $0x94] sm:$0xf]
      %v1775 = vld [vmem:[%s1450 + $0x98] sm:$0x1]
      %v1776 = vld [vmem:[%s1450 + $0x9c] sm:$0xf]
      %v1777 = vld [vmem:[%s1450 + $0xa0] sm:$0xf]
      %v1778 = vld [vmem:[%s1450 + $0xa4] sm:$0x1]
      %v1779 = vld [vmem:[%s1450 + $0xa8] sm:$0xf]
      %v1780 = vld [vmem:[%s1450 + $0xac] sm:$0xf]
      %v1781 = vld [vmem:[%s1450 + $0xb0] sm:$0x1]
      %v1782 = vld [vmem:[%s1450 + $0xb4] sm:$0xf]
      %v1783 = vld [vmem:[%s1450 + $0xb8] sm:$0xf]
      %v1784 = vld [vmem:[%s1450 + $0xbc] sm:$0x1]
      %v1786 = vshrl.u32 %v1737, 16
      %v1788 = vrot.slane %v1786, 4
      %v1789 = vshll.u32 %v1737, 16
      %v1791 = vrot.slane %v1789, 5
      %v1792 = vor.u32 %v1788, %v1791
      %v1793 = vrot.slane %v1792, 4
      %v1795 = vshll.u32 %v1738, 16
      %v1797 = vrot.slane %v1795, 5
      %v1798 = vsel %vm268, %v1793, %v1797
      %v1799 = vshrl.u32 %v1738, 16
      %v1801 = vrot.slane %v1799, 4
      %v1802 = vor.u32 %v1801, %v1797
      %v1803 = vrot.slane %v1802, 4
      %v1805 = vshll.u32 %v1739, 16
      %v1807 = vrot.slane %v1805, 5
      %v1808 = vsel %vm268, %v1803, %v1807
      %v1810 = vshrl.u32 %v1740, 16
      %v1812 = vrot.slane %v1810, 4
      %v1813 = vshll.u32 %v1740, 16
      %v1815 = vrot.slane %v1813, 5
      %v1816 = vor.u32 %v1812, %v1815
      %v1817 = vrot.slane %v1816, 4
      %v1819 = vshll.u32 %v1741, 16
      %v1821 = vrot.slane %v1819, 5
      %v1822 = vsel %vm268, %v1817, %v1821
      %v1823 = vshrl.u32 %v1741, 16
      %v1825 = vrot.slane %v1823, 4
      %v1826 = vor.u32 %v1825, %v1821
      %v1827 = vrot.slane %v1826, 4
      %v1829 = vshll.u32 %v1742, 16
      %v1831 = vrot.slane %v1829, 5
      %v1832 = vsel %vm268, %v1827, %v1831
      %v1834 = vshrl.u32 %v1743, 16
      %v1836 = vrot.slane %v1834, 4
      %v1837 = vshll.u32 %v1743, 16
      %v1839 = vrot.slane %v1837, 5
      %v1840 = vor.u32 %v1836, %v1839
      %v1841 = vrot.slane %v1840, 4
      %v1843 = vshll.u32 %v1744, 16
      %v1845 = vrot.slane %v1843, 5
      %v1846 = vsel %vm268, %v1841, %v1845
      %v1847 = vshrl.u32 %v1744, 16
      %v1849 = vrot.slane %v1847, 4
      %v1850 = vor.u32 %v1849, %v1845
      %v1851 = vrot.slane %v1850, 4
      %v1853 = vshll.u32 %v1745, 16
      %v1855 = vrot.slane %v1853, 5
      %v1856 = vsel %vm268, %v1851, %v1855
      %v1858 = vshrl.u32 %v1746, 16
      %v1860 = vrot.slane %v1858, 4
      %v1861 = vshll.u32 %v1746, 16
      %v1863 = vrot.slane %v1861, 5
      %v1864 = vor.u32 %v1860, %v1863
      %v1865 = vrot.slane %v1864, 4
      %v1867 = vshll.u32 %v1747, 16
      %v1869 = vrot.slane %v1867, 5
      %v1870 = vsel %vm268, %v1865, %v1869
      %v1871 = vshrl.u32 %v1747, 16
      %v1873 = vrot.slane %v1871, 4
      %v1874 = vor.u32 %v1873, %v1869
      %v1875 = vrot.slane %v1874, 4
      %v1877 = vshll.u32 %v1748, 16
      %v1879 = vrot.slane %v1877, 5
      %v1880 = vsel %vm268, %v1875, %v1879
      %v1882 = vshrl.u32 %v1749, 16
      %v1884 = vrot.slane %v1882, 4
      %v1885 = vshll.u32 %v1749, 16
      %v1887 = vrot.slane %v1885, 5
      %v1888 = vor.u32 %v1884, %v1887
      %v1889 = vrot.slane %v1888, 4
      %v1891 = vshll.u32 %v1750, 16
      %v1893 = vrot.slane %v1891, 5
      %v1894 = vsel %vm268, %v1889, %v1893
      %v1895 = vshrl.u32 %v1750, 16
      %v1897 = vrot.slane %v1895, 4
      %v1898 = vor.u32 %v1897, %v1893
      %v1899 = vrot.slane %v1898, 4
      %v1901 = vshll.u32 %v1751, 16
      %v1903 = vrot.slane %v1901, 5
      %v1904 = vsel %vm268, %v1899, %v1903
      %v1906 = vshrl.u32 %v1752, 16
      %v1908 = vrot.slane %v1906, 4
      %v1909 = vshll.u32 %v1752, 16
      %v1911 = vrot.slane %v1909, 5
      %v1912 = vor.u32 %v1908, %v1911
      %v1913 = vrot.slane %v1912, 4
      %v1915 = vshll.u32 %v1753, 16
      %v1917 = vrot.slane %v1915, 5
      %v1918 = vsel %vm268, %v1913, %v1917
      %v1919 = vshrl.u32 %v1753, 16
      %v1921 = vrot.slane %v1919, 4
      %v1922 = vor.u32 %v1921, %v1917
      %v1923 = vrot.slane %v1922, 4
      %v1925 = vshll.u32 %v1754, 16
      %v1927 = vrot.slane %v1925, 5
      %v1928 = vsel %vm268, %v1923, %v1927
      %v1930 = vshrl.u32 %v1755, 16
      %v1932 = vrot.slane %v1930, 4
      %v1933 = vshll.u32 %v1755, 16
      %v1935 = vrot.slane %v1933, 5
      %v1936 = vor.u32 %v1932, %v1935
      %v1937 = vrot.slane %v1936, 4
      %v1939 = vshll.u32 %v1756, 16
      %v1941 = vrot.slane %v1939, 5
      %v1942 = vsel %vm268, %v1937, %v1941
      %v1943 = vshrl.u32 %v1756, 16
      %v1945 = vrot.slane %v1943, 4
      %v1946 = vor.u32 %v1945, %v1941
      %v1947 = vrot.slane %v1946, 4
      %v1949 = vshll.u32 %v1757, 16
      %v1951 = vrot.slane %v1949, 5
      %v1952 = vsel %vm268, %v1947, %v1951
      %v1954 = vshrl.u32 %v1758, 16
      %v1956 = vrot.slane %v1954, 4
      %v1957 = vshll.u32 %v1758, 16
      %v1959 = vrot.slane %v1957, 5
      %v1960 = vor.u32 %v1956, %v1959
      %v1961 = vrot.slane %v1960, 4
      %v1963 = vshll.u32 %v1759, 16
      %v1965 = vrot.slane %v1963, 5
      %v1966 = vsel %vm268, %v1961, %v1965
      %v1967 = vshrl.u32 %v1759, 16
      %v1969 = vrot.slane %v1967, 4
      %v1970 = vor.u32 %v1969, %v1965
      %v1971 = vrot.slane %v1970, 4
      %v1973 = vshll.u32 %v1760, 16
      %v1975 = vrot.slane %v1973, 5
      %v1976 = vsel %vm268, %v1971, %v1975
      %v1978 = vshrl.u32 %v1761, 16
      %v1980 = vrot.slane %v1978, 4
      %v1981 = vshll.u32 %v1761, 16
      %v1983 = vrot.slane %v1981, 5
      %v1984 = vor.u32 %v1980, %v1983
      %v1985 = vrot.slane %v1984, 4
      %v1987 = vshll.u32 %v1762, 16
      %v1989 = vrot.slane %v1987, 5
      %v1990 = vsel %vm268, %v1985, %v1989
      %v1991 = vshrl.u32 %v1762, 16
      %v1993 = vrot.slane %v1991, 4
      %v1994 = vor.u32 %v1993, %v1989
      %v1995 = vrot.slane %v1994, 4
      %v1997 = vshll.u32 %v1763, 16
      %v1999 = vrot.slane %v1997, 5
      %v2000 = vsel %vm268, %v1995, %v1999
      %v2002 = vshrl.u32 %v1764, 16
      %v2004 = vrot.slane %v2002, 4
      %v2005 = vshll.u32 %v1764, 16
      %v2007 = vrot.slane %v2005, 5
      %v2008 = vor.u32 %v2004, %v2007
      %v2009 = vrot.slane %v2008, 4
      %v2011 = vshll.u32 %v1765, 16
      %v2013 = vrot.slane %v2011, 5
      %v2014 = vsel %vm268, %v2009, %v2013
      %v2015 = vshrl.u32 %v1765, 16
      %v2017 = vrot.slane %v2015, 4
      %v2018 = vor.u32 %v2017, %v2013
      %v2019 = vrot.slane %v2018, 4
      %v2021 = vshll.u32 %v1766, 16
      %v2023 = vrot.slane %v2021, 5
      %v2024 = vsel %vm268, %v2019, %v2023
      %v2026 = vshrl.u32 %v1767, 16
      %v2028 = vrot.slane %v2026, 4
      %v2029 = vshll.u32 %v1767, 16
      %v2031 = vrot.slane %v2029, 5
      %v2032 = vor.u32 %v2028, %v2031
      %v2033 = vrot.slane %v2032, 4
      %v2035 = vshll.u32 %v1768, 16
      %v2037 = vrot.slane %v2035, 5
      %v2038 = vsel %vm268, %v2033, %v2037
      %v2039 = vshrl.u32 %v1768, 16
      %v2041 = vrot.slane %v2039, 4
      %v2042 = vor.u32 %v2041, %v2037
      %v2043 = vrot.slane %v2042, 4
      %v2045 = vshll.u32 %v1769, 16
      %v2047 = vrot.slane %v2045, 5
      %v2048 = vsel %vm268, %v2043, %v2047
      %v2050 = vshrl.u32 %v1770, 16
      %v2052 = vrot.slane %v2050, 4
      %v2053 = vshll.u32 %v1770, 16
      %v2055 = vrot.slane %v2053, 5
      %v2056 = vor.u32 %v2052, %v2055
      %v2057 = vrot.slane %v2056, 4
      %v2059 = vshll.u32 %v1771, 16
      %v2061 = vrot.slane %v2059, 5
      %v2062 = vsel %vm268, %v2057, %v2061
      %v2063 = vshrl.u32 %v1771, 16
      %v2065 = vrot.slane %v2063, 4
      %v2066 = vor.u32 %v2065, %v2061
      %v2067 = vrot.slane %v2066, 4
      %v2069 = vshll.u32 %v1772, 16
      %v2071 = vrot.slane %v2069, 5
      %v2072 = vsel %vm268, %v2067, %v2071
      %v2074 = vshrl.u32 %v1773, 16
      %v2076 = vrot.slane %v2074, 4
      %v2077 = vshll.u32 %v1773, 16
      %v2079 = vrot.slane %v2077, 5
      %v2080 = vor.u32 %v2076, %v2079
      %v2081 = vrot.slane %v2080, 4
      %v2083 = vshll.u32 %v1774, 16
      %v2085 = vrot.slane %v2083, 5
      %v2086 = vsel %vm268, %v2081, %v2085
      %v2087 = vshrl.u32 %v1774, 16
      %v2089 = vrot.slane %v2087, 4
      %v2090 = vor.u32 %v2089, %v2085
      %v2091 = vrot.slane %v2090, 4
      %v2093 = vshll.u32 %v1775, 16
      %v2095 = vrot.slane %v2093, 5
      %v2096 = vsel %vm268, %v2091, %v2095
      %v2098 = vshrl.u32 %v1776, 16
      %v2100 = vrot.slane %v2098, 4
      %v2101 = vshll.u32 %v1776, 16
      %v2103 = vrot.slane %v2101, 5
      %v2104 = vor.u32 %v2100, %v2103
      %v2105 = vrot.slane %v2104, 4
      %v2107 = vshll.u32 %v1777, 16
      %v2109 = vrot.slane %v2107, 5
      %v2110 = vsel %vm268, %v2105, %v2109
      %v2111 = vshrl.u32 %v1777, 16
      %v2113 = vrot.slane %v2111, 4
      %v2114 = vor.u32 %v2113, %v2109
      %v2115 = vrot.slane %v2114, 4
      %v2117 = vshll.u32 %v1778, 16
      %v2119 = vrot.slane %v2117, 5
      %v2120 = vsel %vm268, %v2115, %v2119
      %v2122 = vshrl.u32 %v1779, 16
      %v2124 = vrot.slane %v2122, 4
      %v2125 = vshll.u32 %v1779, 16
      %v2127 = vrot.slane %v2125, 5
      %v2128 = vor.u32 %v2124, %v2127
      %v2129 = vrot.slane %v2128, 4
      %v2131 = vshll.u32 %v1780, 16
      %v2133 = vrot.slane %v2131, 5
      %v2134 = vsel %vm268, %v2129, %v2133
      %v2135 = vshrl.u32 %v1780, 16
      %v2137 = vrot.slane %v2135, 4
      %v2138 = vor.u32 %v2137, %v2133
      %v2139 = vrot.slane %v2138, 4
      %v2141 = vshll.u32 %v1781, 16
      %v2143 = vrot.slane %v2141, 5
      %v2144 = vsel %vm268, %v2139, %v2143
      %v2146 = vshrl.u32 %v1782, 16
      %v2148 = vrot.slane %v2146, 4
      %v2149 = vshll.u32 %v1782, 16
      %v2151 = vrot.slane %v2149, 5
      %v2152 = vor.u32 %v2148, %v2151
      %v2153 = vrot.slane %v2152, 4
      %v2155 = vshll.u32 %v1783, 16
      %v2157 = vrot.slane %v2155, 5
      %v2158 = vsel %vm268, %v2153, %v2157
      %v2159 = vshrl.u32 %v1783, 16
      %v2161 = vrot.slane %v2159, 4
      %v2162 = vor.u32 %v2161, %v2157
      %v2163 = vrot.slane %v2162, 4
      %v2165 = vshll.u32 %v1784, 16
      %v2167 = vrot.slane %v2165, 5
      %v2168 = vsel %vm268, %v2163, %v2167
      %s2169 = scalar_lea.vmem %s1, 16
      %v2170 = vld [vmem:[%s2169] sm:$0xf]
      %v2171 = vunpack.c.l.b16 %v1798
      %v2172 = vunpack.c.l.b16 %v1808
      %v2173 = vunpack.c.l.b16 %v1822
      %v2174 = vunpack.c.l.b16 %v1832
      %v2175 = vunpack.c.l.b16 %v1846
      %v2176 = vunpack.c.l.b16 %v1856
      %v2177 = vunpack.c.l.b16 %v1870
      %v2178 = vunpack.c.l.b16 %v1880
      %v2179 = vunpack.c.l.b16 %v1894
      %v2180 = vunpack.c.l.b16 %v1904
      %v2181 = vunpack.c.l.b16 %v1918
      %v2182 = vunpack.c.l.b16 %v1928
      %v2183 = vunpack.c.l.b16 %v1942
      %v2184 = vunpack.c.l.b16 %v1952
      %v2185 = vunpack.c.l.b16 %v1966
      %v2186 = vunpack.c.l.b16 %v1976
      %v2187 = vunpack.c.l.b16 %v1990
      %v2188 = vunpack.c.l.b16 %v2000
      %v2189 = vunpack.c.l.b16 %v2014
      %v2190 = vunpack.c.l.b16 %v2024
      %v2191 = vunpack.c.l.b16 %v2038
      %v2192 = vunpack.c.l.b16 %v2048
      %v2193 = vunpack.c.l.b16 %v2062
      %v2194 = vunpack.c.l.b16 %v2072
      %v2195 = vunpack.c.l.b16 %v2086
      %v2196 = vunpack.c.l.b16 %v2096
      %v2197 = vunpack.c.l.b16 %v2110
      %v2198 = vunpack.c.l.b16 %v2120
      %v2199 = vunpack.c.l.b16 %v2134
      %v2200 = vunpack.c.l.b16 %v2144
      %v2201 = vunpack.c.l.b16 %v2158
      %v2202 = vunpack.c.l.b16 %v2168
      %v2203 = vpack.c.b16 %v2172, %v2171
      %v2204 = vpack.c.b16 %v2174, %v2173
      %v2205 = vpack.c.b16 %v2176, %v2175
      %v2206 = vpack.c.b16 %v2178, %v2177
      %v2207 = vpack.c.b16 %v2180, %v2179
      %v2208 = vpack.c.b16 %v2182, %v2181
      %v2209 = vpack.c.b16 %v2184, %v2183
      %v2210 = vpack.c.b16 %v2186, %v2185
      %v2211 = vpack.c.b16 %v2188, %v2187
      %v2212 = vpack.c.b16 %v2190, %v2189
      %v2213 = vpack.c.b16 %v2192, %v2191
      %v2214 = vpack.c.b16 %v2194, %v2193
      %v2215 = vpack.c.b16 %v2196, %v2195
      %v2216 = vpack.c.b16 %v2198, %v2197
      %v2217 = vpack.c.b16 %v2200, %v2199
      %v2218 = vpack.c.b16 %v2202, %v2201
      %v2220 = vsel %vm703, %v2203, 0
      %v2223 = vsel %vm703, %v2204, 0
      %v2226 = vsel %vm703, %v2205, 0
      %v2229 = vsel %vm703, %v2206, 0
      %v2232 = vsel %vm703, %v2207, 0
      %v2235 = vsel %vm703, %v2208, 0
      %v2238 = vsel %vm703, %v2209, 0
      %v2241 = vsel %vm703, %v2210, 0
      %v2244 = vsel %vm703, %v2211, 0
      %v2247 = vsel %vm703, %v2212, 0
      %v2250 = vsel %vm703, %v2213, 0
      %v2253 = vsel %vm703, %v2214, 0
      %v2256 = vsel %vm703, %v2215, 0
      %v2259 = vsel %vm703, %v2216, 0
      %v2262 = vsel %vm703, %v2217, 0
      %v2265 = vsel %vm703, %v2218, 0
      %v2268 = vsel %vm752, %v2170, 0
      %2270 = vmatpush.bf16.msra.mxu0 0
      %2271 = vmatpush.bf16.msra.mxu0 0
      %2272 = vmatpush.bf16.msra.mxu0 0
      %2273 = vmatpush.bf16.msra.mxu0 0
      %2274 = vmatpush.bf16.msra.mxu0 0
      %2275 = vmatpush.bf16.msra.mxu0 0
      %2276 = vmatpush.bf16.msra.mxu0 0
      %2277 = vmatpush.bf16.msra.mxu0 %v2268
      %2278 = vmatmul.bf16.gmra.mxu0 %v2220
      %v2279 = vpop.f32.mrf.mxu0
      %v2280 = vadd.f32 0.0, %v2279
      %v2281 = vpop.f32.mrf.mxu0
      %v2282 = vadd.f32 0.0, %v2281
      %2283 = vmatmul.bf16.gmra.mxu0 %v2223
      %v2284 = vpop.f32.mrf.mxu0
      %v2285 = vadd.f32 0.0, %v2284
      %v2286 = vpop.f32.mrf.mxu0
      %v2287 = vadd.f32 0.0, %v2286
      %2288 = vmatmul.bf16.gmra.mxu0 %v2226
      %v2289 = vpop.f32.mrf.mxu0
      %v2290 = vadd.f32 0.0, %v2289
      %v2291 = vpop.f32.mrf.mxu0
      %v2292 = vadd.f32 0.0, %v2291
      %2293 = vmatmul.bf16.gmra.mxu0 %v2229
      %v2294 = vpop.f32.mrf.mxu0
      %v2295 = vadd.f32 0.0, %v2294
      %v2296 = vpop.f32.mrf.mxu0
      %v2297 = vadd.f32 0.0, %v2296
      %2298 = vmatmul.bf16.gmra.mxu0 %v2232
      %v2299 = vpop.f32.mrf.mxu0
      %v2300 = vadd.f32 0.0, %v2299
      %v2301 = vpop.f32.mrf.mxu0
      %v2302 = vadd.f32 0.0, %v2301
      %2303 = vmatmul.bf16.gmra.mxu0 %v2235
      %v2304 = vpop.f32.mrf.mxu0
      %v2305 = vadd.f32 0.0, %v2304
      %v2306 = vpop.f32.mrf.mxu0
      %v2307 = vadd.f32 0.0, %v2306
      %2308 = vmatmul.bf16.gmra.mxu0 %v2238
      %v2309 = vpop.f32.mrf.mxu0
      %v2310 = vadd.f32 0.0, %v2309
      %v2311 = vpop.f32.mrf.mxu0
      %v2312 = vadd.f32 0.0, %v2311
      %2313 = vmatmul.bf16.gmra.mxu0 %v2241
      %v2314 = vpop.f32.mrf.mxu0
      %v2315 = vadd.f32 0.0, %v2314
      %v2316 = vpop.f32.mrf.mxu0
      %v2317 = vadd.f32 0.0, %v2316
      %2318 = vmatmul.bf16.gmra.mxu0 %v2244
      %v2319 = vpop.f32.mrf.mxu0
      %v2320 = vadd.f32 0.0, %v2319
      %v2321 = vpop.f32.mrf.mxu0
      %v2322 = vadd.f32 0.0, %v2321
      %2323 = vmatmul.bf16.gmra.mxu0 %v2247
      %v2324 = vpop.f32.mrf.mxu0
      %v2325 = vadd.f32 0.0, %v2324
      %v2326 = vpop.f32.mrf.mxu0
      %v2327 = vadd.f32 0.0, %v2326
      %2328 = vmatmul.bf16.gmra.mxu0 %v2250
      %v2329 = vpop.f32.mrf.mxu0
      %v2330 = vadd.f32 0.0, %v2329
      %v2331 = vpop.f32.mrf.mxu0
      %v2332 = vadd.f32 0.0, %v2331
      %2333 = vmatmul.bf16.gmra.mxu0 %v2253
      %v2334 = vpop.f32.mrf.mxu0
      %v2335 = vadd.f32 0.0, %v2334
      %v2336 = vpop.f32.mrf.mxu0
      %v2337 = vadd.f32 0.0, %v2336
      %2338 = vmatmul.bf16.gmra.mxu0 %v2256
      %v2339 = vpop.f32.mrf.mxu0
      %v2340 = vadd.f32 0.0, %v2339
      %v2341 = vpop.f32.mrf.mxu0
      %v2342 = vadd.f32 0.0, %v2341
      %2343 = vmatmul.bf16.gmra.mxu0 %v2259
      %v2344 = vpop.f32.mrf.mxu0
      %v2345 = vadd.f32 0.0, %v2344
      %v2346 = vpop.f32.mrf.mxu0
      %v2347 = vadd.f32 0.0, %v2346
      %2348 = vmatmul.bf16.gmra.mxu0 %v2262
      %v2349 = vpop.f32.mrf.mxu0
      %v2350 = vadd.f32 0.0, %v2349
      %v2351 = vpop.f32.mrf.mxu0
      %v2352 = vadd.f32 0.0, %v2351
      %2353 = vmatmul.bf16.gmra.mxu0 %v2265
      %v2354 = vpop.f32.mrf.mxu0
      %v2355 = vadd.f32 0.0, %v2354
      %v2356 = vpop.f32.mrf.mxu0
      %v2357 = vadd.f32 0.0, %v2356
      %2358 = vdwg.mxu0
      %v2359 = vadd.f32 %v1705, %v2280
      %v2360 = vadd.f32 %v1706, %v2282
      %v2361 = vadd.f32 %v1707, %v2285
      %v2362 = vadd.f32 %v1708, %v2287
      %v2363 = vadd.f32 %v1709, %v2290
      %v2364 = vadd.f32 %v1710, %v2292
      %v2365 = vadd.f32 %v1711, %v2295
      %v2366 = vadd.f32 %v1712, %v2297
      %v2367 = vadd.f32 %v1713, %v2300
      %v2368 = vadd.f32 %v1714, %v2302
      %v2369 = vadd.f32 %v1715, %v2305
      %v2370 = vadd.f32 %v1716, %v2307
      %v2371 = vadd.f32 %v1717, %v2310
      %v2372 = vadd.f32 %v1718, %v2312
      %v2373 = vadd.f32 %v1719, %v2315
      %v2374 = vadd.f32 %v1720, %v2317
      %v2375 = vadd.f32 %v1721, %v2320
      %v2376 = vadd.f32 %v1722, %v2322
      %v2377 = vadd.f32 %v1723, %v2325
      %v2378 = vadd.f32 %v1724, %v2327
      %v2379 = vadd.f32 %v1725, %v2330
      %v2380 = vadd.f32 %v1726, %v2332
      %v2381 = vadd.f32 %v1727, %v2335
      %v2382 = vadd.f32 %v1728, %v2337
      %v2383 = vadd.f32 %v1729, %v2340
      %v2384 = vadd.f32 %v1730, %v2342
      %v2385 = vadd.f32 %v1731, %v2345
      %v2386 = vadd.f32 %v1732, %v2347
      %v2387 = vadd.f32 %v1733, %v2350
      %v2388 = vadd.f32 %v1734, %v2352
      %v2389 = vadd.f32 %v1735, %v2355
      %v2390 = vadd.f32 %v1736, %v2357
      %v2391 = vld [vmem:[%s1450] sm:$0xe]
      %v2392 = vld [vmem:[%s1450 + $0xc] sm:$0xe]
      %v2393 = vld [vmem:[%s1450 + $0x18] sm:$0xe]
      %v2394 = vld [vmem:[%s1450 + $0x24] sm:$0xe]
      %v2395 = vld [vmem:[%s1450 + $0x30] sm:$0xe]
      %v2396 = vld [vmem:[%s1450 + $0x3c] sm:$0xe]
      %v2397 = vld [vmem:[%s1450 + $0x48] sm:$0xe]
      %v2398 = vld [vmem:[%s1450 + $0x54] sm:$0xe]
      %v2399 = vld [vmem:[%s1450 + $0x60] sm:$0xe]
      %v2400 = vld [vmem:[%s1450 + $0x6c] sm:$0xe]
      %v2401 = vld [vmem:[%s1450 + $0x78] sm:$0xe]
      %v2402 = vld [vmem:[%s1450 + $0x84] sm:$0xe]
      %v2403 = vld [vmem:[%s1450 + $0x90] sm:$0xe]
      %v2404 = vld [vmem:[%s1450 + $0x9c] sm:$0xe]
      %v2405 = vld [vmem:[%s1450 + $0xa8] sm:$0xe]
      %v2406 = vld [vmem:[%s1450 + $0xb4] sm:$0xe]
      %v2455 = vrot.slane %v2391, 5
      %v2456 = vrot.slane %v2455, 4
      %v2457 = vrot.slane %v1738, 5
      %v2458 = vsel %vm1115, %v2456, %v2457
      %v2459 = vrot.slane %v2457, 4
      %v2460 = vrot.slane %v1739, 5
      %v2461 = vsel %vm1115, %v2459, %v2460
      %v2462 = vrot.slane %v2392, 5
      %v2463 = vrot.slane %v2462, 4
      %v2464 = vrot.slane %v1741, 5
      %v2465 = vsel %vm1115, %v2463, %v2464
      %v2466 = vrot.slane %v2464, 4
      %v2467 = vrot.slane %v1742, 5
      %v2468 = vsel %vm1115, %v2466, %v2467
      %v2469 = vrot.slane %v2393, 5
      %v2470 = vrot.slane %v2469, 4
      %v2471 = vrot.slane %v1744, 5
      %v2472 = vsel %vm1115, %v2470, %v2471
      %v2473 = vrot.slane %v2471, 4
      %v2474 = vrot.slane %v1745, 5
      %v2475 = vsel %vm1115, %v2473, %v2474
      %v2476 = vrot.slane %v2394, 5
      %v2477 = vrot.slane %v2476, 4
      %v2478 = vrot.slane %v1747, 5
      %v2479 = vsel %vm1115, %v2477, %v2478
      %v2480 = vrot.slane %v2478, 4
      %v2481 = vrot.slane %v1748, 5
      %v2482 = vsel %vm1115, %v2480, %v2481
      %v2483 = vrot.slane %v2395, 5
      %v2484 = vrot.slane %v2483, 4
      %v2485 = vrot.slane %v1750, 5
      %v2486 = vsel %vm1115, %v2484, %v2485
      %v2487 = vrot.slane %v2485, 4
      %v2488 = vrot.slane %v1751, 5
      %v2489 = vsel %vm1115, %v2487, %v2488
      %v2490 = vrot.slane %v2396, 5
      %v2491 = vrot.slane %v2490, 4
      %v2492 = vrot.slane %v1753, 5
      %v2493 = vsel %vm1115, %v2491, %v2492
      %v2494 = vrot.slane %v2492, 4
      %v2495 = vrot.slane %v1754, 5
      %v2496 = vsel %vm1115, %v2494, %v2495
      %v2497 = vrot.slane %v2397, 5
      %v2498 = vrot.slane %v2497, 4
      %v2499 = vrot.slane %v1756, 5
      %v2500 = vsel %vm1115, %v2498, %v2499
      %v2501 = vrot.slane %v2499, 4
      %v2502 = vrot.slane %v1757, 5
      %v2503 = vsel %vm1115, %v2501, %v2502
      %v2504 = vrot.slane %v2398, 5
      %v2505 = vrot.slane %v2504, 4
      %v2506 = vrot.slane %v1759, 5
      %v2507 = vsel %vm1115, %v2505, %v2506
      %v2508 = vrot.slane %v2506, 4
      %v2509 = vrot.slane %v1760, 5
      %v2510 = vsel %vm1115, %v2508, %v2509
      %v2511 = vrot.slane %v2399, 5
      %v2512 = vrot.slane %v2511, 4
      %v2513 = vrot.slane %v1762, 5
      %v2514 = vsel %vm1115, %v2512, %v2513
      %v2515 = vrot.slane %v2513, 4
      %v2516 = vrot.slane %v1763, 5
      %v2517 = vsel %vm1115, %v2515, %v2516
      %v2518 = vrot.slane %v2400, 5
      %v2519 = vrot.slane %v2518, 4
      %v2520 = vrot.slane %v1765, 5
      %v2521 = vsel %vm1115, %v2519, %v2520
      %v2522 = vrot.slane %v2520, 4
      %v2523 = vrot.slane %v1766, 5
      %v2524 = vsel %vm1115, %v2522, %v2523
      %v2525 = vrot.slane %v2401, 5
      %v2526 = vrot.slane %v2525, 4
      %v2527 = vrot.slane %v1768, 5
      %v2528 = vsel %vm1115, %v2526, %v2527
      %v2529 = vrot.slane %v2527, 4
      %v2530 = vrot.slane %v1769, 5
      %v2531 = vsel %vm1115, %v2529, %v2530
      %v2532 = vrot.slane %v2402, 5
      %v2533 = vrot.slane %v2532, 4
      %v2534 = vrot.slane %v1771, 5
      %v2535 = vsel %vm1115, %v2533, %v2534
      %v2536 = vrot.slane %v2534, 4
      %v2537 = vrot.slane %v1772, 5
      %v2538 = vsel %vm1115, %v2536, %v2537
      %v2539 = vrot.slane %v2403, 5
      %v2540 = vrot.slane %v2539, 4
      %v2541 = vrot.slane %v1774, 5
      %v2542 = vsel %vm1115, %v2540, %v2541
      %v2543 = vrot.slane %v2541, 4
      %v2544 = vrot.slane %v1775, 5
      %v2545 = vsel %vm1115, %v2543, %v2544
      %v2546 = vrot.slane %v2404, 5
      %v2547 = vrot.slane %v2546, 4
      %v2548 = vrot.slane %v1777, 5
      %v2549 = vsel %vm1115, %v2547, %v2548
      %v2550 = vrot.slane %v2548, 4
      %v2551 = vrot.slane %v1778, 5
      %v2552 = vsel %vm1115, %v2550, %v2551
      %v2553 = vrot.slane %v2405, 5
      %v2554 = vrot.slane %v2553, 4
      %v2555 = vrot.slane %v1780, 5
      %v2556 = vsel %vm1115, %v2554, %v2555
      %v2557 = vrot.slane %v2555, 4
      %v2558 = vrot.slane %v1781, 5
      %v2559 = vsel %vm1115, %v2557, %v2558
      %v2560 = vrot.slane %v2406, 5
      %v2561 = vrot.slane %v2560, 4
      %v2562 = vrot.slane %v1783, 5
      %v2563 = vsel %vm1115, %v2561, %v2562
      %v2564 = vrot.slane %v2562, 4
      %v2565 = vrot.slane %v1784, 5
      %v2566 = vsel %vm1115, %v2564, %v2565
      %s2567 = scalar_lea.vmem %s1, 20
      %v2568 = vld [vmem:[%s2567] sm:$0xf]
      %v2569 = vunpack.c.l.b16 %v2458
      %v2570 = vunpack.c.l.b16 %v2461
      %v2571 = vunpack.c.l.b16 %v2465
      %v2572 = vunpack.c.l.b16 %v2468
      %v2573 = vunpack.c.l.b16 %v2472
      %v2574 = vunpack.c.l.b16 %v2475
      %v2575 = vunpack.c.l.b16 %v2479
      %v2576 = vunpack.c.l.b16 %v2482
      %v2577 = vunpack.c.l.b16 %v2486
      %v2578 = vunpack.c.l.b16 %v2489
      %v2579 = vunpack.c.l.b16 %v2493
      %v2580 = vunpack.c.l.b16 %v2496
      %v2581 = vunpack.c.l.b16 %v2500
      %v2582 = vunpack.c.l.b16 %v2503
      %v2583 = vunpack.c.l.b16 %v2507
      %v2584 = vunpack.c.l.b16 %v2510
      %v2585 = vunpack.c.l.b16 %v2514
      %v2586 = vunpack.c.l.b16 %v2517
      %v2587 = vunpack.c.l.b16 %v2521
      %v2588 = vunpack.c.l.b16 %v2524
      %v2589 = vunpack.c.l.b16 %v2528
      %v2590 = vunpack.c.l.b16 %v2531
      %v2591 = vunpack.c.l.b16 %v2535
      %v2592 = vunpack.c.l.b16 %v2538
      %v2593 = vunpack.c.l.b16 %v2542
      %v2594 = vunpack.c.l.b16 %v2545
      %v2595 = vunpack.c.l.b16 %v2549
      %v2596 = vunpack.c.l.b16 %v2552
      %v2597 = vunpack.c.l.b16 %v2556
      %v2598 = vunpack.c.l.b16 %v2559
      %v2599 = vunpack.c.l.b16 %v2563
      %v2600 = vunpack.c.l.b16 %v2566
      %v2601 = vpack.c.b16 %v2570, %v2569
      %v2602 = vpack.c.b16 %v2572, %v2571
      %v2603 = vpack.c.b16 %v2574, %v2573
      %v2604 = vpack.c.b16 %v2576, %v2575
      %v2605 = vpack.c.b16 %v2578, %v2577
      %v2606 = vpack.c.b16 %v2580, %v2579
      %v2607 = vpack.c.b16 %v2582, %v2581
      %v2608 = vpack.c.b16 %v2584, %v2583
      %v2609 = vpack.c.b16 %v2586, %v2585
      %v2610 = vpack.c.b16 %v2588, %v2587
      %v2611 = vpack.c.b16 %v2590, %v2589
      %v2612 = vpack.c.b16 %v2592, %v2591
      %v2613 = vpack.c.b16 %v2594, %v2593
      %v2614 = vpack.c.b16 %v2596, %v2595
      %v2615 = vpack.c.b16 %v2598, %v2597
      %v2616 = vpack.c.b16 %v2600, %v2599
      %v2618 = vsel %vm703, %v2601, 0
      %v2621 = vsel %vm703, %v2602, 0
      %v2624 = vsel %vm703, %v2603, 0
      %v2627 = vsel %vm703, %v2604, 0
      %v2630 = vsel %vm703, %v2605, 0
      %v2633 = vsel %vm703, %v2606, 0
      %v2636 = vsel %vm703, %v2607, 0
      %v2639 = vsel %vm703, %v2608, 0
      %v2642 = vsel %vm703, %v2609, 0
      %v2645 = vsel %vm703, %v2610, 0
      %v2648 = vsel %vm703, %v2611, 0
      %v2651 = vsel %vm703, %v2612, 0
      %v2654 = vsel %vm703, %v2613, 0
      %v2657 = vsel %vm703, %v2614, 0
      %v2660 = vsel %vm703, %v2615, 0
      %v2663 = vsel %vm703, %v2616, 0
      %v2666 = vsel %vm752, %v2568, 0
      %2668 = vmatpush.bf16.msra.mxu0 0
      %2669 = vmatpush.bf16.msra.mxu0 0
      %2670 = vmatpush.bf16.msra.mxu0 0
      %2671 = vmatpush.bf16.msra.mxu0 0
      %2672 = vmatpush.bf16.msra.mxu0 0
      %2673 = vmatpush.bf16.msra.mxu0 0
      %2674 = vmatpush.bf16.msra.mxu0 0
      %2675 = vmatpush.bf16.msra.mxu0 %v2666
      %2676 = vmatmul.bf16.gmra.mxu0 %v2618
      %v2677 = vpop.f32.mrf.mxu0
      %v2678 = vadd.f32 0.0, %v2677
      %v2679 = vpop.f32.mrf.mxu0
      %v2680 = vadd.f32 0.0, %v2679
      %2681 = vmatmul.bf16.gmra.mxu0 %v2621
      %v2682 = vpop.f32.mrf.mxu0
      %v2683 = vadd.f32 0.0, %v2682
      %v2684 = vpop.f32.mrf.mxu0
      %v2685 = vadd.f32 0.0, %v2684
      %2686 = vmatmul.bf16.gmra.mxu0 %v2624
      %v2687 = vpop.f32.mrf.mxu0
      %v2688 = vadd.f32 0.0, %v2687
      %v2689 = vpop.f32.mrf.mxu0
      %v2690 = vadd.f32 0.0, %v2689
      %2691 = vmatmul.bf16.gmra.mxu0 %v2627
      %v2692 = vpop.f32.mrf.mxu0
      %v2693 = vadd.f32 0.0, %v2692
      %v2694 = vpop.f32.mrf.mxu0
      %v2695 = vadd.f32 0.0, %v2694
      %2696 = vmatmul.bf16.gmra.mxu0 %v2630
      %v2697 = vpop.f32.mrf.mxu0
      %v2698 = vadd.f32 0.0, %v2697
      %v2699 = vpop.f32.mrf.mxu0
      %v2700 = vadd.f32 0.0, %v2699
      %2701 = vmatmul.bf16.gmra.mxu0 %v2633
      %v2702 = vpop.f32.mrf.mxu0
      %v2703 = vadd.f32 0.0, %v2702
      %v2704 = vpop.f32.mrf.mxu0
      %v2705 = vadd.f32 0.0, %v2704
      %2706 = vmatmul.bf16.gmra.mxu0 %v2636
      %v2707 = vpop.f32.mrf.mxu0
      %v2708 = vadd.f32 0.0, %v2707
      %v2709 = vpop.f32.mrf.mxu0
      %v2710 = vadd.f32 0.0, %v2709
      %2711 = vmatmul.bf16.gmra.mxu0 %v2639
      %v2712 = vpop.f32.mrf.mxu0
      %v2713 = vadd.f32 0.0, %v2712
      %v2714 = vpop.f32.mrf.mxu0
      %v2715 = vadd.f32 0.0, %v2714
      %2716 = vmatmul.bf16.gmra.mxu0 %v2642
      %v2717 = vpop.f32.mrf.mxu0
      %v2718 = vadd.f32 0.0, %v2717
      %v2719 = vpop.f32.mrf.mxu0
      %v2720 = vadd.f32 0.0, %v2719
      %2721 = vmatmul.bf16.gmra.mxu0 %v2645
      %v2722 = vpop.f32.mrf.mxu0
      %v2723 = vadd.f32 0.0, %v2722
      %v2724 = vpop.f32.mrf.mxu0
      %v2725 = vadd.f32 0.0, %v2724
      %2726 = vmatmul.bf16.gmra.mxu0 %v2648
      %v2727 = vpop.f32.mrf.mxu0
      %v2728 = vadd.f32 0.0, %v2727
      %v2729 = vpop.f32.mrf.mxu0
      %v2730 = vadd.f32 0.0, %v2729
      %2731 = vmatmul.bf16.gmra.mxu0 %v2651
      %v2732 = vpop.f32.mrf.mxu0
      %v2733 = vadd.f32 0.0, %v2732
      %v2734 = vpop.f32.mrf.mxu0
      %v2735 = vadd.f32 0.0, %v2734
      %2736 = vmatmul.bf16.gmra.mxu0 %v2654
      %v2737 = vpop.f32.mrf.mxu0
      %v2738 = vadd.f32 0.0, %v2737
      %v2739 = vpop.f32.mrf.mxu0
      %v2740 = vadd.f32 0.0, %v2739
      %2741 = vmatmul.bf16.gmra.mxu0 %v2657
      %v2742 = vpop.f32.mrf.mxu0
      %v2743 = vadd.f32 0.0, %v2742
      %v2744 = vpop.f32.mrf.mxu0
      %v2745 = vadd.f32 0.0, %v2744
      %2746 = vmatmul.bf16.gmra.mxu0 %v2660
      %v2747 = vpop.f32.mrf.mxu0
      %v2748 = vadd.f32 0.0, %v2747
      %v2749 = vpop.f32.mrf.mxu0
      %v2750 = vadd.f32 0.0, %v2749
      %2751 = vmatmul.bf16.gmra.mxu0 %v2663
      %v2752 = vpop.f32.mrf.mxu0
      %v2753 = vadd.f32 0.0, %v2752
      %v2754 = vpop.f32.mrf.mxu0
      %v2755 = vadd.f32 0.0, %v2754
      %2756 = vdwg.mxu0
      %v2757 = vadd.f32 %v2359, %v2678
      %v2758 = vadd.f32 %v2360, %v2680
      %v2759 = vadd.f32 %v2361, %v2683
      %v2760 = vadd.f32 %v2362, %v2685
      %v2761 = vadd.f32 %v2363, %v2688
      %v2762 = vadd.f32 %v2364, %v2690
      %v2763 = vadd.f32 %v2365, %v2693
      %v2764 = vadd.f32 %v2366, %v2695
      %v2765 = vadd.f32 %v2367, %v2698
      %v2766 = vadd.f32 %v2368, %v2700
      %v2767 = vadd.f32 %v2369, %v2703
      %v2768 = vadd.f32 %v2370, %v2705
      %v2769 = vadd.f32 %v2371, %v2708
      %v2770 = vadd.f32 %v2372, %v2710
      %v2771 = vadd.f32 %v2373, %v2713
      %v2772 = vadd.f32 %v2374, %v2715
      %v2773 = vadd.f32 %v2375, %v2718
      %v2774 = vadd.f32 %v2376, %v2720
      %v2775 = vadd.f32 %v2377, %v2723
      %v2776 = vadd.f32 %v2378, %v2725
      %v2777 = vadd.f32 %v2379, %v2728
      %v2778 = vadd.f32 %v2380, %v2730
      %v2779 = vadd.f32 %v2381, %v2733
      %v2780 = vadd.f32 %v2382, %v2735
      %v2781 = vadd.f32 %v2383, %v2738
      %v2782 = vadd.f32 %v2384, %v2740
      %v2783 = vadd.f32 %v2385, %v2743
      %v2784 = vadd.f32 %v2386, %v2745
      %v2785 = vadd.f32 %v2387, %v2748
      %v2786 = vadd.f32 %v2388, %v2750
      %v2787 = vadd.f32 %v2389, %v2753
      %v2788 = vadd.f32 %v2390, %v2755
      %s2789 = scalar_lea.vmem %s203, 24
      %v2790 = vld [vmem:[%s2789] sm:$0xf]
      %v2791 = vld [vmem:[%s2789 + $0x4] sm:$0xf]
      %v2792 = vld [vmem:[%s2789 + $0xc] sm:$0xf]
      %v2793 = vld [vmem:[%s2789 + $0x10] sm:$0xf]
      %v2794 = vld [vmem:[%s2789 + $0x18] sm:$0xf]
      %v2795 = vld [vmem:[%s2789 + $0x1c] sm:$0xf]
      %v2796 = vld [vmem:[%s2789 + $0x24] sm:$0xf]
      %v2797 = vld [vmem:[%s2789 + $0x28] sm:$0xf]
      %v2798 = vld [vmem:[%s2789 + $0x30] sm:$0xf]
      %v2799 = vld [vmem:[%s2789 + $0x34] sm:$0xf]
      %v2800 = vld [vmem:[%s2789 + $0x3c] sm:$0xf]
      %v2801 = vld [vmem:[%s2789 + $0x40] sm:$0xf]
      %v2802 = vld [vmem:[%s2789 + $0x48] sm:$0xf]
      %v2803 = vld [vmem:[%s2789 + $0x4c] sm:$0xf]
      %v2804 = vld [vmem:[%s2789 + $0x54] sm:$0xf]
      %v2805 = vld [vmem:[%s2789 + $0x58] sm:$0xf]
      %v2806 = vld [vmem:[%s2789 + $0x60] sm:$0xf]
      %v2807 = vld [vmem:[%s2789 + $0x64] sm:$0xf]
      %v2808 = vld [vmem:[%s2789 + $0x6c] sm:$0xf]
      %v2809 = vld [vmem:[%s2789 + $0x70] sm:$0xf]
      %v2810 = vld [vmem:[%s2789 + $0x78] sm:$0xf]
      %v2811 = vld [vmem:[%s2789 + $0x7c] sm:$0xf]
      %v2812 = vld [vmem:[%s2789 + $0x84] sm:$0xf]
      %v2813 = vld [vmem:[%s2789 + $0x88] sm:$0xf]
      %v2814 = vld [vmem:[%s2789 + $0x90] sm:$0xf]
      %v2815 = vld [vmem:[%s2789 + $0x94] sm:$0xf]
      %v2816 = vld [vmem:[%s2789 + $0x9c] sm:$0xf]
      %v2817 = vld [vmem:[%s2789 + $0xa0] sm:$0xf]
      %v2818 = vld [vmem:[%s2789 + $0xa8] sm:$0xf]
      %v2819 = vld [vmem:[%s2789 + $0xac] sm:$0xf]
      %v2820 = vld [vmem:[%s2789 + $0xb4] sm:$0xf]
      %v2821 = vld [vmem:[%s2789 + $0xb8] sm:$0xf]
      %s2822 = scalar_lea.vmem %s1, 24
      %v2823 = vld [vmem:[%s2822] sm:$0xf]
      %v2856 = vunpack.c.l.b16 %v2790
      %v2857 = vunpack.c.l.b16 %v2791
      %v2858 = vunpack.c.l.b16 %v2792
      %v2859 = vunpack.c.l.b16 %v2793
      %v2860 = vunpack.c.l.b16 %v2794
      %v2861 = vunpack.c.l.b16 %v2795
      %v2862 = vunpack.c.l.b16 %v2796
      %v2863 = vunpack.c.l.b16 %v2797
      %v2864 = vunpack.c.l.b16 %v2798
      %v2865 = vunpack.c.l.b16 %v2799
      %v2866 = vunpack.c.l.b16 %v2800
      %v2867 = vunpack.c.l.b16 %v2801
      %v2868 = vunpack.c.l.b16 %v2802
      %v2869 = vunpack.c.l.b16 %v2803
      %v2870 = vunpack.c.l.b16 %v2804
      %v2871 = vunpack.c.l.b16 %v2805
      %v2872 = vunpack.c.l.b16 %v2806
      %v2873 = vunpack.c.l.b16 %v2807
      %v2874 = vunpack.c.l.b16 %v2808
      %v2875 = vunpack.c.l.b16 %v2809
      %v2876 = vunpack.c.l.b16 %v2810
      %v2877 = vunpack.c.l.b16 %v2811
      %v2878 = vunpack.c.l.b16 %v2812
      %v2879 = vunpack.c.l.b16 %v2813
      %v2880 = vunpack.c.l.b16 %v2814
      %v2881 = vunpack.c.l.b16 %v2815
      %v2882 = vunpack.c.l.b16 %v2816
      %v2883 = vunpack.c.l.b16 %v2817
      %v2884 = vunpack.c.l.b16 %v2818
      %v2885 = vunpack.c.l.b16 %v2819
      %v2886 = vunpack.c.l.b16 %v2820
      %v2887 = vunpack.c.l.b16 %v2821
      %v2888 = vpack.c.b16 %v2857, %v2856
      %v2889 = vpack.c.b16 %v2859, %v2858
      %v2890 = vpack.c.b16 %v2861, %v2860
      %v2891 = vpack.c.b16 %v2863, %v2862
      %v2892 = vpack.c.b16 %v2865, %v2864
      %v2893 = vpack.c.b16 %v2867, %v2866
      %v2894 = vpack.c.b16 %v2869, %v2868
      %v2895 = vpack.c.b16 %v2871, %v2870
      %v2896 = vpack.c.b16 %v2873, %v2872
      %v2897 = vpack.c.b16 %v2875, %v2874
      %v2898 = vpack.c.b16 %v2877, %v2876
      %v2899 = vpack.c.b16 %v2879, %v2878
      %v2900 = vpack.c.b16 %v2881, %v2880
      %v2901 = vpack.c.b16 %v2883, %v2882
      %v2902 = vpack.c.b16 %v2885, %v2884
      %v2903 = vpack.c.b16 %v2887, %v2886
      %v2905 = vsel %vm703, %v2888, 0
      %v2908 = vsel %vm703, %v2889, 0
      %v2911 = vsel %vm703, %v2890, 0
      %v2914 = vsel %vm703, %v2891, 0
      %v2917 = vsel %vm703, %v2892, 0
      %v2920 = vsel %vm703, %v2893, 0
      %v2923 = vsel %vm703, %v2894, 0
      %v2926 = vsel %vm703, %v2895, 0
      %v2929 = vsel %vm703, %v2896, 0
      %v2932 = vsel %vm703, %v2897, 0
      %v2935 = vsel %vm703, %v2898, 0
      %v2938 = vsel %vm703, %v2899, 0
      %v2941 = vsel %vm703, %v2900, 0
      %v2944 = vsel %vm703, %v2901, 0
      %v2947 = vsel %vm703, %v2902, 0
      %v2950 = vsel %vm703, %v2903, 0
      %v2953 = vsel %vm752, %v2823, 0
      %2955 = vmatpush.bf16.msra.mxu0 0
      %2956 = vmatpush.bf16.msra.mxu0 0
      %2957 = vmatpush.bf16.msra.mxu0 0
      %2958 = vmatpush.bf16.msra.mxu0 0
      %2959 = vmatpush.bf16.msra.mxu0 0
      %2960 = vmatpush.bf16.msra.mxu0 0
      %2961 = vmatpush.bf16.msra.mxu0 0
      %2962 = vmatpush.bf16.msra.mxu0 %v2953
      %2963 = vmatmul.bf16.gmra.mxu0 %v2905
      %v2964 = vpop.f32.mrf.mxu0
      %v2965 = vadd.f32 0.0, %v2964
      %v2966 = vpop.f32.mrf.mxu0
      %v2967 = vadd.f32 0.0, %v2966
      %2968 = vmatmul.bf16.gmra.mxu0 %v2908
      %v2969 = vpop.f32.mrf.mxu0
      %v2970 = vadd.f32 0.0, %v2969
      %v2971 = vpop.f32.mrf.mxu0
      %v2972 = vadd.f32 0.0, %v2971
      %2973 = vmatmul.bf16.gmra.mxu0 %v2911
      %v2974 = vpop.f32.mrf.mxu0
      %v2975 = vadd.f32 0.0, %v2974
      %v2976 = vpop.f32.mrf.mxu0
      %v2977 = vadd.f32 0.0, %v2976
      %2978 = vmatmul.bf16.gmra.mxu0 %v2914
      %v2979 = vpop.f32.mrf.mxu0
      %v2980 = vadd.f32 0.0, %v2979
      %v2981 = vpop.f32.mrf.mxu0
      %v2982 = vadd.f32 0.0, %v2981
      %2983 = vmatmul.bf16.gmra.mxu0 %v2917
      %v2984 = vpop.f32.mrf.mxu0
      %v2985 = vadd.f32 0.0, %v2984
      %v2986 = vpop.f32.mrf.mxu0
      %v2987 = vadd.f32 0.0, %v2986
      %2988 = vmatmul.bf16.gmra.mxu0 %v2920
      %v2989 = vpop.f32.mrf.mxu0
      %v2990 = vadd.f32 0.0, %v2989
      %v2991 = vpop.f32.mrf.mxu0
      %v2992 = vadd.f32 0.0, %v2991
      %2993 = vmatmul.bf16.gmra.mxu0 %v2923
      %v2994 = vpop.f32.mrf.mxu0
      %v2995 = vadd.f32 0.0, %v2994
      %v2996 = vpop.f32.mrf.mxu0
      %v2997 = vadd.f32 0.0, %v2996
      %2998 = vmatmul.bf16.gmra.mxu0 %v2926
      %v2999 = vpop.f32.mrf.mxu0
      %v3000 = vadd.f32 0.0, %v2999
      %v3001 = vpop.f32.mrf.mxu0
      %v3002 = vadd.f32 0.0, %v3001
      %3003 = vmatmul.bf16.gmra.mxu0 %v2929
      %v3004 = vpop.f32.mrf.mxu0
      %v3005 = vadd.f32 0.0, %v3004
      %v3006 = vpop.f32.mrf.mxu0
      %v3007 = vadd.f32 0.0, %v3006
      %3008 = vmatmul.bf16.gmra.mxu0 %v2932
      %v3009 = vpop.f32.mrf.mxu0
      %v3010 = vadd.f32 0.0, %v3009
      %v3011 = vpop.f32.mrf.mxu0
      %v3012 = vadd.f32 0.0, %v3011
      %3013 = vmatmul.bf16.gmra.mxu0 %v2935
      %v3014 = vpop.f32.mrf.mxu0
      %v3015 = vadd.f32 0.0, %v3014
      %v3016 = vpop.f32.mrf.mxu0
      %v3017 = vadd.f32 0.0, %v3016
      %3018 = vmatmul.bf16.gmra.mxu0 %v2938
      %v3019 = vpop.f32.mrf.mxu0
      %v3020 = vadd.f32 0.0, %v3019
      %v3021 = vpop.f32.mrf.mxu0
      %v3022 = vadd.f32 0.0, %v3021
      %3023 = vmatmul.bf16.gmra.mxu0 %v2941
      %v3024 = vpop.f32.mrf.mxu0
      %v3025 = vadd.f32 0.0, %v3024
      %v3026 = vpop.f32.mrf.mxu0
      %v3027 = vadd.f32 0.0, %v3026
      %3028 = vmatmul.bf16.gmra.mxu0 %v2944
      %v3029 = vpop.f32.mrf.mxu0
      %v3030 = vadd.f32 0.0, %v3029
      %v3031 = vpop.f32.mrf.mxu0
      %v3032 = vadd.f32 0.0, %v3031
      %3033 = vmatmul.bf16.gmra.mxu0 %v2947
      %v3034 = vpop.f32.mrf.mxu0
      %v3035 = vadd.f32 0.0, %v3034
      %v3036 = vpop.f32.mrf.mxu0
      %v3037 = vadd.f32 0.0, %v3036
      %3038 = vmatmul.bf16.gmra.mxu0 %v2950
      %v3039 = vpop.f32.mrf.mxu0
      %v3040 = vadd.f32 0.0, %v3039
      %v3041 = vpop.f32.mrf.mxu0
      %v3042 = vadd.f32 0.0, %v3041
      %3043 = vdwg.mxu0
      %v3044 = vadd.f32 %v2757, %v2965
      %v3045 = vadd.f32 %v2758, %v2967
      %v3046 = vadd.f32 %v2759, %v2970
      %v3047 = vadd.f32 %v2760, %v2972
      %v3048 = vadd.f32 %v2761, %v2975
      %v3049 = vadd.f32 %v2762, %v2977
      %v3050 = vadd.f32 %v2763, %v2980
      %v3051 = vadd.f32 %v2764, %v2982
      %v3052 = vadd.f32 %v2765, %v2985
      %v3053 = vadd.f32 %v2766, %v2987
      %v3054 = vadd.f32 %v2767, %v2990
      %v3055 = vadd.f32 %v2768, %v2992
      %v3056 = vadd.f32 %v2769, %v2995
      %v3057 = vadd.f32 %v2770, %v2997
      %v3058 = vadd.f32 %v2771, %v3000
      %v3059 = vadd.f32 %v2772, %v3002
      %v3060 = vadd.f32 %v2773, %v3005
      %v3061 = vadd.f32 %v2774, %v3007
      %v3062 = vadd.f32 %v2775, %v3010
      %v3063 = vadd.f32 %v2776, %v3012
      %v3064 = vadd.f32 %v2777, %v3015
      %v3065 = vadd.f32 %v2778, %v3017
      %v3066 = vadd.f32 %v2779, %v3020
      %v3067 = vadd.f32 %v2780, %v3022
      %v3068 = vadd.f32 %v2781, %v3025
      %v3069 = vadd.f32 %v2782, %v3027
      %v3070 = vadd.f32 %v2783, %v3030
      %v3071 = vadd.f32 %v2784, %v3032
      %v3072 = vadd.f32 %v2785, %v3035
      %v3073 = vadd.f32 %v2786, %v3037
      %v3074 = vadd.f32 %v2787, %v3040
      %v3075 = vadd.f32 %v2788, %v3042
      %v3076 = vld [vmem:[%s2789] sm:$0xf]
      %v3077 = vld [vmem:[%s2789 + $0x4] sm:$0xf]
      %v3078 = vld [vmem:[%s2789 + $0x8] sm:$0x1]
      %v3079 = vld [vmem:[%s2789 + $0xc] sm:$0xf]
      %v3080 = vld [vmem:[%s2789 + $0x10] sm:$0xf]
      %v3081 = vld [vmem:[%s2789 + $0x14] sm:$0x1]
      %v3082 = vld [vmem:[%s2789 + $0x18] sm:$0xf]
      %v3083 = vld [vmem:[%s2789 + $0x1c] sm:$0xf]
      %v3084 = vld [vmem:[%s2789 + $0x20] sm:$0x1]
      %v3085 = vld [vmem:[%s2789 + $0x24] sm:$0xf]
      %v3086 = vld [vmem:[%s2789 + $0x28] sm:$0xf]
      %v3087 = vld [vmem:[%s2789 + $0x2c] sm:$0x1]
      %v3088 = vld [vmem:[%s2789 + $0x30] sm:$0xf]
      %v3089 = vld [vmem:[%s2789 + $0x34] sm:$0xf]
      %v3090 = vld [vmem:[%s2789 + $0x38] sm:$0x1]
      %v3091 = vld [vmem:[%s2789 + $0x3c] sm:$0xf]
      %v3092 = vld [vmem:[%s2789 + $0x40] sm:$0xf]
      %v3093 = vld [vmem:[%s2789 + $0x44] sm:$0x1]
      %v3094 = vld [vmem:[%s2789 + $0x48] sm:$0xf]
      %v3095 = vld [vmem:[%s2789 + $0x4c] sm:$0xf]
      %v3096 = vld [vmem:[%s2789 + $0x50] sm:$0x1]
      %v3097 = vld [vmem:[%s2789 + $0x54] sm:$0xf]
      %v3098 = vld [vmem:[%s2789 + $0x58] sm:$0xf]
      %v3099 = vld [vmem:[%s2789 + $0x5c] sm:$0x1]
      %v3100 = vld [vmem:[%s2789 + $0x60] sm:$0xf]
      %v3101 = vld [vmem:[%s2789 + $0x64] sm:$0xf]
      %v3102 = vld [vmem:[%s2789 + $0x68] sm:$0x1]
      %v3103 = vld [vmem:[%s2789 + $0x6c] sm:$0xf]
      %v3104 = vld [vmem:[%s2789 + $0x70] sm:$0xf]
      %v3105 = vld [vmem:[%s2789 + $0x74] sm:$0x1]
      %v3106 = vld [vmem:[%s2789 + $0x78] sm:$0xf]
      %v3107 = vld [vmem:[%s2789 + $0x7c] sm:$0xf]
      %v3108 = vld [vmem:[%s2789 + $0x80] sm:$0x1]
      %v3109 = vld [vmem:[%s2789 + $0x84] sm:$0xf]
      %v3110 = vld [vmem:[%s2789 + $0x88] sm:$0xf]
      %v3111 = vld [vmem:[%s2789 + $0x8c] sm:$0x1]
      %v3112 = vld [vmem:[%s2789 + $0x90] sm:$0xf]
      %v3113 = vld [vmem:[%s2789 + $0x94] sm:$0xf]
      %v3114 = vld [vmem:[%s2789 + $0x98] sm:$0x1]
      %v3115 = vld [vmem:[%s2789 + $0x9c] sm:$0xf]
      %v3116 = vld [vmem:[%s2789 + $0xa0] sm:$0xf]
      %v3117 = vld [vmem:[%s2789 + $0xa4] sm:$0x1]
      %v3118 = vld [vmem:[%s2789 + $0xa8] sm:$0xf]
      %v3119 = vld [vmem:[%s2789 + $0xac] sm:$0xf]
      %v3120 = vld [vmem:[%s2789 + $0xb0] sm:$0x1]
      %v3121 = vld [vmem:[%s2789 + $0xb4] sm:$0xf]
      %v3122 = vld [vmem:[%s2789 + $0xb8] sm:$0xf]
      %v3123 = vld [vmem:[%s2789 + $0xbc] sm:$0x1]
      %v3125 = vshrl.u32 %v3076, 16
      %v3127 = vrot.slane %v3125, 4
      %v3128 = vshll.u32 %v3076, 16
      %v3130 = vrot.slane %v3128, 5
      %v3131 = vor.u32 %v3127, %v3130
      %v3132 = vrot.slane %v3131, 4
      %v3134 = vshll.u32 %v3077, 16
      %v3136 = vrot.slane %v3134, 5
      %v3137 = vsel %vm268, %v3132, %v3136
      %v3138 = vshrl.u32 %v3077, 16
      %v3140 = vrot.slane %v3138, 4
      %v3141 = vor.u32 %v3140, %v3136
      %v3142 = vrot.slane %v3141, 4
      %v3144 = vshll.u32 %v3078, 16
      %v3146 = vrot.slane %v3144, 5
      %v3147 = vsel %vm268, %v3142, %v3146
      %v3149 = vshrl.u32 %v3079, 16
      %v3151 = vrot.slane %v3149, 4
      %v3152 = vshll.u32 %v3079, 16
      %v3154 = vrot.slane %v3152, 5
      %v3155 = vor.u32 %v3151, %v3154
      %v3156 = vrot.slane %v3155, 4
      %v3158 = vshll.u32 %v3080, 16
      %v3160 = vrot.slane %v3158, 5
      %v3161 = vsel %vm268, %v3156, %v3160
      %v3162 = vshrl.u32 %v3080, 16
      %v3164 = vrot.slane %v3162, 4
      %v3165 = vor.u32 %v3164, %v3160
      %v3166 = vrot.slane %v3165, 4
      %v3168 = vshll.u32 %v3081, 16
      %v3170 = vrot.slane %v3168, 5
      %v3171 = vsel %vm268, %v3166, %v3170
      %v3173 = vshrl.u32 %v3082, 16
      %v3175 = vrot.slane %v3173, 4
      %v3176 = vshll.u32 %v3082, 16
      %v3178 = vrot.slane %v3176, 5
      %v3179 = vor.u32 %v3175, %v3178
      %v3180 = vrot.slane %v3179, 4
      %v3182 = vshll.u32 %v3083, 16
      %v3184 = vrot.slane %v3182, 5
      %v3185 = vsel %vm268, %v3180, %v3184
      %v3186 = vshrl.u32 %v3083, 16
      %v3188 = vrot.slane %v3186, 4
      %v3189 = vor.u32 %v3188, %v3184
      %v3190 = vrot.slane %v3189, 4
      %v3192 = vshll.u32 %v3084, 16
      %v3194 = vrot.slane %v3192, 5
      %v3195 = vsel %vm268, %v3190, %v3194
      %v3197 = vshrl.u32 %v3085, 16
      %v3199 = vrot.slane %v3197, 4
      %v3200 = vshll.u32 %v3085, 16
      %v3202 = vrot.slane %v3200, 5
      %v3203 = vor.u32 %v3199, %v3202
      %v3204 = vrot.slane %v3203, 4
      %v3206 = vshll.u32 %v3086, 16
      %v3208 = vrot.slane %v3206, 5
      %v3209 = vsel %vm268, %v3204, %v3208
      %v3210 = vshrl.u32 %v3086, 16
      %v3212 = vrot.slane %v3210, 4
      %v3213 = vor.u32 %v3212, %v3208
      %v3214 = vrot.slane %v3213, 4
      %v3216 = vshll.u32 %v3087, 16
      %v3218 = vrot.slane %v3216, 5
      %v3219 = vsel %vm268, %v3214, %v3218
      %v3221 = vshrl.u32 %v3088, 16
      %v3223 = vrot.slane %v3221, 4
      %v3224 = vshll.u32 %v3088, 16
      %v3226 = vrot.slane %v3224, 5
      %v3227 = vor.u32 %v3223, %v3226
      %v3228 = vrot.slane %v3227, 4
      %v3230 = vshll.u32 %v3089, 16
      %v3232 = vrot.slane %v3230, 5
      %v3233 = vsel %vm268, %v3228, %v3232
      %v3234 = vshrl.u32 %v3089, 16
      %v3236 = vrot.slane %v3234, 4
      %v3237 = vor.u32 %v3236, %v3232
      %v3238 = vrot.slane %v3237, 4
      %v3240 = vshll.u32 %v3090, 16
      %v3242 = vrot.slane %v3240, 5
      %v3243 = vsel %vm268, %v3238, %v3242
      %v3245 = vshrl.u32 %v3091, 16
      %v3247 = vrot.slane %v3245, 4
      %v3248 = vshll.u32 %v3091, 16
      %v3250 = vrot.slane %v3248, 5
      %v3251 = vor.u32 %v3247, %v3250
      %v3252 = vrot.slane %v3251, 4
      %v3254 = vshll.u32 %v3092, 16
      %v3256 = vrot.slane %v3254, 5
      %v3257 = vsel %vm268, %v3252, %v3256
      %v3258 = vshrl.u32 %v3092, 16
      %v3260 = vrot.slane %v3258, 4
      %v3261 = vor.u32 %v3260, %v3256
      %v3262 = vrot.slane %v3261, 4
      %v3264 = vshll.u32 %v3093, 16
      %v3266 = vrot.slane %v3264, 5
      %v3267 = vsel %vm268, %v3262, %v3266
      %v3269 = vshrl.u32 %v3094, 16
      %v3271 = vrot.slane %v3269, 4
      %v3272 = vshll.u32 %v3094, 16
      %v3274 = vrot.slane %v3272, 5
      %v3275 = vor.u32 %v3271, %v3274
      %v3276 = vrot.slane %v3275, 4
      %v3278 = vshll.u32 %v3095, 16
      %v3280 = vrot.slane %v3278, 5
      %v3281 = vsel %vm268, %v3276, %v3280
      %v3282 = vshrl.u32 %v3095, 16
      %v3284 = vrot.slane %v3282, 4
      %v3285 = vor.u32 %v3284, %v3280
      %v3286 = vrot.slane %v3285, 4
      %v3288 = vshll.u32 %v3096, 16
      %v3290 = vrot.slane %v3288, 5
      %v3291 = vsel %vm268, %v3286, %v3290
      %v3293 = vshrl.u32 %v3097, 16
      %v3295 = vrot.slane %v3293, 4
      %v3296 = vshll.u32 %v3097, 16
      %v3298 = vrot.slane %v3296, 5
      %v3299 = vor.u32 %v3295, %v3298
      %v3300 = vrot.slane %v3299, 4
      %v3302 = vshll.u32 %v3098, 16
      %v3304 = vrot.slane %v3302, 5
      %v3305 = vsel %vm268, %v3300, %v3304
      %v3306 = vshrl.u32 %v3098, 16
      %v3308 = vrot.slane %v3306, 4
      %v3309 = vor.u32 %v3308, %v3304
      %v3310 = vrot.slane %v3309, 4
      %v3312 = vshll.u32 %v3099, 16
      %v3314 = vrot.slane %v3312, 5
      %v3315 = vsel %vm268, %v3310, %v3314
      %v3317 = vshrl.u32 %v3100, 16
      %v3319 = vrot.slane %v3317, 4
      %v3320 = vshll.u32 %v3100, 16
      %v3322 = vrot.slane %v3320, 5
      %v3323 = vor.u32 %v3319, %v3322
      %v3324 = vrot.slane %v3323, 4
      %v3326 = vshll.u32 %v3101, 16
      %v3328 = vrot.slane %v3326, 5
      %v3329 = vsel %vm268, %v3324, %v3328
      %v3330 = vshrl.u32 %v3101, 16
      %v3332 = vrot.slane %v3330, 4
      %v3333 = vor.u32 %v3332, %v3328
      %v3334 = vrot.slane %v3333, 4
      %v3336 = vshll.u32 %v3102, 16
      %v3338 = vrot.slane %v3336, 5
      %v3339 = vsel %vm268, %v3334, %v3338
      %v3341 = vshrl.u32 %v3103, 16
      %v3343 = vrot.slane %v3341, 4
      %v3344 = vshll.u32 %v3103, 16
      %v3346 = vrot.slane %v3344, 5
      %v3347 = vor.u32 %v3343, %v3346
      %v3348 = vrot.slane %v3347, 4
      %v3350 = vshll.u32 %v3104, 16
      %v3352 = vrot.slane %v3350, 5
      %v3353 = vsel %vm268, %v3348, %v3352
      %v3354 = vshrl.u32 %v3104, 16
      %v3356 = vrot.slane %v3354, 4
      %v3357 = vor.u32 %v3356, %v3352
      %v3358 = vrot.slane %v3357, 4
      %v3360 = vshll.u32 %v3105, 16
      %v3362 = vrot.slane %v3360, 5
      %v3363 = vsel %vm268, %v3358, %v3362
      %v3365 = vshrl.u32 %v3106, 16
      %v3367 = vrot.slane %v3365, 4
      %v3368 = vshll.u32 %v3106, 16
      %v3370 = vrot.slane %v3368, 5
      %v3371 = vor.u32 %v3367, %v3370
      %v3372 = vrot.slane %v3371, 4
      %v3374 = vshll.u32 %v3107, 16
      %v3376 = vrot.slane %v3374, 5
      %v3377 = vsel %vm268, %v3372, %v3376
      %v3378 = vshrl.u32 %v3107, 16
      %v3380 = vrot.slane %v3378, 4
      %v3381 = vor.u32 %v3380, %v3376
      %v3382 = vrot.slane %v3381, 4
      %v3384 = vshll.u32 %v3108, 16
      %v3386 = vrot.slane %v3384, 5
      %v3387 = vsel %vm268, %v3382, %v3386
      %v3389 = vshrl.u32 %v3109, 16
      %v3391 = vrot.slane %v3389, 4
      %v3392 = vshll.u32 %v3109, 16
      %v3394 = vrot.slane %v3392, 5
      %v3395 = vor.u32 %v3391, %v3394
      %v3396 = vrot.slane %v3395, 4
      %v3398 = vshll.u32 %v3110, 16
      %v3400 = vrot.slane %v3398, 5
      %v3401 = vsel %vm268, %v3396, %v3400
      %v3402 = vshrl.u32 %v3110, 16
      %v3404 = vrot.slane %v3402, 4
      %v3405 = vor.u32 %v3404, %v3400
      %v3406 = vrot.slane %v3405, 4
      %v3408 = vshll.u32 %v3111, 16
      %v3410 = vrot.slane %v3408, 5
      %v3411 = vsel %vm268, %v3406, %v3410
      %v3413 = vshrl.u32 %v3112, 16
      %v3415 = vrot.slane %v3413, 4
      %v3416 = vshll.u32 %v3112, 16
      %v3418 = vrot.slane %v3416, 5
      %v3419 = vor.u32 %v3415, %v3418
      %v3420 = vrot.slane %v3419, 4
      %v3422 = vshll.u32 %v3113, 16
      %v3424 = vrot.slane %v3422, 5
      %v3425 = vsel %vm268, %v3420, %v3424
      %v3426 = vshrl.u32 %v3113, 16
      %v3428 = vrot.slane %v3426, 4
      %v3429 = vor.u32 %v3428, %v3424
      %v3430 = vrot.slane %v3429, 4
      %v3432 = vshll.u32 %v3114, 16
      %v3434 = vrot.slane %v3432, 5
      %v3435 = vsel %vm268, %v3430, %v3434
      %v3437 = vshrl.u32 %v3115, 16
      %v3439 = vrot.slane %v3437, 4
      %v3440 = vshll.u32 %v3115, 16
      %v3442 = vrot.slane %v3440, 5
      %v3443 = vor.u32 %v3439, %v3442
      %v3444 = vrot.slane %v3443, 4
      %v3446 = vshll.u32 %v3116, 16
      %v3448 = vrot.slane %v3446, 5
      %v3449 = vsel %vm268, %v3444, %v3448
      %v3450 = vshrl.u32 %v3116, 16
      %v3452 = vrot.slane %v3450, 4
      %v3453 = vor.u32 %v3452, %v3448
      %v3454 = vrot.slane %v3453, 4
      %v3456 = vshll.u32 %v3117, 16
      %v3458 = vrot.slane %v3456, 5
      %v3459 = vsel %vm268, %v3454, %v3458
      %v3461 = vshrl.u32 %v3118, 16
      %v3463 = vrot.slane %v3461, 4
      %v3464 = vshll.u32 %v3118, 16
      %v3466 = vrot.slane %v3464, 5
      %v3467 = vor.u32 %v3463, %v3466
      %v3468 = vrot.slane %v3467, 4
      %v3470 = vshll.u32 %v3119, 16
      %v3472 = vrot.slane %v3470, 5
      %v3473 = vsel %vm268, %v3468, %v3472
      %v3474 = vshrl.u32 %v3119, 16
      %v3476 = vrot.slane %v3474, 4
      %v3477 = vor.u32 %v3476, %v3472
      %v3478 = vrot.slane %v3477, 4
      %v3480 = vshll.u32 %v3120, 16
      %v3482 = vrot.slane %v3480, 5
      %v3483 = vsel %vm268, %v3478, %v3482
      %v3485 = vshrl.u32 %v3121, 16
      %v3487 = vrot.slane %v3485, 4
      %v3488 = vshll.u32 %v3121, 16
      %v3490 = vrot.slane %v3488, 5
      %v3491 = vor.u32 %v3487, %v3490
      %v3492 = vrot.slane %v3491, 4
      %v3494 = vshll.u32 %v3122, 16
      %v3496 = vrot.slane %v3494, 5
      %v3497 = vsel %vm268, %v3492, %v3496
      %v3498 = vshrl.u32 %v3122, 16
      %v3500 = vrot.slane %v3498, 4
      %v3501 = vor.u32 %v3500, %v3496
      %v3502 = vrot.slane %v3501, 4
      %v3504 = vshll.u32 %v3123, 16
      %v3506 = vrot.slane %v3504, 5
      %v3507 = vsel %vm268, %v3502, %v3506
      %s3508 = scalar_lea.vmem %s1, 28
      %v3509 = vld [vmem:[%s3508] sm:$0xf]
      %v3510 = vunpack.c.l.b16 %v3137
      %v3511 = vunpack.c.l.b16 %v3147
      %v3512 = vunpack.c.l.b16 %v3161
      %v3513 = vunpack.c.l.b16 %v3171
      %v3514 = vunpack.c.l.b16 %v3185
      %v3515 = vunpack.c.l.b16 %v3195
      %v3516 = vunpack.c.l.b16 %v3209
      %v3517 = vunpack.c.l.b16 %v3219
      %v3518 = vunpack.c.l.b16 %v3233
      %v3519 = vunpack.c.l.b16 %v3243
      %v3520 = vunpack.c.l.b16 %v3257
      %v3521 = vunpack.c.l.b16 %v3267
      %v3522 = vunpack.c.l.b16 %v3281
      %v3523 = vunpack.c.l.b16 %v3291
      %v3524 = vunpack.c.l.b16 %v3305
      %v3525 = vunpack.c.l.b16 %v3315
      %v3526 = vunpack.c.l.b16 %v3329
      %v3527 = vunpack.c.l.b16 %v3339
      %v3528 = vunpack.c.l.b16 %v3353
      %v3529 = vunpack.c.l.b16 %v3363
      %v3530 = vunpack.c.l.b16 %v3377
      %v3531 = vunpack.c.l.b16 %v3387
      %v3532 = vunpack.c.l.b16 %v3401
      %v3533 = vunpack.c.l.b16 %v3411
      %v3534 = vunpack.c.l.b16 %v3425
      %v3535 = vunpack.c.l.b16 %v3435
      %v3536 = vunpack.c.l.b16 %v3449
      %v3537 = vunpack.c.l.b16 %v3459
      %v3538 = vunpack.c.l.b16 %v3473
      %v3539 = vunpack.c.l.b16 %v3483
      %v3540 = vunpack.c.l.b16 %v3497
      %v3541 = vunpack.c.l.b16 %v3507
      %v3542 = vpack.c.b16 %v3511, %v3510
      %v3543 = vpack.c.b16 %v3513, %v3512
      %v3544 = vpack.c.b16 %v3515, %v3514
      %v3545 = vpack.c.b16 %v3517, %v3516
      %v3546 = vpack.c.b16 %v3519, %v3518
      %v3547 = vpack.c.b16 %v3521, %v3520
      %v3548 = vpack.c.b16 %v3523, %v3522
      %v3549 = vpack.c.b16 %v3525, %v3524
      %v3550 = vpack.c.b16 %v3527, %v3526
      %v3551 = vpack.c.b16 %v3529, %v3528
      %v3552 = vpack.c.b16 %v3531, %v3530
      %v3553 = vpack.c.b16 %v3533, %v3532
      %v3554 = vpack.c.b16 %v3535, %v3534
      %v3555 = vpack.c.b16 %v3537, %v3536
      %v3556 = vpack.c.b16 %v3539, %v3538
      %v3557 = vpack.c.b16 %v3541, %v3540
      %v3559 = vsel %vm703, %v3542, 0
      %v3562 = vsel %vm703, %v3543, 0
      %v3565 = vsel %vm703, %v3544, 0
      %v3568 = vsel %vm703, %v3545, 0
      %v3571 = vsel %vm703, %v3546, 0
      %v3574 = vsel %vm703, %v3547, 0
      %v3577 = vsel %vm703, %v3548, 0
      %v3580 = vsel %vm703, %v3549, 0
      %v3583 = vsel %vm703, %v3550, 0
      %v3586 = vsel %vm703, %v3551, 0
      %v3589 = vsel %vm703, %v3552, 0
      %v3592 = vsel %vm703, %v3553, 0
      %v3595 = vsel %vm703, %v3554, 0
      %v3598 = vsel %vm703, %v3555, 0
      %v3601 = vsel %vm703, %v3556, 0
      %v3604 = vsel %vm703, %v3557, 0
      %v3607 = vsel %vm752, %v3509, 0
      %3609 = vmatpush.bf16.msra.mxu0 0
      %3610 = vmatpush.bf16.msra.mxu0 0
      %3611 = vmatpush.bf16.msra.mxu0 0
      %3612 = vmatpush.bf16.msra.mxu0 0
      %3613 = vmatpush.bf16.msra.mxu0 0
      %3614 = vmatpush.bf16.msra.mxu0 0
      %3615 = vmatpush.bf16.msra.mxu0 0
      %3616 = vmatpush.bf16.msra.mxu0 %v3607
      %3617 = vmatmul.bf16.gmra.mxu0 %v3559
      %v3618 = vpop.f32.mrf.mxu0
      %v3619 = vadd.f32 0.0, %v3618
      %v3620 = vpop.f32.mrf.mxu0
      %v3621 = vadd.f32 0.0, %v3620
      %3622 = vmatmul.bf16.gmra.mxu0 %v3562
      %v3623 = vpop.f32.mrf.mxu0
      %v3624 = vadd.f32 0.0, %v3623
      %v3625 = vpop.f32.mrf.mxu0
      %v3626 = vadd.f32 0.0, %v3625
      %3627 = vmatmul.bf16.gmra.mxu0 %v3565
      %v3628 = vpop.f32.mrf.mxu0
      %v3629 = vadd.f32 0.0, %v3628
      %v3630 = vpop.f32.mrf.mxu0
      %v3631 = vadd.f32 0.0, %v3630
      %3632 = vmatmul.bf16.gmra.mxu0 %v3568
      %v3633 = vpop.f32.mrf.mxu0
      %v3634 = vadd.f32 0.0, %v3633
      %v3635 = vpop.f32.mrf.mxu0
      %v3636 = vadd.f32 0.0, %v3635
      %3637 = vmatmul.bf16.gmra.mxu0 %v3571
      %v3638 = vpop.f32.mrf.mxu0
      %v3639 = vadd.f32 0.0, %v3638
      %v3640 = vpop.f32.mrf.mxu0
      %v3641 = vadd.f32 0.0, %v3640
      %3642 = vmatmul.bf16.gmra.mxu0 %v3574
      %v3643 = vpop.f32.mrf.mxu0
      %v3644 = vadd.f32 0.0, %v3643
      %v3645 = vpop.f32.mrf.mxu0
      %v3646 = vadd.f32 0.0, %v3645
      %3647 = vmatmul.bf16.gmra.mxu0 %v3577
      %v3648 = vpop.f32.mrf.mxu0
      %v3649 = vadd.f32 0.0, %v3648
      %v3650 = vpop.f32.mrf.mxu0
      %v3651 = vadd.f32 0.0, %v3650
      %3652 = vmatmul.bf16.gmra.mxu0 %v3580
      %v3653 = vpop.f32.mrf.mxu0
      %v3654 = vadd.f32 0.0, %v3653
      %v3655 = vpop.f32.mrf.mxu0
      %v3656 = vadd.f32 0.0, %v3655
      %3657 = vmatmul.bf16.gmra.mxu0 %v3583
      %v3658 = vpop.f32.mrf.mxu0
      %v3659 = vadd.f32 0.0, %v3658
      %v3660 = vpop.f32.mrf.mxu0
      %v3661 = vadd.f32 0.0, %v3660
      %3662 = vmatmul.bf16.gmra.mxu0 %v3586
      %v3663 = vpop.f32.mrf.mxu0
      %v3664 = vadd.f32 0.0, %v3663
      %v3665 = vpop.f32.mrf.mxu0
      %v3666 = vadd.f32 0.0, %v3665
      %3667 = vmatmul.bf16.gmra.mxu0 %v3589
      %v3668 = vpop.f32.mrf.mxu0
      %v3669 = vadd.f32 0.0, %v3668
      %v3670 = vpop.f32.mrf.mxu0
      %v3671 = vadd.f32 0.0, %v3670
      %3672 = vmatmul.bf16.gmra.mxu0 %v3592
      %v3673 = vpop.f32.mrf.mxu0
      %v3674 = vadd.f32 0.0, %v3673
      %v3675 = vpop.f32.mrf.mxu0
      %v3676 = vadd.f32 0.0, %v3675
      %3677 = vmatmul.bf16.gmra.mxu0 %v3595
      %v3678 = vpop.f32.mrf.mxu0
      %v3679 = vadd.f32 0.0, %v3678
      %v3680 = vpop.f32.mrf.mxu0
      %v3681 = vadd.f32 0.0, %v3680
      %3682 = vmatmul.bf16.gmra.mxu0 %v3598
      %v3683 = vpop.f32.mrf.mxu0
      %v3684 = vadd.f32 0.0, %v3683
      %v3685 = vpop.f32.mrf.mxu0
      %v3686 = vadd.f32 0.0, %v3685
      %3687 = vmatmul.bf16.gmra.mxu0 %v3601
      %v3688 = vpop.f32.mrf.mxu0
      %v3689 = vadd.f32 0.0, %v3688
      %v3690 = vpop.f32.mrf.mxu0
      %v3691 = vadd.f32 0.0, %v3690
      %3692 = vmatmul.bf16.gmra.mxu0 %v3604
      %v3693 = vpop.f32.mrf.mxu0
      %v3694 = vadd.f32 0.0, %v3693
      %v3695 = vpop.f32.mrf.mxu0
      %v3696 = vadd.f32 0.0, %v3695
      %3697 = vdwg.mxu0
      %v3698 = vadd.f32 %v3044, %v3619
      %v3699 = vadd.f32 %v3045, %v3621
      %v3700 = vadd.f32 %v3046, %v3624
      %v3701 = vadd.f32 %v3047, %v3626
      %v3702 = vadd.f32 %v3048, %v3629
      %v3703 = vadd.f32 %v3049, %v3631
      %v3704 = vadd.f32 %v3050, %v3634
      %v3705 = vadd.f32 %v3051, %v3636
      %v3706 = vadd.f32 %v3052, %v3639
      %v3707 = vadd.f32 %v3053, %v3641
      %v3708 = vadd.f32 %v3054, %v3644
      %v3709 = vadd.f32 %v3055, %v3646
      %v3710 = vadd.f32 %v3056, %v3649
      %v3711 = vadd.f32 %v3057, %v3651
      %v3712 = vadd.f32 %v3058, %v3654
      %v3713 = vadd.f32 %v3059, %v3656
      %v3714 = vadd.f32 %v3060, %v3659
      %v3715 = vadd.f32 %v3061, %v3661
      %v3716 = vadd.f32 %v3062, %v3664
      %v3717 = vadd.f32 %v3063, %v3666
      %v3718 = vadd.f32 %v3064, %v3669
      %v3719 = vadd.f32 %v3065, %v3671
      %v3720 = vadd.f32 %v3066, %v3674
      %v3721 = vadd.f32 %v3067, %v3676
      %v3722 = vadd.f32 %v3068, %v3679
      %v3723 = vadd.f32 %v3069, %v3681
      %v3724 = vadd.f32 %v3070, %v3684
      %v3725 = vadd.f32 %v3071, %v3686
      %v3726 = vadd.f32 %v3072, %v3689
      %v3727 = vadd.f32 %v3073, %v3691
      %v3728 = vadd.f32 %v3074, %v3694
      %v3729 = vadd.f32 %v3075, %v3696
      %v3730 = vld [vmem:[%s2789] sm:$0xe]
      %v3731 = vld [vmem:[%s2789 + $0xc] sm:$0xe]
      %v3732 = vld [vmem:[%s2789 + $0x18] sm:$0xe]
      %v3733 = vld [vmem:[%s2789 + $0x24] sm:$0xe]
      %v3734 = vld [vmem:[%s2789 + $0x30] sm:$0xe]
      %v3735 = vld [vmem:[%s2789 + $0x3c] sm:$0xe]
      %v3736 = vld [vmem:[%s2789 + $0x48] sm:$0xe]
      %v3737 = vld [vmem:[%s2789 + $0x54] sm:$0xe]
      %v3738 = vld [vmem:[%s2789 + $0x60] sm:$0xe]
      %v3739 = vld [vmem:[%s2789 + $0x6c] sm:$0xe]
      %v3740 = vld [vmem:[%s2789 + $0x78] sm:$0xe]
      %v3741 = vld [vmem:[%s2789 + $0x84] sm:$0xe]
      %v3742 = vld [vmem:[%s2789 + $0x90] sm:$0xe]
      %v3743 = vld [vmem:[%s2789 + $0x9c] sm:$0xe]
      %v3744 = vld [vmem:[%s2789 + $0xa8] sm:$0xe]
      %v3745 = vld [vmem:[%s2789 + $0xb4] sm:$0xe]
      %v3794 = vrot.slane %v3730, 5
      %v3795 = vrot.slane %v3794, 4
      %v3796 = vrot.slane %v3077, 5
      %v3797 = vsel %vm1115, %v3795, %v3796
      %v3798 = vrot.slane %v3796, 4
      %v3799 = vrot.slane %v3078, 5
      %v3800 = vsel %vm1115, %v3798, %v3799
      %v3801 = vrot.slane %v3731, 5
      %v3802 = vrot.slane %v3801, 4
      %v3803 = vrot.slane %v3080, 5
      %v3804 = vsel %vm1115, %v3802, %v3803
      %v3805 = vrot.slane %v3803, 4
      %v3806 = vrot.slane %v3081, 5
      %v3807 = vsel %vm1115, %v3805, %v3806
      %v3808 = vrot.slane %v3732, 5
      %v3809 = vrot.slane %v3808, 4
      %v3810 = vrot.slane %v3083, 5
      %v3811 = vsel %vm1115, %v3809, %v3810
      %v3812 = vrot.slane %v3810, 4
      %v3813 = vrot.slane %v3084, 5
      %v3814 = vsel %vm1115, %v3812, %v3813
      %v3815 = vrot.slane %v3733, 5
      %v3816 = vrot.slane %v3815, 4
      %v3817 = vrot.slane %v3086, 5
      %v3818 = vsel %vm1115, %v3816, %v3817
      %v3819 = vrot.slane %v3817, 4
      %v3820 = vrot.slane %v3087, 5
      %v3821 = vsel %vm1115, %v3819, %v3820
      %v3822 = vrot.slane %v3734, 5
      %v3823 = vrot.slane %v3822, 4
      %v3824 = vrot.slane %v3089, 5
      %v3825 = vsel %vm1115, %v3823, %v3824
      %v3826 = vrot.slane %v3824, 4
      %v3827 = vrot.slane %v3090, 5
      %v3828 = vsel %vm1115, %v3826, %v3827
      %v3829 = vrot.slane %v3735, 5
      %v3830 = vrot.slane %v3829, 4
      %v3831 = vrot.slane %v3092, 5
      %v3832 = vsel %vm1115, %v3830, %v3831
      %v3833 = vrot.slane %v3831, 4
      %v3834 = vrot.slane %v3093, 5
      %v3835 = vsel %vm1115, %v3833, %v3834
      %v3836 = vrot.slane %v3736, 5
      %v3837 = vrot.slane %v3836, 4
      %v3838 = vrot.slane %v3095, 5
      %v3839 = vsel %vm1115, %v3837, %v3838
      %v3840 = vrot.slane %v3838, 4
      %v3841 = vrot.slane %v3096, 5
      %v3842 = vsel %vm1115, %v3840, %v3841
      %v3843 = vrot.slane %v3737, 5
      %v3844 = vrot.slane %v3843, 4
      %v3845 = vrot.slane %v3098, 5
      %v3846 = vsel %vm1115, %v3844, %v3845
      %v3847 = vrot.slane %v3845, 4
      %v3848 = vrot.slane %v3099, 5
      %v3849 = vsel %vm1115, %v3847, %v3848
      %v3850 = vrot.slane %v3738, 5
      %v3851 = vrot.slane %v3850, 4
      %v3852 = vrot.slane %v3101, 5
      %v3853 = vsel %vm1115, %v3851, %v3852
      %v3854 = vrot.slane %v3852, 4
      %v3855 = vrot.slane %v3102, 5
      %v3856 = vsel %vm1115, %v3854, %v3855
      %v3857 = vrot.slane %v3739, 5
      %v3858 = vrot.slane %v3857, 4
      %v3859 = vrot.slane %v3104, 5
      %v3860 = vsel %vm1115, %v3858, %v3859
      %v3861 = vrot.slane %v3859, 4
      %v3862 = vrot.slane %v3105, 5
      %v3863 = vsel %vm1115, %v3861, %v3862
      %v3864 = vrot.slane %v3740, 5
      %v3865 = vrot.slane %v3864, 4
      %v3866 = vrot.slane %v3107, 5
      %v3867 = vsel %vm1115, %v3865, %v3866
      %v3868 = vrot.slane %v3866, 4
      %v3869 = vrot.slane %v3108, 5
      %v3870 = vsel %vm1115, %v3868, %v3869
      %v3871 = vrot.slane %v3741, 5
      %v3872 = vrot.slane %v3871, 4
      %v3873 = vrot.slane %v3110, 5
      %v3874 = vsel %vm1115, %v3872, %v3873
      %v3875 = vrot.slane %v3873, 4
      %v3876 = vrot.slane %v3111, 5
      %v3877 = vsel %vm1115, %v3875, %v3876
      %v3878 = vrot.slane %v3742, 5
      %v3879 = vrot.slane %v3878, 4
      %v3880 = vrot.slane %v3113, 5
      %v3881 = vsel %vm1115, %v3879, %v3880
      %v3882 = vrot.slane %v3880, 4
      %v3883 = vrot.slane %v3114, 5
      %v3884 = vsel %vm1115, %v3882, %v3883
      %v3885 = vrot.slane %v3743, 5
      %v3886 = vrot.slane %v3885, 4
      %v3887 = vrot.slane %v3116, 5
      %v3888 = vsel %vm1115, %v3886, %v3887
      %v3889 = vrot.slane %v3887, 4
      %v3890 = vrot.slane %v3117, 5
      %v3891 = vsel %vm1115, %v3889, %v3890
      %v3892 = vrot.slane %v3744, 5
      %v3893 = vrot.slane %v3892, 4
      %v3894 = vrot.slane %v3119, 5
      %v3895 = vsel %vm1115, %v3893, %v3894
      %v3896 = vrot.slane %v3894, 4
      %v3897 = vrot.slane %v3120, 5
      %v3898 = vsel %vm1115, %v3896, %v3897
      %v3899 = vrot.slane %v3745, 5
      %v3900 = vrot.slane %v3899, 4
      %v3901 = vrot.slane %v3122, 5
      %v3902 = vsel %vm1115, %v3900, %v3901
      %v3903 = vrot.slane %v3901, 4
      %v3904 = vrot.slane %v3123, 5
      %v3905 = vsel %vm1115, %v3903, %v3904
      %s3906 = scalar_lea.vmem %s1, 32
      %v3907 = vld [vmem:[%s3906] sm:$0xf]
      %v3908 = vunpack.c.l.b16 %v3797
      %v3909 = vunpack.c.l.b16 %v3800
      %v3910 = vunpack.c.l.b16 %v3804
      %v3911 = vunpack.c.l.b16 %v3807
      %v3912 = vunpack.c.l.b16 %v3811
      %v3913 = vunpack.c.l.b16 %v3814
      %v3914 = vunpack.c.l.b16 %v3818
      %v3915 = vunpack.c.l.b16 %v3821
      %v3916 = vunpack.c.l.b16 %v3825
      %v3917 = vunpack.c.l.b16 %v3828
      %v3918 = vunpack.c.l.b16 %v3832
      %v3919 = vunpack.c.l.b16 %v3835
      %v3920 = vunpack.c.l.b16 %v3839
      %v3921 = vunpack.c.l.b16 %v3842
      %v3922 = vunpack.c.l.b16 %v3846
      %v3923 = vunpack.c.l.b16 %v3849
      %v3924 = vunpack.c.l.b16 %v3853
      %v3925 = vunpack.c.l.b16 %v3856
      %v3926 = vunpack.c.l.b16 %v3860
      %v3927 = vunpack.c.l.b16 %v3863
      %v3928 = vunpack.c.l.b16 %v3867
      %v3929 = vunpack.c.l.b16 %v3870
      %v3930 = vunpack.c.l.b16 %v3874
      %v3931 = vunpack.c.l.b16 %v3877
      %v3932 = vunpack.c.l.b16 %v3881
      %v3933 = vunpack.c.l.b16 %v3884
      %v3934 = vunpack.c.l.b16 %v3888
      %v3935 = vunpack.c.l.b16 %v3891
      %v3936 = vunpack.c.l.b16 %v3895
      %v3937 = vunpack.c.l.b16 %v3898
      %v3938 = vunpack.c.l.b16 %v3902
      %v3939 = vunpack.c.l.b16 %v3905
      %v3940 = vpack.c.b16 %v3909, %v3908
      %v3941 = vpack.c.b16 %v3911, %v3910
      %v3942 = vpack.c.b16 %v3913, %v3912
      %v3943 = vpack.c.b16 %v3915, %v3914
      %v3944 = vpack.c.b16 %v3917, %v3916
      %v3945 = vpack.c.b16 %v3919, %v3918
      %v3946 = vpack.c.b16 %v3921, %v3920
      %v3947 = vpack.c.b16 %v3923, %v3922
      %v3948 = vpack.c.b16 %v3925, %v3924
      %v3949 = vpack.c.b16 %v3927, %v3926
      %v3950 = vpack.c.b16 %v3929, %v3928
      %v3951 = vpack.c.b16 %v3931, %v3930
      %v3952 = vpack.c.b16 %v3933, %v3932
      %v3953 = vpack.c.b16 %v3935, %v3934
      %v3954 = vpack.c.b16 %v3937, %v3936
      %v3955 = vpack.c.b16 %v3939, %v3938
      %v3957 = vsel %vm703, %v3940, 0
      %v3960 = vsel %vm703, %v3941, 0
      %v3963 = vsel %vm703, %v3942, 0
      %v3966 = vsel %vm703, %v3943, 0
      %v3969 = vsel %vm703, %v3944, 0
      %v3972 = vsel %vm703, %v3945, 0
      %v3975 = vsel %vm703, %v3946, 0
      %v3978 = vsel %vm703, %v3947, 0
      %v3981 = vsel %vm703, %v3948, 0
      %v3984 = vsel %vm703, %v3949, 0
      %v3987 = vsel %vm703, %v3950, 0
      %v3990 = vsel %vm703, %v3951, 0
      %v3993 = vsel %vm703, %v3952, 0
      %v3996 = vsel %vm703, %v3953, 0
      %v3999 = vsel %vm703, %v3954, 0
      %v4002 = vsel %vm703, %v3955, 0
      %v4005 = vsel %vm752, %v3907, 0
      %4007 = vmatpush.bf16.msra.mxu0 0
      %4008 = vmatpush.bf16.msra.mxu0 0
      %4009 = vmatpush.bf16.msra.mxu0 0
      %4010 = vmatpush.bf16.msra.mxu0 0
      %4011 = vmatpush.bf16.msra.mxu0 0
      %4012 = vmatpush.bf16.msra.mxu0 0
      %4013 = vmatpush.bf16.msra.mxu0 0
      %4014 = vmatpush.bf16.msra.mxu0 %v4005
      %4015 = vmatmul.bf16.gmra.mxu0 %v3957
      %v4016 = vpop.f32.mrf.mxu0
      %v4017 = vadd.f32 0.0, %v4016
      %v4018 = vpop.f32.mrf.mxu0
      %v4019 = vadd.f32 0.0, %v4018
      %4020 = vmatmul.bf16.gmra.mxu0 %v3960
      %v4021 = vpop.f32.mrf.mxu0
      %v4022 = vadd.f32 0.0, %v4021
      %v4023 = vpop.f32.mrf.mxu0
      %v4024 = vadd.f32 0.0, %v4023
      %4025 = vmatmul.bf16.gmra.mxu0 %v3963
      %v4026 = vpop.f32.mrf.mxu0
      %v4027 = vadd.f32 0.0, %v4026
      %v4028 = vpop.f32.mrf.mxu0
      %v4029 = vadd.f32 0.0, %v4028
      %4030 = vmatmul.bf16.gmra.mxu0 %v3966
      %v4031 = vpop.f32.mrf.mxu0
      %v4032 = vadd.f32 0.0, %v4031
      %v4033 = vpop.f32.mrf.mxu0
      %v4034 = vadd.f32 0.0, %v4033
      %4035 = vmatmul.bf16.gmra.mxu0 %v3969
      %v4036 = vpop.f32.mrf.mxu0
      %v4037 = vadd.f32 0.0, %v4036
      %v4038 = vpop.f32.mrf.mxu0
      %v4039 = vadd.f32 0.0, %v4038
      %4040 = vmatmul.bf16.gmra.mxu0 %v3972
      %v4041 = vpop.f32.mrf.mxu0
      %v4042 = vadd.f32 0.0, %v4041
      %v4043 = vpop.f32.mrf.mxu0
      %v4044 = vadd.f32 0.0, %v4043
      %4045 = vmatmul.bf16.gmra.mxu0 %v3975
      %v4046 = vpop.f32.mrf.mxu0
      %v4047 = vadd.f32 0.0, %v4046
      %v4048 = vpop.f32.mrf.mxu0
      %v4049 = vadd.f32 0.0, %v4048
      %4050 = vmatmul.bf16.gmra.mxu0 %v3978
      %v4051 = vpop.f32.mrf.mxu0
      %v4052 = vadd.f32 0.0, %v4051
      %v4053 = vpop.f32.mrf.mxu0
      %v4054 = vadd.f32 0.0, %v4053
      %4055 = vmatmul.bf16.gmra.mxu0 %v3981
      %v4056 = vpop.f32.mrf.mxu0
      %v4057 = vadd.f32 0.0, %v4056
      %v4058 = vpop.f32.mrf.mxu0
      %v4059 = vadd.f32 0.0, %v4058
      %4060 = vmatmul.bf16.gmra.mxu0 %v3984
      %v4061 = vpop.f32.mrf.mxu0
      %v4062 = vadd.f32 0.0, %v4061
      %v4063 = vpop.f32.mrf.mxu0
      %v4064 = vadd.f32 0.0, %v4063
      %4065 = vmatmul.bf16.gmra.mxu0 %v3987
      %v4066 = vpop.f32.mrf.mxu0
      %v4067 = vadd.f32 0.0, %v4066
      %v4068 = vpop.f32.mrf.mxu0
      %v4069 = vadd.f32 0.0, %v4068
      %4070 = vmatmul.bf16.gmra.mxu0 %v3990
      %v4071 = vpop.f32.mrf.mxu0
      %v4072 = vadd.f32 0.0, %v4071
      %v4073 = vpop.f32.mrf.mxu0
      %v4074 = vadd.f32 0.0, %v4073
      %4075 = vmatmul.bf16.gmra.mxu0 %v3993
      %v4076 = vpop.f32.mrf.mxu0
      %v4077 = vadd.f32 0.0, %v4076
      %v4078 = vpop.f32.mrf.mxu0
      %v4079 = vadd.f32 0.0, %v4078
      %4080 = vmatmul.bf16.gmra.mxu0 %v3996
      %v4081 = vpop.f32.mrf.mxu0
      %v4082 = vadd.f32 0.0, %v4081
      %v4083 = vpop.f32.mrf.mxu0
      %v4084 = vadd.f32 0.0, %v4083
      %4085 = vmatmul.bf16.gmra.mxu0 %v3999
      %v4086 = vpop.f32.mrf.mxu0
      %v4087 = vadd.f32 0.0, %v4086
      %v4088 = vpop.f32.mrf.mxu0
      %v4089 = vadd.f32 0.0, %v4088
      %4090 = vmatmul.bf16.gmra.mxu0 %v4002
      %v4091 = vpop.f32.mrf.mxu0
      %v4092 = vadd.f32 0.0, %v4091
      %v4093 = vpop.f32.mrf.mxu0
      %v4094 = vadd.f32 0.0, %v4093
      %4095 = vdwg.mxu0
      %v4096 = vadd.f32 %v3698, %v4017
      %v4097 = vadd.f32 %v3699, %v4019
      %v4098 = vadd.f32 %v3700, %v4022
      %v4099 = vadd.f32 %v3701, %v4024
      %v4100 = vadd.f32 %v3702, %v4027
      %v4101 = vadd.f32 %v3703, %v4029
      %v4102 = vadd.f32 %v3704, %v4032
      %v4103 = vadd.f32 %v3705, %v4034
      %v4104 = vadd.f32 %v3706, %v4037
      %v4105 = vadd.f32 %v3707, %v4039
      %v4106 = vadd.f32 %v3708, %v4042
      %v4107 = vadd.f32 %v3709, %v4044
      %v4108 = vadd.f32 %v3710, %v4047
      %v4109 = vadd.f32 %v3711, %v4049
      %v4110 = vadd.f32 %v3712, %v4052
      %v4111 = vadd.f32 %v3713, %v4054
      %v4112 = vadd.f32 %v3714, %v4057
      %v4113 = vadd.f32 %v3715, %v4059
      %v4114 = vadd.f32 %v3716, %v4062
      %v4115 = vadd.f32 %v3717, %v4064
      %v4116 = vadd.f32 %v3718, %v4067
      %v4117 = vadd.f32 %v3719, %v4069
      %v4118 = vadd.f32 %v3720, %v4072
      %v4119 = vadd.f32 %v3721, %v4074
      %v4120 = vadd.f32 %v3722, %v4077
      %v4121 = vadd.f32 %v3723, %v4079
      %v4122 = vadd.f32 %v3724, %v4082
      %v4123 = vadd.f32 %v3725, %v4084
      %v4124 = vadd.f32 %v3726, %v4087
      %v4125 = vadd.f32 %v3727, %v4089
      %v4126 = vadd.f32 %v3728, %v4092
      %v4127 = vadd.f32 %v3729, %v4094
      %v4128 = vpack.c.bf16 %v4096, %v4096
      %v4129 = vpack.c.bf16 %v4097, %v4097
      %v4130 = vpack.c.bf16 %v4098, %v4098
      %v4131 = vpack.c.bf16 %v4099, %v4099
      %v4132 = vpack.c.bf16 %v4100, %v4100
      %v4133 = vpack.c.bf16 %v4101, %v4101
      %v4134 = vpack.c.bf16 %v4102, %v4102
      %v4135 = vpack.c.bf16 %v4103, %v4103
      %v4136 = vpack.c.bf16 %v4104, %v4104
      %v4137 = vpack.c.bf16 %v4105, %v4105
      %v4138 = vpack.c.bf16 %v4106, %v4106
      %v4139 = vpack.c.bf16 %v4107, %v4107
      %v4140 = vpack.c.bf16 %v4108, %v4108
      %v4141 = vpack.c.bf16 %v4109, %v4109
      %v4142 = vpack.c.bf16 %v4110, %v4110
      %v4143 = vpack.c.bf16 %v4111, %v4111
      %v4144 = vpack.c.bf16 %v4112, %v4112
      %v4145 = vpack.c.bf16 %v4113, %v4113
      %v4146 = vpack.c.bf16 %v4114, %v4114
      %v4147 = vpack.c.bf16 %v4115, %v4115
      %v4148 = vpack.c.bf16 %v4116, %v4116
      %v4149 = vpack.c.bf16 %v4117, %v4117
      %v4150 = vpack.c.bf16 %v4118, %v4118
      %v4151 = vpack.c.bf16 %v4119, %v4119
      %v4152 = vpack.c.bf16 %v4120, %v4120
      %v4153 = vpack.c.bf16 %v4121, %v4121
      %v4154 = vpack.c.bf16 %v4122, %v4122
      %v4155 = vpack.c.bf16 %v4123, %v4123
      %v4156 = vpack.c.bf16 %v4124, %v4124
      %v4157 = vpack.c.bf16 %v4125, %v4125
      %v4158 = vpack.c.bf16 %v4126, %v4126
      %v4159 = vpack.c.bf16 %v4127, %v4127
      %4160 = vst [vmem:[%s208] sm:$0xf] %v4128
      %4161 = vst [vmem:[%s208 + $0x4] sm:$0xf] %v4129
      %4162 = vst [vmem:[%s208 + $0x8] sm:$0xf] %v4130
      %4163 = vst [vmem:[%s208 + $0xc] sm:$0xf] %v4131
      %4164 = vst [vmem:[%s208 + $0x10] sm:$0xf] %v4132
      %4165 = vst [vmem:[%s208 + $0x14] sm:$0xf] %v4133
      %4166 = vst [vmem:[%s208 + $0x18] sm:$0xf] %v4134
      %4167 = vst [vmem:[%s208 + $0x1c] sm:$0xf] %v4135
      %4168 = vst [vmem:[%s208 + $0x20] sm:$0xf] %v4136
      %4169 = vst [vmem:[%s208 + $0x24] sm:$0xf] %v4137
      %4170 = vst [vmem:[%s208 + $0x28] sm:$0xf] %v4138
      %4171 = vst [vmem:[%s208 + $0x2c] sm:$0xf] %v4139
      %4172 = vst [vmem:[%s208 + $0x30] sm:$0xf] %v4140
      %4173 = vst [vmem:[%s208 + $0x34] sm:$0xf] %v4141
      %4174 = vst [vmem:[%s208 + $0x38] sm:$0xf] %v4142
      %4175 = vst [vmem:[%s208 + $0x3c] sm:$0xf] %v4143
      %4176 = vst [vmem:[%s208 + $0x40] sm:$0xf] %v4144
      %4177 = vst [vmem:[%s208 + $0x44] sm:$0xf] %v4145
      %4178 = vst [vmem:[%s208 + $0x48] sm:$0xf] %v4146
      %4179 = vst [vmem:[%s208 + $0x4c] sm:$0xf] %v4147
      %4180 = vst [vmem:[%s208 + $0x50] sm:$0xf] %v4148
      %4181 = vst [vmem:[%s208 + $0x54] sm:$0xf] %v4149
      %4182 = vst [vmem:[%s208 + $0x58] sm:$0xf] %v4150
      %4183 = vst [vmem:[%s208 + $0x5c] sm:$0xf] %v4151
      %4184 = vst [vmem:[%s208 + $0x60] sm:$0xf] %v4152
      %4185 = vst [vmem:[%s208 + $0x64] sm:$0xf] %v4153
      %4186 = vst [vmem:[%s208 + $0x68] sm:$0xf] %v4154
      %4187 = vst [vmem:[%s208 + $0x6c] sm:$0xf] %v4155
      %4188 = vst [vmem:[%s208 + $0x70] sm:$0xf] %v4156
      %4189 = vst [vmem:[%s208 + $0x74] sm:$0xf] %v4157
      %4190 = vst [vmem:[%s208 + $0x78] sm:$0xf] %v4158
      %4191 = vst [vmem:[%s208 + $0x7c] sm:$0xf] %v4159
      %v4192 = vadd.f32 %v4096, %v4097
      %v4193 = vadd.f32 %v4192, %v4098
      %v4194 = vadd.f32 %v4193, %v4099
      %v4195 = vadd.f32 %v4194, %v4100
      %v4196 = vadd.f32 %v4195, %v4101
      %v4197 = vadd.f32 %v4196, %v4102
      %v4198 = vadd.f32 %v4197, %v4103
      %v4199 = vadd.f32 %v4198, %v4104
      %v4200 = vadd.f32 %v4199, %v4105
      %v4201 = vadd.f32 %v4200, %v4106
      %v4202 = vadd.f32 %v4201, %v4107
      %v4203 = vadd.f32 %v4202, %v4108
      %v4204 = vadd.f32 %v4203, %v4109
      %v4205 = vadd.f32 %v4204, %v4110
      %v4206 = vadd.f32 %v4205, %v4111
      %v4207 = vadd.f32 %v4206, %v4112
      %v4208 = vadd.f32 %v4207, %v4113
      %v4209 = vadd.f32 %v4208, %v4114
      %v4210 = vadd.f32 %v4209, %v4115
      %v4211 = vadd.f32 %v4210, %v4116
      %v4212 = vadd.f32 %v4211, %v4117
      %v4213 = vadd.f32 %v4212, %v4118
      %v4214 = vadd.f32 %v4213, %v4119
      %v4215 = vadd.f32 %v4214, %v4120
      %v4216 = vadd.f32 %v4215, %v4121
      %v4217 = vadd.f32 %v4216, %v4122
      %v4218 = vadd.f32 %v4217, %v4123
      %v4219 = vadd.f32 %v4218, %v4124
      %v4220 = vadd.f32 %v4219, %v4125
      %v4221 = vadd.f32 %v4220, %v4126
      %v4222 = vadd.f32 %v4221, %v4127
      %v4223 = vrot.slane %v4222, 4
      %v4224 = vadd.f32 %v4222, %v4223
      %v4225 = vrot.slane %v4224, 2
      %v4226 = vadd.f32 %v4224, %v4225
      %v4227 = vrot.slane %v4226, 1
      %v4228 = vadd.f32 %v4226, %v4227
      %4229 = vst [vmem:[%s212] sm:$0x1] %v4228
      %v4230 = vmul.f32 %v4096, %v4096
      %v4231 = vmul.f32 %v4097, %v4097
      %v4232 = vmul.f32 %v4098, %v4098
      %v4233 = vmul.f32 %v4099, %v4099
      %v4234 = vmul.f32 %v4100, %v4100
      %v4235 = vmul.f32 %v4101, %v4101
      %v4236 = vmul.f32 %v4102, %v4102
      %v4237 = vmul.f32 %v4103, %v4103
      %v4238 = vmul.f32 %v4104, %v4104
      %v4239 = vmul.f32 %v4105, %v4105
      %v4240 = vmul.f32 %v4106, %v4106
      %v4241 = vmul.f32 %v4107, %v4107
      %v4242 = vmul.f32 %v4108, %v4108
      %v4243 = vmul.f32 %v4109, %v4109
      %v4244 = vmul.f32 %v4110, %v4110
      %v4245 = vmul.f32 %v4111, %v4111
      %v4246 = vmul.f32 %v4112, %v4112
      %v4247 = vmul.f32 %v4113, %v4113
      %v4248 = vmul.f32 %v4114, %v4114
      %v4249 = vmul.f32 %v4115, %v4115
      %v4250 = vmul.f32 %v4116, %v4116
      %v4251 = vmul.f32 %v4117, %v4117
      %v4252 = vmul.f32 %v4118, %v4118
      %v4253 = vmul.f32 %v4119, %v4119
      %v4254 = vmul.f32 %v4120, %v4120
      %v4255 = vmul.f32 %v4121, %v4121
      %v4256 = vmul.f32 %v4122, %v4122
      %v4257 = vmul.f32 %v4123, %v4123
      %v4258 = vmul.f32 %v4124, %v4124
      %v4259 = vmul.f32 %v4125, %v4125
      %v4260 = vmul.f32 %v4126, %v4126
      %v4261 = vmul.f32 %v4127, %v4127
      %v4262 = vadd.f32 %v4230, %v4231
      %v4263 = vadd.f32 %v4262, %v4232
      %v4264 = vadd.f32 %v4263, %v4233
      %v4265 = vadd.f32 %v4264, %v4234
      %v4266 = vadd.f32 %v4265, %v4235
      %v4267 = vadd.f32 %v4266, %v4236
      %v4268 = vadd.f32 %v4267, %v4237
      %v4269 = vadd.f32 %v4268, %v4238
      %v4270 = vadd.f32 %v4269, %v4239
      %v4271 = vadd.f32 %v4270, %v4240
      %v4272 = vadd.f32 %v4271, %v4241
      %v4273 = vadd.f32 %v4272, %v4242
      %v4274 = vadd.f32 %v4273, %v4243
      %v4275 = vadd.f32 %v4274, %v4244
      %v4276 = vadd.f32 %v4275, %v4245
      %v4277 = vadd.f32 %v4276, %v4246
      %v4278 = vadd.f32 %v4277, %v4247
      %v4279 = vadd.f32 %v4278, %v4248
      %v4280 = vadd.f32 %v4279, %v4249
      %v4281 = vadd.f32 %v4280, %v4250
      %v4282 = vadd.f32 %v4281, %v4251
      %v4283 = vadd.f32 %v4282, %v4252
      %v4284 = vadd.f32 %v4283, %v4253
      %v4285 = vadd.f32 %v4284, %v4254
      %v4286 = vadd.f32 %v4285, %v4255
      %v4287 = vadd.f32 %v4286, %v4256
      %v4288 = vadd.f32 %v4287, %v4257
      %v4289 = vadd.f32 %v4288, %v4258
      %v4290 = vadd.f32 %v4289, %v4259
      %v4291 = vadd.f32 %v4290, %v4260
      %v4292 = vadd.f32 %v4291, %v4261
      %v4293 = vrot.slane %v4292, 4
      %v4294 = vadd.f32 %v4292, %v4293
      %v4295 = vrot.slane %v4294, 2
      %v4296 = vadd.f32 %v4294, %v4295
      %v4297 = vrot.slane %v4296, 1
      %v4298 = vadd.f32 %v4296, %v4297
      %4299 = vst [vmem:[%s215] sm:$0x1] %v4298
      %s4300 = smul.u32 32, %s16
      %p4301 = scmp.lt.s32.totalorder %s4300, 63
      %s4302 = scalar_select %p4301, %s4300, 63
      %s4303 = smul.addr %s4302, 4
      %s4304 = scalar_lea.vmem %s2, %s4303
      %p4305 = scmp.lt.s32.totalorder %s16, 1
      %s4306 = scalar_select %p4305, %s16, 1
      %s4307 = scalar_lea.vmem %s3, %s4306
      %p4308 = scmp.lt.s32.totalorder %s16, 1
      %s4309 = scalar_select %p4308, %s16, 1
      %s4310 = scalar_lea.vmem %s4, %s4309
      // Predicated region
      $region29: #{residual_block_forward.4} parent=27 // pred_check
        %p4311 = pneg %p81
      $region30: #{residual_block_forward.4} parent=27 // pred_check_branch
        %4313 = sbr.rel (%p4311) target = $region32
      $region31: #{residual_block_forward.4} parent=27 // pred_region
        %s4314 = smul.u32 32, %s16
      $region32: #{residual_block_forward.4} parent=27 // pred_fallthru
        _
      // Predicated region
      $region33: #{residual_block_forward.4} parent=27 // pred_check
        %p4315 = pneg %p107
      $region34: #{residual_block_forward.4} parent=27 // pred_check_branch
        %4317 = sbr.rel (%p4315) target = $region36
      $region35: #{residual_block_forward.4} parent=27 // pred_region
        _
      $region36: #{residual_block_forward.4} parent=27 // pred_fallthru
        _
      // Predicated region
      $region37: #{residual_block_forward.4} parent=27 // pred_check
        %p4318 = pneg %p133
      $region38: #{residual_block_forward.4} parent=27 // pred_check_branch
        %4320 = sbr.rel (%p4318) target = $region40
      $region39: #{residual_block_forward.4} parent=27 // pred_region
        _
      $region40: #{residual_block_forward.4} parent=27 // pred_fallthru
        _
    $region28: #{residual_block_forward.4} parent=5 // pred_fallthru
      _
    %p4321 = scmp.le.s32.totalorder 2, %s11
    // Predicated region
    $region41: #{residual_block_forward.4} parent=5 // pred_check
      %p4322 = pneg %p4321
    $region42: #{residual_block_forward.4} parent=5 // pred_check_branch
      %4324 = sbr.rel (%p4322) target = $region44
    $region43: #{residual_block_forward.4} parent=5 // pred_region
      %s4325 = ssub.s32 %s11, 2
      // Predicated region
      $region45: #{residual_block_forward.4} parent=43 // pred_check
        %p4326 = pneg %p87
      $region46: #{residual_block_forward.4} parent=43 // pred_check_branch
        %4328 = sbr.rel (%p4326) target = $region48
      $region47: #{residual_block_forward.4} parent=43 // pred_region
        %s4329 = smul.u32 32, %s17
        %p4330 = scmp.lt.s32.totalorder %s4329, 63
        %s4331 = scalar_select %p4330, %s4329, 63
        %s4332 = smul.addr %s4331, 4
        %s4333 = scalar_lea.vmem %s2, %s4332
      $region48: #{residual_block_forward.4} parent=43 // pred_fallthru
        _
      // Predicated region
      $region49: #{residual_block_forward.4} parent=43 // pred_check
        %p4334 = pneg %p113
      $region50: #{residual_block_forward.4} parent=43 // pred_check_branch
        %4336 = sbr.rel (%p4334) target = $region52
      $region51: #{residual_block_forward.4} parent=43 // pred_region
        %p4337 = scmp.lt.s32.totalorder %s17, 1
        %s4338 = scalar_select %p4337, %s17, 1
        %s4339 = scalar_lea.vmem %s3, %s4338
      $region52: #{residual_block_forward.4} parent=43 // pred_fallthru
        _
      // Predicated region
      $region53: #{residual_block_forward.4} parent=43 // pred_check
        %p4340 = pneg %p139
      $region54: #{residual_block_forward.4} parent=43 // pred_check_branch
        %4342 = sbr.rel (%p4340) target = $region56
      $region55: #{residual_block_forward.4} parent=43 // pred_region
        %p4343 = scmp.lt.s32.totalorder %s17, 1
        %s4344 = scalar_select %p4343, %s17, 1
        %s4345 = scalar_lea.vmem %s4, %s4344
      $region56: #{residual_block_forward.4} parent=43 // pred_fallthru
        _
    $region44: #{residual_block_forward.4} parent=5 // pred_fallthru
      _
  $region6: #{residual_block_forward.4} parent=0 // loop_footer
    %s15 = sadd.s32 1, %s11
  $region7: #{residual_block_forward.4} parent=0 // loop_footer_branch
    %10 = sbr.rel target = $region3
  $region8: #{residual_block_forward.4} parent=0 // loop_exit
    _

</llo_original>
